<compile_context>
chip_gen: v5e
topology: v5e:2x2
jax: 0.10.0
libtpu: 0.0.40
codegen_flags: <defaults>
</compile_context>

<pallas_src>
import math

import jax
import jax.numpy as jnp
from jax import lax
from jax.experimental import pallas as pl
from jax.experimental.pallas import tpu as pltpu

D_MODEL = 64
NHEAD = 4
NUM_LAYERS = 2
DIM_FF = 2048          # nn.TransformerEncoderLayer default dim_feedforward
FF_CHUNK = 512
N_FF_CHUNKS = DIM_FF // FF_CHUNK
OUTPUT_SIZE = 1
MAX_LEN = 60
LN_EPS = 1e-5
BATCH_TILE = 32        # v7x-safe; on v6e (128 MiB VMEM) this could go to ~128


def _layer_norm(y, g, b):
    mu = jnp.mean(y, axis=-1, keepdims=True)
    var = jnp.mean(jnp.square(y - mu), axis=-1, keepdims=True)
    return (y - mu) * lax.rsqrt(var + LN_EPS) * g + b


def transformer_kernel(x_ref, pe_ref, w_in_ref, b_in_ref,
                       wq_ref, bq_ref, wk_ref, bk_ref, wv_ref, bv_ref,
                       wo_ref, bo_ref,
                       w1_ref, b1_ref, w2_ref, b2_ref,
                       g1_ref, be1_ref, g2_ref, be2_ref,
                       wout_ref, bout_ref, out_ref):
    TB, S = x_ref.shape
    D = w_in_ref.shape[1]
    L = wq_ref.shape[0]
    H = NHEAD
    Dh = D // H
    NC = w1_ref.shape[1]
    bf16 = jnp.bfloat16
    f32 = jnp.float32

    def encoder_layer(h_kv, h_q, l):
        """One post-norm nn.TransformerEncoderLayer.  Queries (and residual /
        layernorms / FFN) restricted to the positions in h_q; K/V use h_kv."""
        Sq = h_q.shape[1]
        Mq, Mkv = TB * Sq, TB * S
        hq_b = h_q.reshape(Mq, D).astype(bf16)
        hkv_b = h_kv.reshape(Mkv, D).astype(bf16)

        # QKV projections: bf16 operands on the MXU, f32 accumulation.
        # The 1/sqrt(Dh) attention scale is pre-folded into wq / bq.
        q = jnp.dot(hq_b, wq_ref[l], preferred_element_type=f32) + bq_ref[l]
        k = jnp.dot(hkv_b, wk_ref[l], preferred_element_type=f32) + bk_ref[l]
        v = jnp.dot(hkv_b, wv_ref[l], preferred_element_type=f32) + bv_ref[l]
        q3 = q.reshape(TB, Sq, D).astype(bf16)
        k3 = k.reshape(TB, S, D).astype(bf16)
        v3 = v.reshape(TB, S, D).astype(bf16)

        ctx_heads = []
        for hh in range(H):                               # static unroll (H=4)
            lo = hh * Dh
            s = jnp.einsum('bqd,bkd->bqk', q3[:, :, lo:lo + Dh],
                           k3[:, :, lo:lo + Dh],
                           preferred_element_type=f32)    # (TB, Sq, S) f32
            s = s - jnp.max(s, axis=-1, keepdims=True)
            p = jnp.exp(s)
            p = p * pl.reciprocal(jnp.sum(p, axis=-1, keepdims=True),
                                  approx=True)
            ctx_heads.append(jnp.einsum('bqk,bkd->bqd', p.astype(bf16),
                                        v3[:, :, lo:lo + Dh],
                                        preferred_element_type=f32))
        # Reassemble heads once and run a single depth-D output projection.
        ctx = jnp.concatenate(ctx_heads, axis=-1).reshape(Mq, D)
        attn = (jnp.dot(ctx.astype(bf16), wo_ref[l],
                        preferred_element_type=f32) + bo_ref[l])
        y = _layer_norm(h_q + attn.reshape(TB, Sq, D), g1_ref[l], be1_ref[l])

        # Feed forward (Linear -> ReLU -> Linear), chunked over DIM_FF.
        # fori_loop carry bounds liveness of the (Mq, FF_CHUNK) intermediate.
        yb = y.reshape(Mq, D).astype(bf16)

        def ff_body(c, acc):
            t = (jnp.dot(yb, w1_ref[l, c], preferred_element_type=f32)
                 + b1_ref[l, c])
            t = jnp.maximum(t, 0.0).astype(bf16)
            return acc + jnp.dot(t, w2_ref[l, c], preferred_element_type=f32)

        ff = lax.fori_loop(0, NC, ff_body, jnp.zeros((Mq, D), f32),
                           unroll=True)
        ff = ff + b2_ref[l]
        return _layer_norm(y + ff.reshape(TB, Sq, D), g2_ref[l], be2_ref[l])

    # input_fc (input_size == 1): outer product + bias, then positional encoding.
    x = x_ref[...]                                        # (TB, S) lane-dense
    h = (x[:, :, None] * w_in_ref[...][None, :, :]
         + b_in_ref[...][None, :, :]
         + pe_ref[...][None, :, :])                       # (TB, S, D) f32

    for l in range(L - 1):                                # full-sequence layers
        h = encoder_layer(h, h, l)
    # Last layer: only position S-1 feeds fc_out, so restrict queries/FFN to it.
    h_last = encoder_layer(h, h[:, S - 1:S, :], L - 1)    # (TB, 1, D)

    # fc_out on the last sequence position (== x[-1] after transpose in torch):
    # N=1 projection done on the VPU (multiply + lane reduction), not the MXU.
    last = h_last.reshape(TB, D)
    out = jnp.sum(last * wout_ref[...], axis=-1, keepdims=True) + bout_ref[...]
    out_ref[...] = out.astype(out_ref.dtype)


def positional_encoding(max_len, d_model):
    position = jnp.arange(max_len, dtype=jnp.float32)[:, None]
    div_term = jnp.exp(jnp.arange(0, d_model, 2, dtype=jnp.float32)
                       * (-math.log(10000.0) / d_model))
    pe = jnp.zeros((max_len, d_model), jnp.float32)
    pe = pe.at[:, 0::2].set(jnp.sin(position * div_term))
    pe = pe.at[:, 1::2].set(jnp.cos(position * div_term))
    return pe


def make_params(key, input_size=1):
    """Parameters in the PyTorch layout (transposed weights)."""
    ks = jax.random.split(key, 12)
    init = lambda k, shp: (0.05 * jax.random.normal(k, shp)).astype(jnp.float32)
    return dict(
        w_in=init(ks[0], (input_size, D_MODEL)),               # input_fc.weight.T
        b_in=init(ks[1], (1, D_MODEL)),
        wqkv=init(ks[2], (NUM_LAYERS, D_MODEL, 3 * D_MODEL)),  # in_proj_weight.T
        bqkv=init(ks[3], (NUM_LAYERS, 1, 3 * D_MODEL)),
        wo=init(ks[4], (NUM_LAYERS, D_MODEL, D_MODEL)),        # out_proj.weight.T
        bo=init(ks[5], (NUM_LAYERS, 1, D_MODEL)),
        w1=init(ks[6], (NUM_LAYERS, D_MODEL, DIM_FF)),         # linear1.weight.T
        b1=init(ks[7], (NUM_LAYERS, 1, DIM_FF)),
        w2=init(ks[8], (NUM_LAYERS, DIM_FF, D_MODEL)),         # linear2.weight.T
        b2=init(ks[9], (NUM_LAYERS, 1, D_MODEL)),
        g1=jnp.ones((NUM_LAYERS, 1, D_MODEL), jnp.float32),    # norm1 weight/bias
        be1=jnp.zeros((NUM_LAYERS, 1, D_MODEL), jnp.float32),
        g2=jnp.ones((NUM_LAYERS, 1, D_MODEL), jnp.float32),    # norm2 weight/bias
        be2=jnp.zeros((NUM_LAYERS, 1, D_MODEL), jnp.float32),
        wout=init(ks[10], (D_MODEL, OUTPUT_SIZE)),             # fc_out.weight.T
        bout=init(ks[11], (1, OUTPUT_SIZE)),
    )


def prepare_params(p):
    """One-time re-layout of PyTorch-style params into the kernel layout
    (split qkv, fold attention scale, chunk FFN weights, bf16 matmul weights).
    Hoisted out of the per-call jitted path."""
    D, L = D_MODEL, NUM_LAYERS
    scale = 1.0 / math.sqrt(D // NHEAD)
    bf16 = jnp.bfloat16
    wqkv, bqkv = p['wqkv'], p['bqkv']
    return dict(
        pe=positional_encoding(MAX_LEN, D),
        w_in=p['w_in'], b_in=p['b_in'],
        wq=(wqkv[:, :, :D] * scale).astype(bf16), bq=bqkv[:, :, :D] * scale,
        wk=wqkv[:, :, D:2 * D].astype(bf16),      bk=bqkv[:, :, D:2 * D],
        wv=wqkv[:, :, 2 * D:].astype(bf16),       bv=bqkv[:, :, 2 * D:],
        wo=p['wo'].astype(bf16), bo=p['bo'],
        w1=p['w1'].reshape(L, D, N_FF_CHUNKS, FF_CHUNK)
                  .transpose(0, 2, 1, 3).astype(bf16),
        b1=p['b1'].reshape(L, 1, N_FF_CHUNKS, FF_CHUNK).transpose(0, 2, 1, 3),
        w2=p['w2'].reshape(L, N_FF_CHUNKS, FF_CHUNK, D).astype(bf16),
        b2=p['b2'], g1=p['g1'], be1=p['be1'], g2=p['g2'], be2=p['be2'],
        wout=p['wout'].T,            # (1, D) row for the VPU final projection
        bout=p['bout'],
    )


@jax.jit
def model_transformer_forward(x, kp):
    B, S, I = x.shape
    assert I == 1, "module default input_size == 1"
    assert S <= MAX_LEN
    x2 = x[..., 0]                                 # lane-dense (B, S)
    pe = kp['pe'][:S]

    # Batch tiling: large batches use BATCH_TILE-sized tiles; mid-size batches
    # are split into >= 2 tiles (both v7x TensorCores); tiny demo batches keep
    # a single full-extent block so block dims equal the array dims.
    if B >= 2 * BATCH_TILE:
        TB = BATCH_TILE
    elif B > 8:
        TB = 8 * pl.cdiv(pl.cdiv(B, 2), 8)
    else:
        TB = B
    B_pad = TB * pl.cdiv(B, TB)
    if B_pad != B:
        x2 = jnp.pad(x2, ((0, B_pad - B), (0, 0)))
    grid_b = B_pad // TB

    warrays = (kp['w_in'], kp['b_in'], kp['wq'], kp['bq'], kp['wk'], kp['bk'],
               kp['wv'], kp['bv'], kp['wo'], kp['bo'], kp['w1'], kp['b1'],
               kp['w2'], kp['b2'], kp['g1'], kp['be1'], kp['g2'], kp['be2'],
               kp['wout'], kp['bout'])

    def wspec(a):
        zeros = (0,) * a.ndim
        return pl.BlockSpec(a.shape, lambda i, _z=zeros: _z)   # resident weight

    in_specs = ([pl.BlockSpec((TB, S), lambda i: (i, 0)), wspec(pe)]
                + [wspec(a) for a in warrays])
    out_spec = pl.BlockSpec((TB, OUTPUT_SIZE), lambda i: (i, 0))

    D, FF = D_MODEL, DIM_FF
    full_layer = 8 * S * D * D + 4 * S * S * D + 4 * S * D * FF
    last_layer = 4 * S * D * D + 4 * D * D + 4 * S * D + 4 * D * FF
    flops = int(B_pad * (2 * S * D + (NUM_LAYERS - 1) * full_layer
                         + last_layer + 2 * D))
    transcendentals = int(B_pad * S * ((NUM_LAYERS - 1) * NHEAD * S
                                       + NHEAD + 2 * NUM_LAYERS))
    param_bytes = int(pe.size * pe.dtype.itemsize
                      + sum(a.size * a.dtype.itemsize for a in warrays))
    bytes_accessed = int(param_bytes + 4 * x2.size + 4 * B_pad * OUTPUT_SIZE)

    out = pl.pallas_call(
        transformer_kernel,
        out_shape=jax.ShapeDtypeStruct((B_pad, OUTPUT_SIZE), jnp.float32),
        grid=(grid_b,),
        in_specs=in_specs,
        out_specs=out_spec,
        compiler_params=pltpu.CompilerParams(
            dimension_semantics=("parallel",),
            vmem_limit_bytes=40 << 20),
        cost_estimate=pl.CostEstimate(flops=flops,
                                      transcendentals=transcendentals,
                                      bytes_accessed=bytes_accessed),
    )(x2, pe, *warrays)

    return out[:B].squeeze()   # matches output.squeeze() -> shape (B,)


if __name__ == "__main__":
    key = jax.random.PRNGKey(0)
    pkey, xkey = jax.random.split(key)
    params = make_params(pkey, input_size=1)
    kparams = prepare_params(params)        # one-time weight re-layout (not per call)

    B, S = 2, 8
    x = jax.random.normal(xkey, (B, S, 1), dtype=jnp.float32)

    y = model_transformer_forward(x, kparams)
    jax.block_until_ready(y)
    assert y.shape == (B,), y.shape
    assert bool(jnp.all(jnp.isfinite(y)))
    print("KERNEL_OK")
</pallas_src>

<mosaic_0001>
module attributes {stable_mosaic.version = 11 : i64} {
  func.func @transformer_kernel(%arg0: i32, %arg1: memref<2x8xf32, #tpu.memory_space<vmem>>, %arg2: memref<8x64xf32, #tpu.memory_space<vmem>>, %arg3: memref<1x64xf32, #tpu.memory_space<vmem>>, %arg4: memref<1x64xf32, #tpu.memory_space<vmem>>, %arg5: memref<2x64x64xbf16, #tpu.memory_space<vmem>>, %arg6: memref<2x1x64xf32, #tpu.memory_space<vmem>>, %arg7: memref<2x64x64xbf16, #tpu.memory_space<vmem>>, %arg8: memref<2x1x64xf32, #tpu.memory_space<vmem>>, %arg9: memref<2x64x64xbf16, #tpu.memory_space<vmem>>, %arg10: memref<2x1x64xf32, #tpu.memory_space<vmem>>, %arg11: memref<2x64x64xbf16, #tpu.memory_space<vmem>>, %arg12: memref<2x1x64xf32, #tpu.memory_space<vmem>>, %arg13: memref<2x4x64x512xbf16, #tpu.memory_space<vmem>>, %arg14: memref<2x4x1x512xf32, #tpu.memory_space<vmem>>, %arg15: memref<2x4x512x64xbf16, #tpu.memory_space<vmem>>, %arg16: memref<2x1x64xf32, #tpu.memory_space<vmem>>, %arg17: memref<2x1x64xf32, #tpu.memory_space<vmem>>, %arg18: memref<2x1x64xf32, #tpu.memory_space<vmem>>, %arg19: memref<2x1x64xf32, #tpu.memory_space<vmem>>, %arg20: memref<2x1x64xf32, #tpu.memory_space<vmem>>, %arg21: memref<1x64xf32, #tpu.memory_space<vmem>>, %arg22: memref<1x1xf32, #tpu.memory_space<vmem>>, %arg23: memref<2x1xf32, #tpu.memory_space<vmem>>) attributes {dimension_semantics = [#tpu.dimension_semantics<parallel>], iteration_bounds = array<i64: 1>, scalar_prefetch = 0 : i64, scratch_operands = 0 : i64, tpu.core_type = #tpu.core_type<tc>, window_params = [{transform_indices = @transform_0, window_bounds = array<i64: 2, 8>}, {pipeline_mode = #tpu.pipeline_mode<synchronous>, transform_indices = @transform_1, window_bounds = array<i64: 8, 64>}, {pipeline_mode = #tpu.pipeline_mode<synchronous>, transform_indices = @transform_2, window_bounds = array<i64: 1, 64>}, {pipeline_mode = #tpu.pipeline_mode<synchronous>, transform_indices = @transform_3, window_bounds = array<i64: 1, 64>}, {pipeline_mode = #tpu.pipeline_mode<synchronous>, transform_indices = @transform_4, window_bounds = array<i64: 2, 64, 64>}, {pipeline_mode = #tpu.pipeline_mode<synchronous>, transform_indices = @transform_5, window_bounds = array<i64: 2, 1, 64>}, {pipeline_mode = #tpu.pipeline_mode<synchronous>, transform_indices = @transform_6, window_bounds = array<i64: 2, 64, 64>}, {pipeline_mode = #tpu.pipeline_mode<synchronous>, transform_indices = @transform_7, window_bounds = array<i64: 2, 1, 64>}, {pipeline_mode = #tpu.pipeline_mode<synchronous>, transform_indices = @transform_8, window_bounds = array<i64: 2, 64, 64>}, {pipeline_mode = #tpu.pipeline_mode<synchronous>, transform_indices = @transform_9, window_bounds = array<i64: 2, 1, 64>}, {pipeline_mode = #tpu.pipeline_mode<synchronous>, transform_indices = @transform_10, window_bounds = array<i64: 2, 64, 64>}, {pipeline_mode = #tpu.pipeline_mode<synchronous>, transform_indices = @transform_11, window_bounds = array<i64: 2, 1, 64>}, {pipeline_mode = #tpu.pipeline_mode<synchronous>, transform_indices = @transform_12, window_bounds = array<i64: 2, 4, 64, 512>}, {pipeline_mode = #tpu.pipeline_mode<synchronous>, transform_indices = @transform_13, window_bounds = array<i64: 2, 4, 1, 512>}, {pipeline_mode = #tpu.pipeline_mode<synchronous>, transform_indices = @transform_14, window_bounds = array<i64: 2, 4, 512, 64>}, {pipeline_mode = #tpu.pipeline_mode<synchronous>, transform_indices = @transform_15, window_bounds = array<i64: 2, 1, 64>}, {pipeline_mode = #tpu.pipeline_mode<synchronous>, transform_indices = @transform_16, window_bounds = array<i64: 2, 1, 64>}, {pipeline_mode = #tpu.pipeline_mode<synchronous>, transform_indices = @transform_17, window_bounds = array<i64: 2, 1, 64>}, {pipeline_mode = #tpu.pipeline_mode<synchronous>, transform_indices = @transform_18, window_bounds = array<i64: 2, 1, 64>}, {pipeline_mode = #tpu.pipeline_mode<synchronous>, transform_indices = @transform_19, window_bounds = array<i64: 2, 1, 64>}, {pipeline_mode = #tpu.pipeline_mode<synchronous>, transform_indices = @transform_20, window_bounds = array<i64: 1, 64>}, {pipeline_mode = #tpu.pipeline_mode<synchronous>, transform_indices = @transform_21, window_bounds = array<i64: 1, 1>}, {transform_indices = @transform_22, window_bounds = array<i64: 2, 1>}]} {
    %c0 = arith.constant 0 : index
    %c0_0 = arith.constant 0 : index
    %0 = vector.load %arg1[%c0, %c0_0] : memref<2x8xf32, #tpu.memory_space<vmem>>, vector<2x8xf32>
    %1 = vector.shape_cast %0 : vector<2x8xf32> to vector<2x8x1xf32>
    %c0_1 = arith.constant 0 : index
    %c0_2 = arith.constant 0 : index
    %2 = vector.load %arg3[%c0_1, %c0_2] : memref<1x64xf32, #tpu.memory_space<vmem>>, vector<1x64xf32>
    %3 = vector.shape_cast %2 : vector<1x64xf32> to vector<1x1x64xf32>
    %4 = vector.broadcast %1 : vector<2x8x1xf32> to vector<2x8x64xf32>
    %5 = vector.broadcast %3 : vector<1x1x64xf32> to vector<2x8x64xf32>
    %6 = arith.mulf %4, %5 : vector<2x8x64xf32>
    %c0_3 = arith.constant 0 : index
    %c0_4 = arith.constant 0 : index
    %7 = vector.load %arg4[%c0_3, %c0_4] : memref<1x64xf32, #tpu.memory_space<vmem>>, vector<1x64xf32>
    %8 = vector.shape_cast %7 : vector<1x64xf32> to vector<1x1x64xf32>
    %9 = vector.broadcast %8 : vector<1x1x64xf32> to vector<2x8x64xf32>
    %10 = arith.addf %6, %9 : vector<2x8x64xf32>
    %c0_5 = arith.constant 0 : index
    %c0_6 = arith.constant 0 : index
    %11 = vector.load %arg2[%c0_5, %c0_6] : memref<8x64xf32, #tpu.memory_space<vmem>>, vector<8x64xf32>
    %12 = vector.shape_cast %11 : vector<8x64xf32> to vector<1x8x64xf32>
    %13 = vector.broadcast %12 : vector<1x8x64xf32> to vector<2x8x64xf32>
    %14 = arith.addf %10, %13 : vector<2x8x64xf32>
    %15 = vector.shape_cast %14 : vector<2x8x64xf32> to vector<16x64xf32>
    %16 = arith.truncf %15 : vector<16x64xf32> to vector<16x64xbf16>
    %17 = vector.shape_cast %14 : vector<2x8x64xf32> to vector<16x64xf32>
    %18 = arith.truncf %17 : vector<16x64xf32> to vector<16x64xbf16>
    %c0_7 = arith.constant 0 : index
    %c0_8 = arith.constant 0 : index
    %c0_9 = arith.constant 0 : index
    %19 = vector.load %arg5[%c0_7, %c0_8, %c0_9] : memref<2x64x64xbf16, #tpu.memory_space<vmem>>, vector<1x64x64xbf16>
    %20 = vector.shape_cast %19 : vector<1x64x64xbf16> to vector<64x64xbf16>
    %cst = arith.constant dense<0.000000e+00> : vector<16x64xf32>
    %21 = tpu.matmul %16, %20, %cst {dimension_numbers = #tpu.dot_dimension_numbers<[1], [0], [0], [1], [0, 0, 1, 1], [], []>} : vector<16x64xbf16>, vector<64x64xbf16>, vector<16x64xf32> -> vector<16x64xf32>
    %c0_10 = arith.constant 0 : index
    %c0_11 = arith.constant 0 : index
    %c0_12 = arith.constant 0 : index
    %22 = vector.load %arg6[%c0_10, %c0_11, %c0_12] : memref<2x1x64xf32, #tpu.memory_space<vmem>>, vector<1x1x64xf32>
    %23 = vector.shape_cast %22 : vector<1x1x64xf32> to vector<1x64xf32>
    %24 = vector.broadcast %23 : vector<1x64xf32> to vector<16x64xf32>
    %25 = arith.addf %21, %24 : vector<16x64xf32>
    %c0_13 = arith.constant 0 : index
    %c0_14 = arith.constant 0 : index
    %c0_15 = arith.constant 0 : index
    %26 = vector.load %arg7[%c0_13, %c0_14, %c0_15] : memref<2x64x64xbf16, #tpu.memory_space<vmem>>, vector<1x64x64xbf16>
    %27 = vector.shape_cast %26 : vector<1x64x64xbf16> to vector<64x64xbf16>
    %cst_16 = arith.constant dense<0.000000e+00> : vector<16x64xf32>
    %28 = tpu.matmul %18, %27, %cst_16 {dimension_numbers = #tpu.dot_dimension_numbers<[1], [0], [0], [1], [0, 0, 1, 1], [], []>} : vector<16x64xbf16>, vector<64x64xbf16>, vector<16x64xf32> -> vector<16x64xf32>
    %c0_17 = arith.constant 0 : index
    %c0_18 = arith.constant 0 : index
    %c0_19 = arith.constant 0 : index
    %29 = vector.load %arg8[%c0_17, %c0_18, %c0_19] : memref<2x1x64xf32, #tpu.memory_space<vmem>>, vector<1x1x64xf32>
    %30 = vector.shape_cast %29 : vector<1x1x64xf32> to vector<1x64xf32>
    %31 = vector.broadcast %30 : vector<1x64xf32> to vector<16x64xf32>
    %32 = arith.addf %28, %31 : vector<16x64xf32>
    %c0_20 = arith.constant 0 : index
    %c0_21 = arith.constant 0 : index
    %c0_22 = arith.constant 0 : index
    %33 = vector.load %arg9[%c0_20, %c0_21, %c0_22] : memref<2x64x64xbf16, #tpu.memory_space<vmem>>, vector<1x64x64xbf16>
    %34 = vector.shape_cast %33 : vector<1x64x64xbf16> to vector<64x64xbf16>
    %cst_23 = arith.constant dense<0.000000e+00> : vector<16x64xf32>
    %35 = tpu.matmul %18, %34, %cst_23 {dimension_numbers = #tpu.dot_dimension_numbers<[1], [0], [0], [1], [0, 0, 1, 1], [], []>} : vector<16x64xbf16>, vector<64x64xbf16>, vector<16x64xf32> -> vector<16x64xf32>
    %c0_24 = arith.constant 0 : index
    %c0_25 = arith.constant 0 : index
    %c0_26 = arith.constant 0 : index
    %36 = vector.load %arg10[%c0_24, %c0_25, %c0_26] : memref<2x1x64xf32, #tpu.memory_space<vmem>>, vector<1x1x64xf32>
    %37 = vector.shape_cast %36 : vector<1x1x64xf32> to vector<1x64xf32>
    %38 = vector.broadcast %37 : vector<1x64xf32> to vector<16x64xf32>
    %39 = arith.addf %35, %38 : vector<16x64xf32>
    %40 = vector.shape_cast %25 : vector<16x64xf32> to vector<2x8x64xf32>
    %41 = arith.truncf %40 : vector<2x8x64xf32> to vector<2x8x64xbf16>
    %42 = vector.shape_cast %32 : vector<16x64xf32> to vector<2x8x64xf32>
    %43 = arith.truncf %42 : vector<2x8x64xf32> to vector<2x8x64xbf16>
    %44 = vector.shape_cast %39 : vector<16x64xf32> to vector<2x8x64xf32>
    %45 = arith.truncf %44 : vector<2x8x64xf32> to vector<2x8x64xbf16>
    %46 = vector.extract_strided_slice %41 {offsets = [0, 0, 0], sizes = [2, 8, 16], strides = [1, 1, 1]} : vector<2x8x64xbf16> to vector<2x8x16xbf16>
    %47 = vector.extract_strided_slice %43 {offsets = [0, 0, 0], sizes = [2, 8, 16], strides = [1, 1, 1]} : vector<2x8x64xbf16> to vector<2x8x16xbf16>
    "tpu.trace_start"() <{level = 10 : i32, message = "bqd,bkd->bqk"}> : () -> ()
    %cst_27 = arith.constant dense<0.000000e+00> : vector<2x8x8xf32>
    %48 = tpu.matmul %46, %47, %cst_27 {dimension_numbers = #tpu.dot_dimension_numbers<[2], [2], [1], [1], [0, 0, 0, 1, 1, 1], [0], [0]>} : vector<2x8x16xbf16>, vector<2x8x16xbf16>, vector<2x8x8xf32> -> vector<2x8x8xf32>
    "tpu.trace_stop"() : () -> ()
    %cst_28 = arith.constant dense<0xFF800000> : vector<2x8xf32>
    %49 = vector.multi_reduction <maximumf>, %48, %cst_28 [2] : vector<2x8x8xf32> to vector<2x8xf32>
    %50 = vector.shape_cast %49 : vector<2x8xf32> to vector<2x8x1xf32>
    %51 = vector.broadcast %50 : vector<2x8x1xf32> to vector<2x8x8xf32>
    %52 = arith.subf %48, %51 : vector<2x8x8xf32>
    %53 = math.exp %52 : vector<2x8x8xf32>
    %cst_29 = arith.constant dense<0.000000e+00> : vector<2x8xf32>
    %54 = vector.multi_reduction <add>, %53, %cst_29 [2] : vector<2x8x8xf32> to vector<2x8xf32>
    %55 = vector.shape_cast %54 : vector<2x8xf32> to vector<2x8x1xf32>
    %56 = tpu.reciprocal %55 {approx = true} : vector<2x8x1xf32> -> vector<2x8x1xf32>
    %57 = vector.broadcast %56 : vector<2x8x1xf32> to vector<2x8x8xf32>
    %58 = arith.mulf %53, %57 : vector<2x8x8xf32>
    %59 = arith.truncf %58 : vector<2x8x8xf32> to vector<2x8x8xbf16>
    %60 = vector.extract_strided_slice %45 {offsets = [0, 0, 0], sizes = [2, 8, 16], strides = [1, 1, 1]} : vector<2x8x64xbf16> to vector<2x8x16xbf16>
    "tpu.trace_start"() <{level = 10 : i32, message = "bqk,bkd->bqd"}> : () -> ()
    %cst_30 = arith.constant dense<0.000000e+00> : vector<2x8x16xf32>
    %61 = tpu.matmul %59, %60, %cst_30 {dimension_numbers = #tpu.dot_dimension_numbers<[2], [1], [1], [2], [0, 0, 0, 1, 1, 2], [0], [0]>} : vector<2x8x8xbf16>, vector<2x8x16xbf16>, vector<2x8x16xf32> -> vector<2x8x16xf32>
    "tpu.trace_stop"() : () -> ()
    %62 = vector.extract_strided_slice %41 {offsets = [0, 0, 16], sizes = [2, 8, 16], strides = [1, 1, 1]} : vector<2x8x64xbf16> to vector<2x8x16xbf16>
    %63 = vector.extract_strided_slice %43 {offsets = [0, 0, 16], sizes = [2, 8, 16], strides = [1, 1, 1]} : vector<2x8x64xbf16> to vector<2x8x16xbf16>
    "tpu.trace_start"() <{level = 10 : i32, message = "bqd,bkd->bqk"}> : () -> ()
    %cst_31 = arith.constant dense<0.000000e+00> : vector<2x8x8xf32>
    %64 = tpu.matmul %62, %63, %cst_31 {dimension_numbers = #tpu.dot_dimension_numbers<[2], [2], [1], [1], [0, 0, 0, 1, 1, 1], [0], [0]>} : vector<2x8x16xbf16>, vector<2x8x16xbf16>, vector<2x8x8xf32> -> vector<2x8x8xf32>
    "tpu.trace_stop"() : () -> ()
    %cst_32 = arith.constant dense<0xFF800000> : vector<2x8xf32>
    %65 = vector.multi_reduction <maximumf>, %64, %cst_32 [2] : vector<2x8x8xf32> to vector<2x8xf32>
    %66 = vector.shape_cast %65 : vector<2x8xf32> to vector<2x8x1xf32>
    %67 = vector.broadcast %66 : vector<2x8x1xf32> to vector<2x8x8xf32>
    %68 = arith.subf %64, %67 : vector<2x8x8xf32>
    %69 = math.exp %68 : vector<2x8x8xf32>
    %cst_33 = arith.constant dense<0.000000e+00> : vector<2x8xf32>
    %70 = vector.multi_reduction <add>, %69, %cst_33 [2] : vector<2x8x8xf32> to vector<2x8xf32>
    %71 = vector.shape_cast %70 : vector<2x8xf32> to vector<2x8x1xf32>
    %72 = tpu.reciprocal %71 {approx = true} : vector<2x8x1xf32> -> vector<2x8x1xf32>
    %73 = vector.broadcast %72 : vector<2x8x1xf32> to vector<2x8x8xf32>
    %74 = arith.mulf %69, %73 : vector<2x8x8xf32>
    %75 = arith.truncf %74 : vector<2x8x8xf32> to vector<2x8x8xbf16>
    %76 = vector.extract_strided_slice %45 {offsets = [0, 0, 16], sizes = [2, 8, 16], strides = [1, 1, 1]} : vector<2x8x64xbf16> to vector<2x8x16xbf16>
    "tpu.trace_start"() <{level = 10 : i32, message = "bqk,bkd->bqd"}> : () -> ()
    %cst_34 = arith.constant dense<0.000000e+00> : vector<2x8x16xf32>
    %77 = tpu.matmul %75, %76, %cst_34 {dimension_numbers = #tpu.dot_dimension_numbers<[2], [1], [1], [2], [0, 0, 0, 1, 1, 2], [0], [0]>} : vector<2x8x8xbf16>, vector<2x8x16xbf16>, vector<2x8x16xf32> -> vector<2x8x16xf32>
    "tpu.trace_stop"() : () -> ()
    %78 = vector.extract_strided_slice %41 {offsets = [0, 0, 32], sizes = [2, 8, 16], strides = [1, 1, 1]} : vector<2x8x64xbf16> to vector<2x8x16xbf16>
    %79 = vector.extract_strided_slice %43 {offsets = [0, 0, 32], sizes = [2, 8, 16], strides = [1, 1, 1]} : vector<2x8x64xbf16> to vector<2x8x16xbf16>
    "tpu.trace_start"() <{level = 10 : i32, message = "bqd,bkd->bqk"}> : () -> ()
    %cst_35 = arith.constant dense<0.000000e+00> : vector<2x8x8xf32>
    %80 = tpu.matmul %78, %79, %cst_35 {dimension_numbers = #tpu.dot_dimension_numbers<[2], [2], [1], [1], [0, 0, 0, 1, 1, 1], [0], [0]>} : vector<2x8x16xbf16>, vector<2x8x16xbf16>, vector<2x8x8xf32> -> vector<2x8x8xf32>
    "tpu.trace_stop"() : () -> ()
    %cst_36 = arith.constant dense<0xFF800000> : vector<2x8xf32>
    %81 = vector.multi_reduction <maximumf>, %80, %cst_36 [2] : vector<2x8x8xf32> to vector<2x8xf32>
    %82 = vector.shape_cast %81 : vector<2x8xf32> to vector<2x8x1xf32>
    %83 = vector.broadcast %82 : vector<2x8x1xf32> to vector<2x8x8xf32>
    %84 = arith.subf %80, %83 : vector<2x8x8xf32>
    %85 = math.exp %84 : vector<2x8x8xf32>
    %cst_37 = arith.constant dense<0.000000e+00> : vector<2x8xf32>
    %86 = vector.multi_reduction <add>, %85, %cst_37 [2] : vector<2x8x8xf32> to vector<2x8xf32>
    %87 = vector.shape_cast %86 : vector<2x8xf32> to vector<2x8x1xf32>
    %88 = tpu.reciprocal %87 {approx = true} : vector<2x8x1xf32> -> vector<2x8x1xf32>
    %89 = vector.broadcast %88 : vector<2x8x1xf32> to vector<2x8x8xf32>
    %90 = arith.mulf %85, %89 : vector<2x8x8xf32>
    %91 = arith.truncf %90 : vector<2x8x8xf32> to vector<2x8x8xbf16>
    %92 = vector.extract_strided_slice %45 {offsets = [0, 0, 32], sizes = [2, 8, 16], strides = [1, 1, 1]} : vector<2x8x64xbf16> to vector<2x8x16xbf16>
    "tpu.trace_start"() <{level = 10 : i32, message = "bqk,bkd->bqd"}> : () -> ()
    %cst_38 = arith.constant dense<0.000000e+00> : vector<2x8x16xf32>
    %93 = tpu.matmul %91, %92, %cst_38 {dimension_numbers = #tpu.dot_dimension_numbers<[2], [1], [1], [2], [0, 0, 0, 1, 1, 2], [0], [0]>} : vector<2x8x8xbf16>, vector<2x8x16xbf16>, vector<2x8x16xf32> -> vector<2x8x16xf32>
    "tpu.trace_stop"() : () -> ()
    %94 = vector.extract_strided_slice %41 {offsets = [0, 0, 48], sizes = [2, 8, 16], strides = [1, 1, 1]} : vector<2x8x64xbf16> to vector<2x8x16xbf16>
    %95 = vector.extract_strided_slice %43 {offsets = [0, 0, 48], sizes = [2, 8, 16], strides = [1, 1, 1]} : vector<2x8x64xbf16> to vector<2x8x16xbf16>
    "tpu.trace_start"() <{level = 10 : i32, message = "bqd,bkd->bqk"}> : () -> ()
    %cst_39 = arith.constant dense<0.000000e+00> : vector<2x8x8xf32>
    %96 = tpu.matmul %94, %95, %cst_39 {dimension_numbers = #tpu.dot_dimension_numbers<[2], [2], [1], [1], [0, 0, 0, 1, 1, 1], [0], [0]>} : vector<2x8x16xbf16>, vector<2x8x16xbf16>, vector<2x8x8xf32> -> vector<2x8x8xf32>
    "tpu.trace_stop"() : () -> ()
    %cst_40 = arith.constant dense<0xFF800000> : vector<2x8xf32>
    %97 = vector.multi_reduction <maximumf>, %96, %cst_40 [2] : vector<2x8x8xf32> to vector<2x8xf32>
    %98 = vector.shape_cast %97 : vector<2x8xf32> to vector<2x8x1xf32>
    %99 = vector.broadcast %98 : vector<2x8x1xf32> to vector<2x8x8xf32>
    %100 = arith.subf %96, %99 : vector<2x8x8xf32>
    %101 = math.exp %100 : vector<2x8x8xf32>
    %cst_41 = arith.constant dense<0.000000e+00> : vector<2x8xf32>
    %102 = vector.multi_reduction <add>, %101, %cst_41 [2] : vector<2x8x8xf32> to vector<2x8xf32>
    %103 = vector.shape_cast %102 : vector<2x8xf32> to vector<2x8x1xf32>
    %104 = tpu.reciprocal %103 {approx = true} : vector<2x8x1xf32> -> vector<2x8x1xf32>
    %105 = vector.broadcast %104 : vector<2x8x1xf32> to vector<2x8x8xf32>
    %106 = arith.mulf %101, %105 : vector<2x8x8xf32>
    %107 = arith.truncf %106 : vector<2x8x8xf32> to vector<2x8x8xbf16>
    %108 = vector.extract_strided_slice %45 {offsets = [0, 0, 48], sizes = [2, 8, 16], strides = [1, 1, 1]} : vector<2x8x64xbf16> to vector<2x8x16xbf16>
    "tpu.trace_start"() <{level = 10 : i32, message = "bqk,bkd->bqd"}> : () -> ()
    %cst_42 = arith.constant dense<0.000000e+00> : vector<2x8x16xf32>
    %109 = tpu.matmul %107, %108, %cst_42 {dimension_numbers = #tpu.dot_dimension_numbers<[2], [1], [1], [2], [0, 0, 0, 1, 1, 2], [0], [0]>} : vector<2x8x8xbf16>, vector<2x8x16xbf16>, vector<2x8x16xf32> -> vector<2x8x16xf32>
    "tpu.trace_stop"() : () -> ()
    %110 = tpu.concatenate %61, %77, %93, %109 in 2 : vector<2x8x16xf32>, vector<2x8x16xf32>, vector<2x8x16xf32>, vector<2x8x16xf32> -> vector<2x8x64xf32>
    %111 = vector.shape_cast %110 : vector<2x8x64xf32> to vector<16x64xf32>
    %112 = arith.truncf %111 : vector<16x64xf32> to vector<16x64xbf16>
    %c0_43 = arith.constant 0 : index
    %c0_44 = arith.constant 0 : index
    %c0_45 = arith.constant 0 : index
    %113 = vector.load %arg11[%c0_43, %c0_44, %c0_45] : memref<2x64x64xbf16, #tpu.memory_space<vmem>>, vector<1x64x64xbf16>
    %114 = vector.shape_cast %113 : vector<1x64x64xbf16> to vector<64x64xbf16>
    %cst_46 = arith.constant dense<0.000000e+00> : vector<16x64xf32>
    %115 = tpu.matmul %112, %114, %cst_46 {dimension_numbers = #tpu.dot_dimension_numbers<[1], [0], [0], [1], [0, 0, 1, 1], [], []>} : vector<16x64xbf16>, vector<64x64xbf16>, vector<16x64xf32> -> vector<16x64xf32>
    %c0_47 = arith.constant 0 : index
    %c0_48 = arith.constant 0 : index
    %c0_49 = arith.constant 0 : index
    %116 = vector.load %arg12[%c0_47, %c0_48, %c0_49] : memref<2x1x64xf32, #tpu.memory_space<vmem>>, vector<1x1x64xf32>
    %117 = vector.shape_cast %116 : vector<1x1x64xf32> to vector<1x64xf32>
    %118 = vector.broadcast %117 : vector<1x64xf32> to vector<16x64xf32>
    %119 = arith.addf %115, %118 : vector<16x64xf32>
    %120 = vector.shape_cast %119 : vector<16x64xf32> to vector<2x8x64xf32>
    %121 = arith.addf %14, %120 : vector<2x8x64xf32>
    %c0_50 = arith.constant 0 : index
    %c0_51 = arith.constant 0 : index
    %c0_52 = arith.constant 0 : index
    %122 = vector.load %arg17[%c0_50, %c0_51, %c0_52] : memref<2x1x64xf32, #tpu.memory_space<vmem>>, vector<1x1x64xf32>
    %123 = vector.shape_cast %122 : vector<1x1x64xf32> to vector<1x64xf32>
    %c0_53 = arith.constant 0 : index
    %c0_54 = arith.constant 0 : index
    %c0_55 = arith.constant 0 : index
    %124 = vector.load %arg18[%c0_53, %c0_54, %c0_55] : memref<2x1x64xf32, #tpu.memory_space<vmem>>, vector<1x1x64xf32>
    %125 = vector.shape_cast %124 : vector<1x1x64xf32> to vector<1x64xf32>
    %cst_56 = arith.constant dense<0.000000e+00> : vector<2x8xf32>
    %126 = vector.multi_reduction <add>, %121, %cst_56 [2] : vector<2x8x64xf32> to vector<2x8xf32>
    %127 = vector.shape_cast %126 : vector<2x8xf32> to vector<2x8x1xf32>
    %cst_57 = arith.constant 6.400000e+01 : f32
    %128 = vector.broadcast %cst_57 : f32 to vector<2x8x1xf32>
    %129 = arith.divf %127, %128 : vector<2x8x1xf32>
    %130 = vector.broadcast %129 : vector<2x8x1xf32> to vector<2x8x64xf32>
    %131 = arith.subf %121, %130 : vector<2x8x64xf32>
    %132 = arith.mulf %131, %131 : vector<2x8x64xf32>
    %cst_58 = arith.constant dense<0.000000e+00> : vector<2x8xf32>
    %133 = vector.multi_reduction <add>, %132, %cst_58 [2] : vector<2x8x64xf32> to vector<2x8xf32>
    %134 = vector.shape_cast %133 : vector<2x8xf32> to vector<2x8x1xf32>
    %cst_59 = arith.constant 6.400000e+01 : f32
    %135 = vector.broadcast %cst_59 : f32 to vector<2x8x1xf32>
    %136 = arith.divf %134, %135 : vector<2x8x1xf32>
    %137 = vector.broadcast %129 : vector<2x8x1xf32> to vector<2x8x64xf32>
    %138 = arith.subf %121, %137 : vector<2x8x64xf32>
    %cst_60 = arith.constant 9.99999974E-6 : f32
    %139 = vector.broadcast %cst_60 : f32 to vector<2x8x1xf32>
    %140 = arith.addf %136, %139 : vector<2x8x1xf32>
    %141 = math.rsqrt %140 : vector<2x8x1xf32>
    %142 = vector.broadcast %141 : vector<2x8x1xf32> to vector<2x8x64xf32>
    %143 = arith.mulf %138, %142 : vector<2x8x64xf32>
    %144 = vector.shape_cast %123 : vector<1x64xf32> to vector<1x1x64xf32>
    %145 = vector.broadcast %144 : vector<1x1x64xf32> to vector<2x8x64xf32>
    %146 = arith.mulf %143, %145 : vector<2x8x64xf32>
    %147 = vector.shape_cast %125 : vector<1x64xf32> to vector<1x1x64xf32>
    %148 = vector.broadcast %147 : vector<1x1x64xf32> to vector<2x8x64xf32>
    %149 = arith.addf %146, %148 : vector<2x8x64xf32>
    %150 = vector.shape_cast %149 : vector<2x8x64xf32> to vector<16x64xf32>
    %151 = arith.truncf %150 : vector<16x64xf32> to vector<16x64xbf16>
    %cst_61 = arith.constant 0.000000e+00 : f32
    %152 = vector.broadcast %cst_61 : f32 to vector<16x64xf32>
    %c0_i32 = arith.constant 0 : i32
    %c0_62 = arith.constant 0 : index
    %153 = arith.index_cast %c0_i32 : i32 to index
    %c0_63 = arith.constant 0 : index
    %c0_64 = arith.constant 0 : index
    %154 = vector.load %arg13[%c0_62, %153, %c0_63, %c0_64] : memref<2x4x64x512xbf16, #tpu.memory_space<vmem>>, vector<1x1x64x512xbf16>
    %155 = vector.shape_cast %154 : vector<1x1x64x512xbf16> to vector<64x512xbf16>
    %cst_65 = arith.constant dense<0.000000e+00> : vector<16x512xf32>
    %156 = tpu.matmul %151, %155, %cst_65 {dimension_numbers = #tpu.dot_dimension_numbers<[1], [0], [0], [1], [0, 0, 1, 1], [], []>} : vector<16x64xbf16>, vector<64x512xbf16>, vector<16x512xf32> -> vector<16x512xf32>
    %c0_66 = arith.constant 0 : index
    %157 = arith.index_cast %c0_i32 : i32 to index
    %c0_67 = arith.constant 0 : index
    %c0_68 = arith.constant 0 : index
    %158 = vector.load %arg14[%c0_66, %157, %c0_67, %c0_68] : memref<2x4x1x512xf32, #tpu.memory_space<vmem>>, vector<1x1x1x512xf32>
    %159 = vector.shape_cast %158 : vector<1x1x1x512xf32> to vector<1x512xf32>
    %160 = vector.broadcast %159 : vector<1x512xf32> to vector<16x512xf32>
    %161 = arith.addf %156, %160 : vector<16x512xf32>
    %cst_69 = arith.constant 0.000000e+00 : f32
    %162 = vector.broadcast %cst_69 : f32 to vector<16x512xf32>
    %163 = arith.maximumf %161, %162 : vector<16x512xf32>
    %164 = arith.truncf %163 : vector<16x512xf32> to vector<16x512xbf16>
    %c0_70 = arith.constant 0 : index
    %165 = arith.index_cast %c0_i32 : i32 to index
    %c0_71 = arith.constant 0 : index
    %c0_72 = arith.constant 0 : index
    %166 = vector.load %arg15[%c0_70, %165, %c0_71, %c0_72] : memref<2x4x512x64xbf16, #tpu.memory_space<vmem>>, vector<1x1x512x64xbf16>
    %167 = vector.shape_cast %166 : vector<1x1x512x64xbf16> to vector<512x64xbf16>
    %cst_73 = arith.constant dense<0.000000e+00> : vector<16x64xf32>
    %168 = tpu.matmul %164, %167, %cst_73 {dimension_numbers = #tpu.dot_dimension_numbers<[1], [0], [0], [1], [0, 0, 1, 1], [], []>} : vector<16x512xbf16>, vector<512x64xbf16>, vector<16x64xf32> -> vector<16x64xf32>
    %169 = arith.addf %152, %168 : vector<16x64xf32>
    %c1_i32 = arith.constant 1 : i32
    %c0_74 = arith.constant 0 : index
    %170 = arith.index_cast %c1_i32 : i32 to index
    %c0_75 = arith.constant 0 : index
    %c0_76 = arith.constant 0 : index
    %171 = vector.load %arg13[%c0_74, %170, %c0_75, %c0_76] : memref<2x4x64x512xbf16, #tpu.memory_space<vmem>>, vector<1x1x64x512xbf16>
    %172 = vector.shape_cast %171 : vector<1x1x64x512xbf16> to vector<64x512xbf16>
    %cst_77 = arith.constant dense<0.000000e+00> : vector<16x512xf32>
    %173 = tpu.matmul %151, %172, %cst_77 {dimension_numbers = #tpu.dot_dimension_numbers<[1], [0], [0], [1], [0, 0, 1, 1], [], []>} : vector<16x64xbf16>, vector<64x512xbf16>, vector<16x512xf32> -> vector<16x512xf32>
    %c0_78 = arith.constant 0 : index
    %174 = arith.index_cast %c1_i32 : i32 to index
    %c0_79 = arith.constant 0 : index
    %c0_80 = arith.constant 0 : index
    %175 = vector.load %arg14[%c0_78, %174, %c0_79, %c0_80] : memref<2x4x1x512xf32, #tpu.memory_space<vmem>>, vector<1x1x1x512xf32>
    %176 = vector.shape_cast %175 : vector<1x1x1x512xf32> to vector<1x512xf32>
    %177 = vector.broadcast %176 : vector<1x512xf32> to vector<16x512xf32>
    %178 = arith.addf %173, %177 : vector<16x512xf32>
    %cst_81 = arith.constant 0.000000e+00 : f32
    %179 = vector.broadcast %cst_81 : f32 to vector<16x512xf32>
    %180 = arith.maximumf %178, %179 : vector<16x512xf32>
    %181 = arith.truncf %180 : vector<16x512xf32> to vector<16x512xbf16>
    %c0_82 = arith.constant 0 : index
    %182 = arith.index_cast %c1_i32 : i32 to index
    %c0_83 = arith.constant 0 : index
    %c0_84 = arith.constant 0 : index
    %183 = vector.load %arg15[%c0_82, %182, %c0_83, %c0_84] : memref<2x4x512x64xbf16, #tpu.memory_space<vmem>>, vector<1x1x512x64xbf16>
    %184 = vector.shape_cast %183 : vector<1x1x512x64xbf16> to vector<512x64xbf16>
    %cst_85 = arith.constant dense<0.000000e+00> : vector<16x64xf32>
    %185 = tpu.matmul %181, %184, %cst_85 {dimension_numbers = #tpu.dot_dimension_numbers<[1], [0], [0], [1], [0, 0, 1, 1], [], []>} : vector<16x512xbf16>, vector<512x64xbf16>, vector<16x64xf32> -> vector<16x64xf32>
    %186 = arith.addf %169, %185 : vector<16x64xf32>
    %c2_i32 = arith.constant 2 : i32
    %c0_86 = arith.constant 0 : index
    %187 = arith.index_cast %c2_i32 : i32 to index
    %c0_87 = arith.constant 0 : index
    %c0_88 = arith.constant 0 : index
    %188 = vector.load %arg13[%c0_86, %187, %c0_87, %c0_88] : memref<2x4x64x512xbf16, #tpu.memory_space<vmem>>, vector<1x1x64x512xbf16>
    %189 = vector.shape_cast %188 : vector<1x1x64x512xbf16> to vector<64x512xbf16>
    %cst_89 = arith.constant dense<0.000000e+00> : vector<16x512xf32>
    %190 = tpu.matmul %151, %189, %cst_89 {dimension_numbers = #tpu.dot_dimension_numbers<[1], [0], [0], [1], [0, 0, 1, 1], [], []>} : vector<16x64xbf16>, vector<64x512xbf16>, vector<16x512xf32> -> vector<16x512xf32>
    %c0_90 = arith.constant 0 : index
    %191 = arith.index_cast %c2_i32 : i32 to index
    %c0_91 = arith.constant 0 : index
    %c0_92 = arith.constant 0 : index
    %192 = vector.load %arg14[%c0_90, %191, %c0_91, %c0_92] : memref<2x4x1x512xf32, #tpu.memory_space<vmem>>, vector<1x1x1x512xf32>
    %193 = vector.shape_cast %192 : vector<1x1x1x512xf32> to vector<1x512xf32>
    %194 = vector.broadcast %193 : vector<1x512xf32> to vector<16x512xf32>
    %195 = arith.addf %190, %194 : vector<16x512xf32>
    %cst_93 = arith.constant 0.000000e+00 : f32
    %196 = vector.broadcast %cst_93 : f32 to vector<16x512xf32>
    %197 = arith.maximumf %195, %196 : vector<16x512xf32>
    %198 = arith.truncf %197 : vector<16x512xf32> to vector<16x512xbf16>
    %c0_94 = arith.constant 0 : index
    %199 = arith.index_cast %c2_i32 : i32 to index
    %c0_95 = arith.constant 0 : index
    %c0_96 = arith.constant 0 : index
    %200 = vector.load %arg15[%c0_94, %199, %c0_95, %c0_96] : memref<2x4x512x64xbf16, #tpu.memory_space<vmem>>, vector<1x1x512x64xbf16>
    %201 = vector.shape_cast %200 : vector<1x1x512x64xbf16> to vector<512x64xbf16>
    %cst_97 = arith.constant dense<0.000000e+00> : vector<16x64xf32>
    %202 = tpu.matmul %198, %201, %cst_97 {dimension_numbers = #tpu.dot_dimension_numbers<[1], [0], [0], [1], [0, 0, 1, 1], [], []>} : vector<16x512xbf16>, vector<512x64xbf16>, vector<16x64xf32> -> vector<16x64xf32>
    %203 = arith.addf %186, %202 : vector<16x64xf32>
    %c3_i32 = arith.constant 3 : i32
    %c0_98 = arith.constant 0 : index
    %204 = arith.index_cast %c3_i32 : i32 to index
    %c0_99 = arith.constant 0 : index
    %c0_100 = arith.constant 0 : index
    %205 = vector.load %arg13[%c0_98, %204, %c0_99, %c0_100] : memref<2x4x64x512xbf16, #tpu.memory_space<vmem>>, vector<1x1x64x512xbf16>
    %206 = vector.shape_cast %205 : vector<1x1x64x512xbf16> to vector<64x512xbf16>
    %cst_101 = arith.constant dense<0.000000e+00> : vector<16x512xf32>
    %207 = tpu.matmul %151, %206, %cst_101 {dimension_numbers = #tpu.dot_dimension_numbers<[1], [0], [0], [1], [0, 0, 1, 1], [], []>} : vector<16x64xbf16>, vector<64x512xbf16>, vector<16x512xf32> -> vector<16x512xf32>
    %c0_102 = arith.constant 0 : index
    %208 = arith.index_cast %c3_i32 : i32 to index
    %c0_103 = arith.constant 0 : index
    %c0_104 = arith.constant 0 : index
    %209 = vector.load %arg14[%c0_102, %208, %c0_103, %c0_104] : memref<2x4x1x512xf32, #tpu.memory_space<vmem>>, vector<1x1x1x512xf32>
    %210 = vector.shape_cast %209 : vector<1x1x1x512xf32> to vector<1x512xf32>
    %211 = vector.broadcast %210 : vector<1x512xf32> to vector<16x512xf32>
    %212 = arith.addf %207, %211 : vector<16x512xf32>
    %cst_105 = arith.constant 0.000000e+00 : f32
    %213 = vector.broadcast %cst_105 : f32 to vector<16x512xf32>
    %214 = arith.maximumf %212, %213 : vector<16x512xf32>
    %215 = arith.truncf %214 : vector<16x512xf32> to vector<16x512xbf16>
    %c0_106 = arith.constant 0 : index
    %216 = arith.index_cast %c3_i32 : i32 to index
    %c0_107 = arith.constant 0 : index
    %c0_108 = arith.constant 0 : index
    %217 = vector.load %arg15[%c0_106, %216, %c0_107, %c0_108] : memref<2x4x512x64xbf16, #tpu.memory_space<vmem>>, vector<1x1x512x64xbf16>
    %218 = vector.shape_cast %217 : vector<1x1x512x64xbf16> to vector<512x64xbf16>
    %cst_109 = arith.constant dense<0.000000e+00> : vector<16x64xf32>
    %219 = tpu.matmul %215, %218, %cst_109 {dimension_numbers = #tpu.dot_dimension_numbers<[1], [0], [0], [1], [0, 0, 1, 1], [], []>} : vector<16x512xbf16>, vector<512x64xbf16>, vector<16x64xf32> -> vector<16x64xf32>
    %220 = arith.addf %203, %219 : vector<16x64xf32>
    %c4_i32 = arith.constant 4 : i32
    %c0_110 = arith.constant 0 : index
    %c0_111 = arith.constant 0 : index
    %c0_112 = arith.constant 0 : index
    %221 = vector.load %arg16[%c0_110, %c0_111, %c0_112] : memref<2x1x64xf32, #tpu.memory_space<vmem>>, vector<1x1x64xf32>
    %222 = vector.shape_cast %221 : vector<1x1x64xf32> to vector<1x64xf32>
    %223 = vector.broadcast %222 : vector<1x64xf32> to vector<16x64xf32>
    %224 = arith.addf %220, %223 : vector<16x64xf32>
    %225 = vector.shape_cast %224 : vector<16x64xf32> to vector<2x8x64xf32>
    %226 = arith.addf %149, %225 : vector<2x8x64xf32>
    %c0_113 = arith.constant 0 : index
    %c0_114 = arith.constant 0 : index
    %c0_115 = arith.constant 0 : index
    %227 = vector.load %arg19[%c0_113, %c0_114, %c0_115] : memref<2x1x64xf32, #tpu.memory_space<vmem>>, vector<1x1x64xf32>
    %228 = vector.shape_cast %227 : vector<1x1x64xf32> to vector<1x64xf32>
    %c0_116 = arith.constant 0 : index
    %c0_117 = arith.constant 0 : index
    %c0_118 = arith.constant 0 : index
    %229 = vector.load %arg20[%c0_116, %c0_117, %c0_118] : memref<2x1x64xf32, #tpu.memory_space<vmem>>, vector<1x1x64xf32>
    %230 = vector.shape_cast %229 : vector<1x1x64xf32> to vector<1x64xf32>
    %cst_119 = arith.constant dense<0.000000e+00> : vector<2x8xf32>
    %231 = vector.multi_reduction <add>, %226, %cst_119 [2] : vector<2x8x64xf32> to vector<2x8xf32>
    %232 = vector.shape_cast %231 : vector<2x8xf32> to vector<2x8x1xf32>
    %cst_120 = arith.constant 6.400000e+01 : f32
    %233 = vector.broadcast %cst_120 : f32 to vector<2x8x1xf32>
    %234 = arith.divf %232, %233 : vector<2x8x1xf32>
    %235 = vector.broadcast %234 : vector<2x8x1xf32> to vector<2x8x64xf32>
    %236 = arith.subf %226, %235 : vector<2x8x64xf32>
    %237 = arith.mulf %236, %236 : vector<2x8x64xf32>
    %cst_121 = arith.constant dense<0.000000e+00> : vector<2x8xf32>
    %238 = vector.multi_reduction <add>, %237, %cst_121 [2] : vector<2x8x64xf32> to vector<2x8xf32>
    %239 = vector.shape_cast %238 : vector<2x8xf32> to vector<2x8x1xf32>
    %cst_122 = arith.constant 6.400000e+01 : f32
    %240 = vector.broadcast %cst_122 : f32 to vector<2x8x1xf32>
    %241 = arith.divf %239, %240 : vector<2x8x1xf32>
    %242 = vector.broadcast %234 : vector<2x8x1xf32> to vector<2x8x64xf32>
    %243 = arith.subf %226, %242 : vector<2x8x64xf32>
    %cst_123 = arith.constant 9.99999974E-6 : f32
    %244 = vector.broadcast %cst_123 : f32 to vector<2x8x1xf32>
    %245 = arith.addf %241, %244 : vector<2x8x1xf32>
    %246 = math.rsqrt %245 : vector<2x8x1xf32>
    %247 = vector.broadcast %246 : vector<2x8x1xf32> to vector<2x8x64xf32>
    %248 = arith.mulf %243, %247 : vector<2x8x64xf32>
    %249 = vector.shape_cast %228 : vector<1x64xf32> to vector<1x1x64xf32>
    %250 = vector.broadcast %249 : vector<1x1x64xf32> to vector<2x8x64xf32>
    %251 = arith.mulf %248, %250 : vector<2x8x64xf32>
    %252 = vector.shape_cast %230 : vector<1x64xf32> to vector<1x1x64xf32>
    %253 = vector.broadcast %252 : vector<1x1x64xf32> to vector<2x8x64xf32>
    %254 = arith.addf %251, %253 : vector<2x8x64xf32>
    %255 = vector.extract_strided_slice %254 {offsets = [0, 7, 0], sizes = [2, 1, 64], strides = [1, 1, 1]} : vector<2x8x64xf32> to vector<2x1x64xf32>
    %256 = vector.shape_cast %255 : vector<2x1x64xf32> to vector<2x64xf32>
    %257 = arith.truncf %256 : vector<2x64xf32> to vector<2x64xbf16>
    %258 = vector.shape_cast %254 : vector<2x8x64xf32> to vector<16x64xf32>
    %259 = arith.truncf %258 : vector<16x64xf32> to vector<16x64xbf16>
    %c1 = arith.constant 1 : index
    %c0_124 = arith.constant 0 : index
    %c0_125 = arith.constant 0 : index
    %260 = vector.load %arg5[%c1, %c0_124, %c0_125] : memref<2x64x64xbf16, #tpu.memory_space<vmem>>, vector<1x64x64xbf16>
    %261 = vector.shape_cast %260 : vector<1x64x64xbf16> to vector<64x64xbf16>
    %cst_126 = arith.constant dense<0.000000e+00> : vector<2x64xf32>
    %262 = tpu.matmul %257, %261, %cst_126 {dimension_numbers = #tpu.dot_dimension_numbers<[1], [0], [0], [1], [0, 0, 1, 1], [], []>} : vector<2x64xbf16>, vector<64x64xbf16>, vector<2x64xf32> -> vector<2x64xf32>
    %c1_127 = arith.constant 1 : index
    %c0_128 = arith.constant 0 : index
    %c0_129 = arith.constant 0 : index
    %263 = vector.load %arg6[%c1_127, %c0_128, %c0_129] : memref<2x1x64xf32, #tpu.memory_space<vmem>>, vector<1x1x64xf32>
    %264 = vector.shape_cast %263 : vector<1x1x64xf32> to vector<1x64xf32>
    %265 = vector.broadcast %264 : vector<1x64xf32> to vector<2x64xf32>
    %266 = arith.addf %262, %265 : vector<2x64xf32>
    %c1_130 = arith.constant 1 : index
    %c0_131 = arith.constant 0 : index
    %c0_132 = arith.constant 0 : index
    %267 = vector.load %arg7[%c1_130, %c0_131, %c0_132] : memref<2x64x64xbf16, #tpu.memory_space<vmem>>, vector<1x64x64xbf16>
    %268 = vector.shape_cast %267 : vector<1x64x64xbf16> to vector<64x64xbf16>
    %cst_133 = arith.constant dense<0.000000e+00> : vector<16x64xf32>
    %269 = tpu.matmul %259, %268, %cst_133 {dimension_numbers = #tpu.dot_dimension_numbers<[1], [0], [0], [1], [0, 0, 1, 1], [], []>} : vector<16x64xbf16>, vector<64x64xbf16>, vector<16x64xf32> -> vector<16x64xf32>
    %c1_134 = arith.constant 1 : index
    %c0_135 = arith.constant 0 : index
    %c0_136 = arith.constant 0 : index
    %270 = vector.load %arg8[%c1_134, %c0_135, %c0_136] : memref<2x1x64xf32, #tpu.memory_space<vmem>>, vector<1x1x64xf32>
    %271 = vector.shape_cast %270 : vector<1x1x64xf32> to vector<1x64xf32>
    %272 = vector.broadcast %271 : vector<1x64xf32> to vector<16x64xf32>
    %273 = arith.addf %269, %272 : vector<16x64xf32>
    %c1_137 = arith.constant 1 : index
    %c0_138 = arith.constant 0 : index
    %c0_139 = arith.constant 0 : index
    %274 = vector.load %arg9[%c1_137, %c0_138, %c0_139] : memref<2x64x64xbf16, #tpu.memory_space<vmem>>, vector<1x64x64xbf16>
    %275 = vector.shape_cast %274 : vector<1x64x64xbf16> to vector<64x64xbf16>
    %cst_140 = arith.constant dense<0.000000e+00> : vector<16x64xf32>
    %276 = tpu.matmul %259, %275, %cst_140 {dimension_numbers = #tpu.dot_dimension_numbers<[1], [0], [0], [1], [0, 0, 1, 1], [], []>} : vector<16x64xbf16>, vector<64x64xbf16>, vector<16x64xf32> -> vector<16x64xf32>
    %c1_141 = arith.constant 1 : index
    %c0_142 = arith.constant 0 : index
    %c0_143 = arith.constant 0 : index
    %277 = vector.load %arg10[%c1_141, %c0_142, %c0_143] : memref<2x1x64xf32, #tpu.memory_space<vmem>>, vector<1x1x64xf32>
    %278 = vector.shape_cast %277 : vector<1x1x64xf32> to vector<1x64xf32>
    %279 = vector.broadcast %278 : vector<1x64xf32> to vector<16x64xf32>
    %280 = arith.addf %276, %279 : vector<16x64xf32>
    %281 = vector.shape_cast %266 : vector<2x64xf32> to vector<2x1x64xf32>
    %282 = arith.truncf %281 : vector<2x1x64xf32> to vector<2x1x64xbf16>
    %283 = vector.shape_cast %273 : vector<16x64xf32> to vector<2x8x64xf32>
    %284 = arith.truncf %283 : vector<2x8x64xf32> to vector<2x8x64xbf16>
    %285 = vector.shape_cast %280 : vector<16x64xf32> to vector<2x8x64xf32>
    %286 = arith.truncf %285 : vector<2x8x64xf32> to vector<2x8x64xbf16>
    %287 = vector.extract_strided_slice %282 {offsets = [0, 0, 0], sizes = [2, 1, 16], strides = [1, 1, 1]} : vector<2x1x64xbf16> to vector<2x1x16xbf16>
    %288 = vector.extract_strided_slice %284 {offsets = [0, 0, 0], sizes = [2, 8, 16], strides = [1, 1, 1]} : vector<2x8x64xbf16> to vector<2x8x16xbf16>
    "tpu.trace_start"() <{level = 10 : i32, message = "bqd,bkd->bqk"}> : () -> ()
    %cst_144 = arith.constant dense<0.000000e+00> : vector<2x1x8xf32>
    %289 = tpu.matmul %287, %288, %cst_144 {dimension_numbers = #tpu.dot_dimension_numbers<[2], [2], [1], [1], [0, 0, 0, 1, 1, 1], [0], [0]>} : vector<2x1x16xbf16>, vector<2x8x16xbf16>, vector<2x1x8xf32> -> vector<2x1x8xf32>
    "tpu.trace_stop"() : () -> ()
    %cst_145 = arith.constant dense<0xFF800000> : vector<2x1xf32>
    %290 = vector.multi_reduction <maximumf>, %289, %cst_145 [2] : vector<2x1x8xf32> to vector<2x1xf32>
    %291 = vector.shape_cast %290 : vector<2x1xf32> to vector<2x1x1xf32>
    %292 = vector.broadcast %291 : vector<2x1x1xf32> to vector<2x1x8xf32>
    %293 = arith.subf %289, %292 : vector<2x1x8xf32>
    %294 = math.exp %293 : vector<2x1x8xf32>
    %cst_146 = arith.constant dense<0.000000e+00> : vector<2x1xf32>
    %295 = vector.multi_reduction <add>, %294, %cst_146 [2] : vector<2x1x8xf32> to vector<2x1xf32>
    %296 = vector.shape_cast %295 : vector<2x1xf32> to vector<2x1x1xf32>
    %297 = tpu.reciprocal %296 {approx = true} : vector<2x1x1xf32> -> vector<2x1x1xf32>
    %298 = vector.broadcast %297 : vector<2x1x1xf32> to vector<2x1x8xf32>
    %299 = arith.mulf %294, %298 : vector<2x1x8xf32>
    %300 = arith.truncf %299 : vector<2x1x8xf32> to vector<2x1x8xbf16>
    %301 = vector.extract_strided_slice %286 {offsets = [0, 0, 0], sizes = [2, 8, 16], strides = [1, 1, 1]} : vector<2x8x64xbf16> to vector<2x8x16xbf16>
    "tpu.trace_start"() <{level = 10 : i32, message = "bqk,bkd->bqd"}> : () -> ()
    %cst_147 = arith.constant dense<0.000000e+00> : vector<2x1x16xf32>
    %302 = tpu.matmul %300, %301, %cst_147 {dimension_numbers = #tpu.dot_dimension_numbers<[2], [1], [1], [2], [0, 0, 0, 1, 1, 2], [0], [0]>} : vector<2x1x8xbf16>, vector<2x8x16xbf16>, vector<2x1x16xf32> -> vector<2x1x16xf32>
    "tpu.trace_stop"() : () -> ()
    %303 = vector.extract_strided_slice %282 {offsets = [0, 0, 16], sizes = [2, 1, 16], strides = [1, 1, 1]} : vector<2x1x64xbf16> to vector<2x1x16xbf16>
    %304 = vector.extract_strided_slice %284 {offsets = [0, 0, 16], sizes = [2, 8, 16], strides = [1, 1, 1]} : vector<2x8x64xbf16> to vector<2x8x16xbf16>
    "tpu.trace_start"() <{level = 10 : i32, message = "bqd,bkd->bqk"}> : () -> ()
    %cst_148 = arith.constant dense<0.000000e+00> : vector<2x1x8xf32>
    %305 = tpu.matmul %303, %304, %cst_148 {dimension_numbers = #tpu.dot_dimension_numbers<[2], [2], [1], [1], [0, 0, 0, 1, 1, 1], [0], [0]>} : vector<2x1x16xbf16>, vector<2x8x16xbf16>, vector<2x1x8xf32> -> vector<2x1x8xf32>
    "tpu.trace_stop"() : () -> ()
    %cst_149 = arith.constant dense<0xFF800000> : vector<2x1xf32>
    %306 = vector.multi_reduction <maximumf>, %305, %cst_149 [2] : vector<2x1x8xf32> to vector<2x1xf32>
    %307 = vector.shape_cast %306 : vector<2x1xf32> to vector<2x1x1xf32>
    %308 = vector.broadcast %307 : vector<2x1x1xf32> to vector<2x1x8xf32>
    %309 = arith.subf %305, %308 : vector<2x1x8xf32>
    %310 = math.exp %309 : vector<2x1x8xf32>
    %cst_150 = arith.constant dense<0.000000e+00> : vector<2x1xf32>
    %311 = vector.multi_reduction <add>, %310, %cst_150 [2] : vector<2x1x8xf32> to vector<2x1xf32>
    %312 = vector.shape_cast %311 : vector<2x1xf32> to vector<2x1x1xf32>
    %313 = tpu.reciprocal %312 {approx = true} : vector<2x1x1xf32> -> vector<2x1x1xf32>
    %314 = vector.broadcast %313 : vector<2x1x1xf32> to vector<2x1x8xf32>
    %315 = arith.mulf %310, %314 : vector<2x1x8xf32>
    %316 = arith.truncf %315 : vector<2x1x8xf32> to vector<2x1x8xbf16>
    %317 = vector.extract_strided_slice %286 {offsets = [0, 0, 16], sizes = [2, 8, 16], strides = [1, 1, 1]} : vector<2x8x64xbf16> to vector<2x8x16xbf16>
    "tpu.trace_start"() <{level = 10 : i32, message = "bqk,bkd->bqd"}> : () -> ()
    %cst_151 = arith.constant dense<0.000000e+00> : vector<2x1x16xf32>
    %318 = tpu.matmul %316, %317, %cst_151 {dimension_numbers = #tpu.dot_dimension_numbers<[2], [1], [1], [2], [0, 0, 0, 1, 1, 2], [0], [0]>} : vector<2x1x8xbf16>, vector<2x8x16xbf16>, vector<2x1x16xf32> -> vector<2x1x16xf32>
    "tpu.trace_stop"() : () -> ()
    %319 = vector.extract_strided_slice %282 {offsets = [0, 0, 32], sizes = [2, 1, 16], strides = [1, 1, 1]} : vector<2x1x64xbf16> to vector<2x1x16xbf16>
    %320 = vector.extract_strided_slice %284 {offsets = [0, 0, 32], sizes = [2, 8, 16], strides = [1, 1, 1]} : vector<2x8x64xbf16> to vector<2x8x16xbf16>
    "tpu.trace_start"() <{level = 10 : i32, message = "bqd,bkd->bqk"}> : () -> ()
    %cst_152 = arith.constant dense<0.000000e+00> : vector<2x1x8xf32>
    %321 = tpu.matmul %319, %320, %cst_152 {dimension_numbers = #tpu.dot_dimension_numbers<[2], [2], [1], [1], [0, 0, 0, 1, 1, 1], [0], [0]>} : vector<2x1x16xbf16>, vector<2x8x16xbf16>, vector<2x1x8xf32> -> vector<2x1x8xf32>
    "tpu.trace_stop"() : () -> ()
    %cst_153 = arith.constant dense<0xFF800000> : vector<2x1xf32>
    %322 = vector.multi_reduction <maximumf>, %321, %cst_153 [2] : vector<2x1x8xf32> to vector<2x1xf32>
    %323 = vector.shape_cast %322 : vector<2x1xf32> to vector<2x1x1xf32>
    %324 = vector.broadcast %323 : vector<2x1x1xf32> to vector<2x1x8xf32>
    %325 = arith.subf %321, %324 : vector<2x1x8xf32>
    %326 = math.exp %325 : vector<2x1x8xf32>
    %cst_154 = arith.constant dense<0.000000e+00> : vector<2x1xf32>
    %327 = vector.multi_reduction <add>, %326, %cst_154 [2] : vector<2x1x8xf32> to vector<2x1xf32>
    %328 = vector.shape_cast %327 : vector<2x1xf32> to vector<2x1x1xf32>
    %329 = tpu.reciprocal %328 {approx = true} : vector<2x1x1xf32> -> vector<2x1x1xf32>
    %330 = vector.broadcast %329 : vector<2x1x1xf32> to vector<2x1x8xf32>
    %331 = arith.mulf %326, %330 : vector<2x1x8xf32>
    %332 = arith.truncf %331 : vector<2x1x8xf32> to vector<2x1x8xbf16>
    %333 = vector.extract_strided_slice %286 {offsets = [0, 0, 32], sizes = [2, 8, 16], strides = [1, 1, 1]} : vector<2x8x64xbf16> to vector<2x8x16xbf16>
    "tpu.trace_start"() <{level = 10 : i32, message = "bqk,bkd->bqd"}> : () -> ()
    %cst_155 = arith.constant dense<0.000000e+00> : vector<2x1x16xf32>
    %334 = tpu.matmul %332, %333, %cst_155 {dimension_numbers = #tpu.dot_dimension_numbers<[2], [1], [1], [2], [0, 0, 0, 1, 1, 2], [0], [0]>} : vector<2x1x8xbf16>, vector<2x8x16xbf16>, vector<2x1x16xf32> -> vector<2x1x16xf32>
    "tpu.trace_stop"() : () -> ()
    %335 = vector.extract_strided_slice %282 {offsets = [0, 0, 48], sizes = [2, 1, 16], strides = [1, 1, 1]} : vector<2x1x64xbf16> to vector<2x1x16xbf16>
    %336 = vector.extract_strided_slice %284 {offsets = [0, 0, 48], sizes = [2, 8, 16], strides = [1, 1, 1]} : vector<2x8x64xbf16> to vector<2x8x16xbf16>
    "tpu.trace_start"() <{level = 10 : i32, message = "bqd,bkd->bqk"}> : () -> ()
    %cst_156 = arith.constant dense<0.000000e+00> : vector<2x1x8xf32>
    %337 = tpu.matmul %335, %336, %cst_156 {dimension_numbers = #tpu.dot_dimension_numbers<[2], [2], [1], [1], [0, 0, 0, 1, 1, 1], [0], [0]>} : vector<2x1x16xbf16>, vector<2x8x16xbf16>, vector<2x1x8xf32> -> vector<2x1x8xf32>
    "tpu.trace_stop"() : () -> ()
    %cst_157 = arith.constant dense<0xFF800000> : vector<2x1xf32>
    %338 = vector.multi_reduction <maximumf>, %337, %cst_157 [2] : vector<2x1x8xf32> to vector<2x1xf32>
    %339 = vector.shape_cast %338 : vector<2x1xf32> to vector<2x1x1xf32>
    %340 = vector.broadcast %339 : vector<2x1x1xf32> to vector<2x1x8xf32>
    %341 = arith.subf %337, %340 : vector<2x1x8xf32>
    %342 = math.exp %341 : vector<2x1x8xf32>
    %cst_158 = arith.constant dense<0.000000e+00> : vector<2x1xf32>
    %343 = vector.multi_reduction <add>, %342, %cst_158 [2] : vector<2x1x8xf32> to vector<2x1xf32>
    %344 = vector.shape_cast %343 : vector<2x1xf32> to vector<2x1x1xf32>
    %345 = tpu.reciprocal %344 {approx = true} : vector<2x1x1xf32> -> vector<2x1x1xf32>
    %346 = vector.broadcast %345 : vector<2x1x1xf32> to vector<2x1x8xf32>
    %347 = arith.mulf %342, %346 : vector<2x1x8xf32>
    %348 = arith.truncf %347 : vector<2x1x8xf32> to vector<2x1x8xbf16>
    %349 = vector.extract_strided_slice %286 {offsets = [0, 0, 48], sizes = [2, 8, 16], strides = [1, 1, 1]} : vector<2x8x64xbf16> to vector<2x8x16xbf16>
    "tpu.trace_start"() <{level = 10 : i32, message = "bqk,bkd->bqd"}> : () -> ()
    %cst_159 = arith.constant dense<0.000000e+00> : vector<2x1x16xf32>
    %350 = tpu.matmul %348, %349, %cst_159 {dimension_numbers = #tpu.dot_dimension_numbers<[2], [1], [1], [2], [0, 0, 0, 1, 1, 2], [0], [0]>} : vector<2x1x8xbf16>, vector<2x8x16xbf16>, vector<2x1x16xf32> -> vector<2x1x16xf32>
    "tpu.trace_stop"() : () -> ()
    %351 = tpu.concatenate %302, %318, %334, %350 in 2 : vector<2x1x16xf32>, vector<2x1x16xf32>, vector<2x1x16xf32>, vector<2x1x16xf32> -> vector<2x1x64xf32>
    %352 = vector.shape_cast %351 : vector<2x1x64xf32> to vector<2x64xf32>
    %353 = arith.truncf %352 : vector<2x64xf32> to vector<2x64xbf16>
    %c1_160 = arith.constant 1 : index
    %c0_161 = arith.constant 0 : index
    %c0_162 = arith.constant 0 : index
    %354 = vector.load %arg11[%c1_160, %c0_161, %c0_162] : memref<2x64x64xbf16, #tpu.memory_space<vmem>>, vector<1x64x64xbf16>
    %355 = vector.shape_cast %354 : vector<1x64x64xbf16> to vector<64x64xbf16>
    %cst_163 = arith.constant dense<0.000000e+00> : vector<2x64xf32>
    %356 = tpu.matmul %353, %355, %cst_163 {dimension_numbers = #tpu.dot_dimension_numbers<[1], [0], [0], [1], [0, 0, 1, 1], [], []>} : vector<2x64xbf16>, vector<64x64xbf16>, vector<2x64xf32> -> vector<2x64xf32>
    %c1_164 = arith.constant 1 : index
    %c0_165 = arith.constant 0 : index
    %c0_166 = arith.constant 0 : index
    %357 = vector.load %arg12[%c1_164, %c0_165, %c0_166] : memref<2x1x64xf32, #tpu.memory_space<vmem>>, vector<1x1x64xf32>
    %358 = vector.shape_cast %357 : vector<1x1x64xf32> to vector<1x64xf32>
    %359 = vector.broadcast %358 : vector<1x64xf32> to vector<2x64xf32>
    %360 = arith.addf %356, %359 : vector<2x64xf32>
    %361 = vector.shape_cast %360 : vector<2x64xf32> to vector<2x1x64xf32>
    %362 = arith.addf %255, %361 : vector<2x1x64xf32>
    %c1_167 = arith.constant 1 : index
    %c0_168 = arith.constant 0 : index
    %c0_169 = arith.constant 0 : index
    %363 = vector.load %arg17[%c1_167, %c0_168, %c0_169] : memref<2x1x64xf32, #tpu.memory_space<vmem>>, vector<1x1x64xf32>
    %364 = vector.shape_cast %363 : vector<1x1x64xf32> to vector<1x64xf32>
    %c1_170 = arith.constant 1 : index
    %c0_171 = arith.constant 0 : index
    %c0_172 = arith.constant 0 : index
    %365 = vector.load %arg18[%c1_170, %c0_171, %c0_172] : memref<2x1x64xf32, #tpu.memory_space<vmem>>, vector<1x1x64xf32>
    %366 = vector.shape_cast %365 : vector<1x1x64xf32> to vector<1x64xf32>
    %cst_173 = arith.constant dense<0.000000e+00> : vector<2x1xf32>
    %367 = vector.multi_reduction <add>, %362, %cst_173 [2] : vector<2x1x64xf32> to vector<2x1xf32>
    %368 = vector.shape_cast %367 : vector<2x1xf32> to vector<2x1x1xf32>
    %cst_174 = arith.constant 6.400000e+01 : f32
    %369 = vector.broadcast %cst_174 : f32 to vector<2x1x1xf32>
    %370 = arith.divf %368, %369 : vector<2x1x1xf32>
    %371 = vector.broadcast %370 : vector<2x1x1xf32> to vector<2x1x64xf32>
    %372 = arith.subf %362, %371 : vector<2x1x64xf32>
    %373 = arith.mulf %372, %372 : vector<2x1x64xf32>
    %cst_175 = arith.constant dense<0.000000e+00> : vector<2x1xf32>
    %374 = vector.multi_reduction <add>, %373, %cst_175 [2] : vector<2x1x64xf32> to vector<2x1xf32>
    %375 = vector.shape_cast %374 : vector<2x1xf32> to vector<2x1x1xf32>
    %cst_176 = arith.constant 6.400000e+01 : f32
    %376 = vector.broadcast %cst_176 : f32 to vector<2x1x1xf32>
    %377 = arith.divf %375, %376 : vector<2x1x1xf32>
    %378 = vector.broadcast %370 : vector<2x1x1xf32> to vector<2x1x64xf32>
    %379 = arith.subf %362, %378 : vector<2x1x64xf32>
    %cst_177 = arith.constant 9.99999974E-6 : f32
    %380 = vector.broadcast %cst_177 : f32 to vector<2x1x1xf32>
    %381 = arith.addf %377, %380 : vector<2x1x1xf32>
    %382 = math.rsqrt %381 : vector<2x1x1xf32>
    %383 = vector.broadcast %382 : vector<2x1x1xf32> to vector<2x1x64xf32>
    %384 = arith.mulf %379, %383 : vector<2x1x64xf32>
    %385 = vector.shape_cast %364 : vector<1x64xf32> to vector<1x1x64xf32>
    %386 = vector.broadcast %385 : vector<1x1x64xf32> to vector<2x1x64xf32>
    %387 = arith.mulf %384, %386 : vector<2x1x64xf32>
    %388 = vector.shape_cast %366 : vector<1x64xf32> to vector<1x1x64xf32>
    %389 = vector.broadcast %388 : vector<1x1x64xf32> to vector<2x1x64xf32>
    %390 = arith.addf %387, %389 : vector<2x1x64xf32>
    %391 = vector.shape_cast %390 : vector<2x1x64xf32> to vector<2x64xf32>
    %392 = arith.truncf %391 : vector<2x64xf32> to vector<2x64xbf16>
    %cst_178 = arith.constant 0.000000e+00 : f32
    %393 = vector.broadcast %cst_178 : f32 to vector<2x64xf32>
    %c0_i32_179 = arith.constant 0 : i32
    %c1_180 = arith.constant 1 : index
    %394 = arith.index_cast %c0_i32_179 : i32 to index
    %c0_181 = arith.constant 0 : index
    %c0_182 = arith.constant 0 : index
    %395 = vector.load %arg13[%c1_180, %394, %c0_181, %c0_182] : memref<2x4x64x512xbf16, #tpu.memory_space<vmem>>, vector<1x1x64x512xbf16>
    %396 = vector.shape_cast %395 : vector<1x1x64x512xbf16> to vector<64x512xbf16>
    %cst_183 = arith.constant dense<0.000000e+00> : vector<2x512xf32>
    %397 = tpu.matmul %392, %396, %cst_183 {dimension_numbers = #tpu.dot_dimension_numbers<[1], [0], [0], [1], [0, 0, 1, 1], [], []>} : vector<2x64xbf16>, vector<64x512xbf16>, vector<2x512xf32> -> vector<2x512xf32>
    %c1_184 = arith.constant 1 : index
    %398 = arith.index_cast %c0_i32_179 : i32 to index
    %c0_185 = arith.constant 0 : index
    %c0_186 = arith.constant 0 : index
    %399 = vector.load %arg14[%c1_184, %398, %c0_185, %c0_186] : memref<2x4x1x512xf32, #tpu.memory_space<vmem>>, vector<1x1x1x512xf32>
    %400 = vector.shape_cast %399 : vector<1x1x1x512xf32> to vector<1x512xf32>
    %401 = vector.broadcast %400 : vector<1x512xf32> to vector<2x512xf32>
    %402 = arith.addf %397, %401 : vector<2x512xf32>
    %cst_187 = arith.constant 0.000000e+00 : f32
    %403 = vector.broadcast %cst_187 : f32 to vector<2x512xf32>
    %404 = arith.maximumf %402, %403 : vector<2x512xf32>
    %405 = arith.truncf %404 : vector<2x512xf32> to vector<2x512xbf16>
    %c1_188 = arith.constant 1 : index
    %406 = arith.index_cast %c0_i32_179 : i32 to index
    %c0_189 = arith.constant 0 : index
    %c0_190 = arith.constant 0 : index
    %407 = vector.load %arg15[%c1_188, %406, %c0_189, %c0_190] : memref<2x4x512x64xbf16, #tpu.memory_space<vmem>>, vector<1x1x512x64xbf16>
    %408 = vector.shape_cast %407 : vector<1x1x512x64xbf16> to vector<512x64xbf16>
    %cst_191 = arith.constant dense<0.000000e+00> : vector<2x64xf32>
    %409 = tpu.matmul %405, %408, %cst_191 {dimension_numbers = #tpu.dot_dimension_numbers<[1], [0], [0], [1], [0, 0, 1, 1], [], []>} : vector<2x512xbf16>, vector<512x64xbf16>, vector<2x64xf32> -> vector<2x64xf32>
    %410 = arith.addf %393, %409 : vector<2x64xf32>
    %c1_i32_192 = arith.constant 1 : i32
    %c1_193 = arith.constant 1 : index
    %411 = arith.index_cast %c1_i32_192 : i32 to index
    %c0_194 = arith.constant 0 : index
    %c0_195 = arith.constant 0 : index
    %412 = vector.load %arg13[%c1_193, %411, %c0_194, %c0_195] : memref<2x4x64x512xbf16, #tpu.memory_space<vmem>>, vector<1x1x64x512xbf16>
    %413 = vector.shape_cast %412 : vector<1x1x64x512xbf16> to vector<64x512xbf16>
    %cst_196 = arith.constant dense<0.000000e+00> : vector<2x512xf32>
    %414 = tpu.matmul %392, %413, %cst_196 {dimension_numbers = #tpu.dot_dimension_numbers<[1], [0], [0], [1], [0, 0, 1, 1], [], []>} : vector<2x64xbf16>, vector<64x512xbf16>, vector<2x512xf32> -> vector<2x512xf32>
    %c1_197 = arith.constant 1 : index
    %415 = arith.index_cast %c1_i32_192 : i32 to index
    %c0_198 = arith.constant 0 : index
    %c0_199 = arith.constant 0 : index
    %416 = vector.load %arg14[%c1_197, %415, %c0_198, %c0_199] : memref<2x4x1x512xf32, #tpu.memory_space<vmem>>, vector<1x1x1x512xf32>
    %417 = vector.shape_cast %416 : vector<1x1x1x512xf32> to vector<1x512xf32>
    %418 = vector.broadcast %417 : vector<1x512xf32> to vector<2x512xf32>
    %419 = arith.addf %414, %418 : vector<2x512xf32>
    %cst_200 = arith.constant 0.000000e+00 : f32
    %420 = vector.broadcast %cst_200 : f32 to vector<2x512xf32>
    %421 = arith.maximumf %419, %420 : vector<2x512xf32>
    %422 = arith.truncf %421 : vector<2x512xf32> to vector<2x512xbf16>
    %c1_201 = arith.constant 1 : index
    %423 = arith.index_cast %c1_i32_192 : i32 to index
    %c0_202 = arith.constant 0 : index
    %c0_203 = arith.constant 0 : index
    %424 = vector.load %arg15[%c1_201, %423, %c0_202, %c0_203] : memref<2x4x512x64xbf16, #tpu.memory_space<vmem>>, vector<1x1x512x64xbf16>
    %425 = vector.shape_cast %424 : vector<1x1x512x64xbf16> to vector<512x64xbf16>
    %cst_204 = arith.constant dense<0.000000e+00> : vector<2x64xf32>
    %426 = tpu.matmul %422, %425, %cst_204 {dimension_numbers = #tpu.dot_dimension_numbers<[1], [0], [0], [1], [0, 0, 1, 1], [], []>} : vector<2x512xbf16>, vector<512x64xbf16>, vector<2x64xf32> -> vector<2x64xf32>
    %427 = arith.addf %410, %426 : vector<2x64xf32>
    %c2_i32_205 = arith.constant 2 : i32
    %c1_206 = arith.constant 1 : index
    %428 = arith.index_cast %c2_i32_205 : i32 to index
    %c0_207 = arith.constant 0 : index
    %c0_208 = arith.constant 0 : index
    %429 = vector.load %arg13[%c1_206, %428, %c0_207, %c0_208] : memref<2x4x64x512xbf16, #tpu.memory_space<vmem>>, vector<1x1x64x512xbf16>
    %430 = vector.shape_cast %429 : vector<1x1x64x512xbf16> to vector<64x512xbf16>
    %cst_209 = arith.constant dense<0.000000e+00> : vector<2x512xf32>
    %431 = tpu.matmul %392, %430, %cst_209 {dimension_numbers = #tpu.dot_dimension_numbers<[1], [0], [0], [1], [0, 0, 1, 1], [], []>} : vector<2x64xbf16>, vector<64x512xbf16>, vector<2x512xf32> -> vector<2x512xf32>
    %c1_210 = arith.constant 1 : index
    %432 = arith.index_cast %c2_i32_205 : i32 to index
    %c0_211 = arith.constant 0 : index
    %c0_212 = arith.constant 0 : index
    %433 = vector.load %arg14[%c1_210, %432, %c0_211, %c0_212] : memref<2x4x1x512xf32, #tpu.memory_space<vmem>>, vector<1x1x1x512xf32>
    %434 = vector.shape_cast %433 : vector<1x1x1x512xf32> to vector<1x512xf32>
    %435 = vector.broadcast %434 : vector<1x512xf32> to vector<2x512xf32>
    %436 = arith.addf %431, %435 : vector<2x512xf32>
    %cst_213 = arith.constant 0.000000e+00 : f32
    %437 = vector.broadcast %cst_213 : f32 to vector<2x512xf32>
    %438 = arith.maximumf %436, %437 : vector<2x512xf32>
    %439 = arith.truncf %438 : vector<2x512xf32> to vector<2x512xbf16>
    %c1_214 = arith.constant 1 : index
    %440 = arith.index_cast %c2_i32_205 : i32 to index
    %c0_215 = arith.constant 0 : index
    %c0_216 = arith.constant 0 : index
    %441 = vector.load %arg15[%c1_214, %440, %c0_215, %c0_216] : memref<2x4x512x64xbf16, #tpu.memory_space<vmem>>, vector<1x1x512x64xbf16>
    %442 = vector.shape_cast %441 : vector<1x1x512x64xbf16> to vector<512x64xbf16>
    %cst_217 = arith.constant dense<0.000000e+00> : vector<2x64xf32>
    %443 = tpu.matmul %439, %442, %cst_217 {dimension_numbers = #tpu.dot_dimension_numbers<[1], [0], [0], [1], [0, 0, 1, 1], [], []>} : vector<2x512xbf16>, vector<512x64xbf16>, vector<2x64xf32> -> vector<2x64xf32>
    %444 = arith.addf %427, %443 : vector<2x64xf32>
    %c3_i32_218 = arith.constant 3 : i32
    %c1_219 = arith.constant 1 : index
    %445 = arith.index_cast %c3_i32_218 : i32 to index
    %c0_220 = arith.constant 0 : index
    %c0_221 = arith.constant 0 : index
    %446 = vector.load %arg13[%c1_219, %445, %c0_220, %c0_221] : memref<2x4x64x512xbf16, #tpu.memory_space<vmem>>, vector<1x1x64x512xbf16>
    %447 = vector.shape_cast %446 : vector<1x1x64x512xbf16> to vector<64x512xbf16>
    %cst_222 = arith.constant dense<0.000000e+00> : vector<2x512xf32>
    %448 = tpu.matmul %392, %447, %cst_222 {dimension_numbers = #tpu.dot_dimension_numbers<[1], [0], [0], [1], [0, 0, 1, 1], [], []>} : vector<2x64xbf16>, vector<64x512xbf16>, vector<2x512xf32> -> vector<2x512xf32>
    %c1_223 = arith.constant 1 : index
    %449 = arith.index_cast %c3_i32_218 : i32 to index
    %c0_224 = arith.constant 0 : index
    %c0_225 = arith.constant 0 : index
    %450 = vector.load %arg14[%c1_223, %449, %c0_224, %c0_225] : memref<2x4x1x512xf32, #tpu.memory_space<vmem>>, vector<1x1x1x512xf32>
    %451 = vector.shape_cast %450 : vector<1x1x1x512xf32> to vector<1x512xf32>
    %452 = vector.broadcast %451 : vector<1x512xf32> to vector<2x512xf32>
    %453 = arith.addf %448, %452 : vector<2x512xf32>
    %cst_226 = arith.constant 0.000000e+00 : f32
    %454 = vector.broadcast %cst_226 : f32 to vector<2x512xf32>
    %455 = arith.maximumf %453, %454 : vector<2x512xf32>
    %456 = arith.truncf %455 : vector<2x512xf32> to vector<2x512xbf16>
    %c1_227 = arith.constant 1 : index
    %457 = arith.index_cast %c3_i32_218 : i32 to index
    %c0_228 = arith.constant 0 : index
    %c0_229 = arith.constant 0 : index
    %458 = vector.load %arg15[%c1_227, %457, %c0_228, %c0_229] : memref<2x4x512x64xbf16, #tpu.memory_space<vmem>>, vector<1x1x512x64xbf16>
    %459 = vector.shape_cast %458 : vector<1x1x512x64xbf16> to vector<512x64xbf16>
    %cst_230 = arith.constant dense<0.000000e+00> : vector<2x64xf32>
    %460 = tpu.matmul %456, %459, %cst_230 {dimension_numbers = #tpu.dot_dimension_numbers<[1], [0], [0], [1], [0, 0, 1, 1], [], []>} : vector<2x512xbf16>, vector<512x64xbf16>, vector<2x64xf32> -> vector<2x64xf32>
    %461 = arith.addf %444, %460 : vector<2x64xf32>
    %c4_i32_231 = arith.constant 4 : i32
    %c1_232 = arith.constant 1 : index
    %c0_233 = arith.constant 0 : index
    %c0_234 = arith.constant 0 : index
    %462 = vector.load %arg16[%c1_232, %c0_233, %c0_234] : memref<2x1x64xf32, #tpu.memory_space<vmem>>, vector<1x1x64xf32>
    %463 = vector.shape_cast %462 : vector<1x1x64xf32> to vector<1x64xf32>
    %464 = vector.broadcast %463 : vector<1x64xf32> to vector<2x64xf32>
    %465 = arith.addf %461, %464 : vector<2x64xf32>
    %466 = vector.shape_cast %465 : vector<2x64xf32> to vector<2x1x64xf32>
    %467 = arith.addf %390, %466 : vector<2x1x64xf32>
    %c1_235 = arith.constant 1 : index
    %c0_236 = arith.constant 0 : index
    %c0_237 = arith.constant 0 : index
    %468 = vector.load %arg19[%c1_235, %c0_236, %c0_237] : memref<2x1x64xf32, #tpu.memory_space<vmem>>, vector<1x1x64xf32>
    %469 = vector.shape_cast %468 : vector<1x1x64xf32> to vector<1x64xf32>
    %c1_238 = arith.constant 1 : index
    %c0_239 = arith.constant 0 : index
    %c0_240 = arith.constant 0 : index
    %470 = vector.load %arg20[%c1_238, %c0_239, %c0_240] : memref<2x1x64xf32, #tpu.memory_space<vmem>>, vector<1x1x64xf32>
    %471 = vector.shape_cast %470 : vector<1x1x64xf32> to vector<1x64xf32>
    %cst_241 = arith.constant dense<0.000000e+00> : vector<2x1xf32>
    %472 = vector.multi_reduction <add>, %467, %cst_241 [2] : vector<2x1x64xf32> to vector<2x1xf32>
    %473 = vector.shape_cast %472 : vector<2x1xf32> to vector<2x1x1xf32>
    %cst_242 = arith.constant 6.400000e+01 : f32
    %474 = vector.broadcast %cst_242 : f32 to vector<2x1x1xf32>
    %475 = arith.divf %473, %474 : vector<2x1x1xf32>
    %476 = vector.broadcast %475 : vector<2x1x1xf32> to vector<2x1x64xf32>
    %477 = arith.subf %467, %476 : vector<2x1x64xf32>
    %478 = arith.mulf %477, %477 : vector<2x1x64xf32>
    %cst_243 = arith.constant dense<0.000000e+00> : vector<2x1xf32>
    %479 = vector.multi_reduction <add>, %478, %cst_243 [2] : vector<2x1x64xf32> to vector<2x1xf32>
    %480 = vector.shape_cast %479 : vector<2x1xf32> to vector<2x1x1xf32>
    %cst_244 = arith.constant 6.400000e+01 : f32
    %481 = vector.broadcast %cst_244 : f32 to vector<2x1x1xf32>
    %482 = arith.divf %480, %481 : vector<2x1x1xf32>
    %483 = vector.broadcast %475 : vector<2x1x1xf32> to vector<2x1x64xf32>
    %484 = arith.subf %467, %483 : vector<2x1x64xf32>
    %cst_245 = arith.constant 9.99999974E-6 : f32
    %485 = vector.broadcast %cst_245 : f32 to vector<2x1x1xf32>
    %486 = arith.addf %482, %485 : vector<2x1x1xf32>
    %487 = math.rsqrt %486 : vector<2x1x1xf32>
    %488 = vector.broadcast %487 : vector<2x1x1xf32> to vector<2x1x64xf32>
    %489 = arith.mulf %484, %488 : vector<2x1x64xf32>
    %490 = vector.shape_cast %469 : vector<1x64xf32> to vector<1x1x64xf32>
    %491 = vector.broadcast %490 : vector<1x1x64xf32> to vector<2x1x64xf32>
    %492 = arith.mulf %489, %491 : vector<2x1x64xf32>
    %493 = vector.shape_cast %471 : vector<1x64xf32> to vector<1x1x64xf32>
    %494 = vector.broadcast %493 : vector<1x1x64xf32> to vector<2x1x64xf32>
    %495 = arith.addf %492, %494 : vector<2x1x64xf32>
    %496 = vector.shape_cast %495 : vector<2x1x64xf32> to vector<2x64xf32>
    %c0_246 = arith.constant 0 : index
    %c0_247 = arith.constant 0 : index
    %497 = vector.load %arg21[%c0_246, %c0_247] : memref<1x64xf32, #tpu.memory_space<vmem>>, vector<1x64xf32>
    %498 = vector.broadcast %497 : vector<1x64xf32> to vector<2x64xf32>
    %499 = arith.mulf %496, %498 : vector<2x64xf32>
    %cst_248 = arith.constant dense<0.000000e+00> : vector<2xf32>
    %500 = vector.multi_reduction <add>, %499, %cst_248 [1] : vector<2x64xf32> to vector<2xf32>
    %501 = vector.shape_cast %500 : vector<2xf32> to vector<2x1xf32>
    %c0_249 = arith.constant 0 : index
    %c0_250 = arith.constant 0 : index
    %502 = vector.load %arg22[%c0_249, %c0_250] : memref<1x1xf32, #tpu.memory_space<vmem>>, vector<1x1xf32>
    %503 = vector.broadcast %502 : vector<1x1xf32> to vector<2x1xf32>
    %504 = arith.addf %501, %503 : vector<2x1xf32>
    %c0_251 = arith.constant 0 : index
    %c0_252 = arith.constant 0 : index
    %505 = vector.load %arg23[%c0_251, %c0_252] : memref<2x1xf32, #tpu.memory_space<vmem>>, vector<2x1xf32>
    tpu.vector_store %arg23[%c0_251, %c0_252], %504 {strides = array<i32>} : memref<2x1xf32, #tpu.memory_space<vmem>>, vector<2x1xf32>,
    return
  }
  func.func @transform_0(%arg0: i32) -> (i32, i32) {
    %c0_i32 = arith.constant 0 : i32
    %c0_i32_0 = arith.constant 0 : i32
    return %arg0, %c0_i32 : i32, i32
  }
  func.func @transform_1(%arg0: i32) -> (i32, i32) {
    %c0_i32 = arith.constant 0 : i32
    %c0_i32_0 = arith.constant 0 : i32
    %c0_i32_1 = arith.constant 0 : i32
    return %c0_i32, %c0_i32_0 : i32, i32
  }
  func.func @transform_2(%arg0: i32) -> (i32, i32) {
    %c0_i32 = arith.constant 0 : i32
    %c0_i32_0 = arith.constant 0 : i32
    %c0_i32_1 = arith.constant 0 : i32
    return %c0_i32, %c0_i32_0 : i32, i32
  }
  func.func @transform_3(%arg0: i32) -> (i32, i32) {
    %c0_i32 = arith.constant 0 : i32
    %c0_i32_0 = arith.constant 0 : i32
    %c0_i32_1 = arith.constant 0 : i32
    return %c0_i32, %c0_i32_0 : i32, i32
  }
  func.func @transform_4(%arg0: i32) -> (i32, i32, i32) {
    %c0_i32 = arith.constant 0 : i32
    %c0_i32_0 = arith.constant 0 : i32
    %c0_i32_1 = arith.constant 0 : i32
    %c0_i32_2 = arith.constant 0 : i32
    return %c0_i32, %c0_i32_0, %c0_i32_1 : i32, i32, i32
  }
  func.func @transform_5(%arg0: i32) -> (i32, i32, i32) {
    %c0_i32 = arith.constant 0 : i32
    %c0_i32_0 = arith.constant 0 : i32
    %c0_i32_1 = arith.constant 0 : i32
    %c0_i32_2 = arith.constant 0 : i32
    return %c0_i32, %c0_i32_0, %c0_i32_1 : i32, i32, i32
  }
  func.func @transform_6(%arg0: i32) -> (i32, i32, i32) {
    %c0_i32 = arith.constant 0 : i32
    %c0_i32_0 = arith.constant 0 : i32
    %c0_i32_1 = arith.constant 0 : i32
    %c0_i32_2 = arith.constant 0 : i32
    return %c0_i32, %c0_i32_0, %c0_i32_1 : i32, i32, i32
  }
  func.func @transform_7(%arg0: i32) -> (i32, i32, i32) {
    %c0_i32 = arith.constant 0 : i32
    %c0_i32_0 = arith.constant 0 : i32
    %c0_i32_1 = arith.constant 0 : i32
    %c0_i32_2 = arith.constant 0 : i32
    return %c0_i32, %c0_i32_0, %c0_i32_1 : i32, i32, i32
  }
  func.func @transform_8(%arg0: i32) -> (i32, i32, i32) {
    %c0_i32 = arith.constant 0 : i32
    %c0_i32_0 = arith.constant 0 : i32
    %c0_i32_1 = arith.constant 0 : i32
    %c0_i32_2 = arith.constant 0 : i32
    return %c0_i32, %c0_i32_0, %c0_i32_1 : i32, i32, i32
  }
  func.func @transform_9(%arg0: i32) -> (i32, i32, i32) {
    %c0_i32 = arith.constant 0 : i32
    %c0_i32_0 = arith.constant 0 : i32
    %c0_i32_1 = arith.constant 0 : i32
    %c0_i32_2 = arith.constant 0 : i32
    return %c0_i32, %c0_i32_0, %c0_i32_1 : i32, i32, i32
  }
  func.func @transform_10(%arg0: i32) -> (i32, i32, i32) {
    %c0_i32 = arith.constant 0 : i32
    %c0_i32_0 = arith.constant 0 : i32
    %c0_i32_1 = arith.constant 0 : i32
    %c0_i32_2 = arith.constant 0 : i32
    return %c0_i32, %c0_i32_0, %c0_i32_1 : i32, i32, i32
  }
  func.func @transform_11(%arg0: i32) -> (i32, i32, i32) {
    %c0_i32 = arith.constant 0 : i32
    %c0_i32_0 = arith.constant 0 : i32
    %c0_i32_1 = arith.constant 0 : i32
    %c0_i32_2 = arith.constant 0 : i32
    return %c0_i32, %c0_i32_0, %c0_i32_1 : i32, i32, i32
  }
  func.func @transform_12(%arg0: i32) -> (i32, i32, i32, i32) {
    %c0_i32 = arith.constant 0 : i32
    %c0_i32_0 = arith.constant 0 : i32
    %c0_i32_1 = arith.constant 0 : i32
    %c0_i32_2 = arith.constant 0 : i32
    %c0_i32_3 = arith.constant 0 : i32
    return %c0_i32, %c0_i32_0, %c0_i32_1, %c0_i32_2 : i32, i32, i32, i32
  }
  func.func @transform_13(%arg0: i32) -> (i32, i32, i32, i32) {
    %c0_i32 = arith.constant 0 : i32
    %c0_i32_0 = arith.constant 0 : i32
    %c0_i32_1 = arith.constant 0 : i32
    %c0_i32_2 = arith.constant 0 : i32
    %c0_i32_3 = arith.constant 0 : i32
    return %c0_i32, %c0_i32_0, %c0_i32_1, %c0_i32_2 : i32, i32, i32, i32
  }
  func.func @transform_14(%arg0: i32) -> (i32, i32, i32, i32) {
    %c0_i32 = arith.constant 0 : i32
    %c0_i32_0 = arith.constant 0 : i32
    %c0_i32_1 = arith.constant 0 : i32
    %c0_i32_2 = arith.constant 0 : i32
    %c0_i32_3 = arith.constant 0 : i32
    return %c0_i32, %c0_i32_0, %c0_i32_1, %c0_i32_2 : i32, i32, i32, i32
  }
  func.func @transform_15(%arg0: i32) -> (i32, i32, i32) {
    %c0_i32 = arith.constant 0 : i32
    %c0_i32_0 = arith.constant 0 : i32
    %c0_i32_1 = arith.constant 0 : i32
    %c0_i32_2 = arith.constant 0 : i32
    return %c0_i32, %c0_i32_0, %c0_i32_1 : i32, i32, i32
  }
  func.func @transform_16(%arg0: i32) -> (i32, i32, i32) {
    %c0_i32 = arith.constant 0 : i32
    %c0_i32_0 = arith.constant 0 : i32
    %c0_i32_1 = arith.constant 0 : i32
    %c0_i32_2 = arith.constant 0 : i32
    return %c0_i32, %c0_i32_0, %c0_i32_1 : i32, i32, i32
  }
  func.func @transform_17(%arg0: i32) -> (i32, i32, i32) {
    %c0_i32 = arith.constant 0 : i32
    %c0_i32_0 = arith.constant 0 : i32
    %c0_i32_1 = arith.constant 0 : i32
    %c0_i32_2 = arith.constant 0 : i32
    return %c0_i32, %c0_i32_0, %c0_i32_1 : i32, i32, i32
  }
  func.func @transform_18(%arg0: i32) -> (i32, i32, i32) {
    %c0_i32 = arith.constant 0 : i32
    %c0_i32_0 = arith.constant 0 : i32
    %c0_i32_1 = arith.constant 0 : i32
    %c0_i32_2 = arith.constant 0 : i32
    return %c0_i32, %c0_i32_0, %c0_i32_1 : i32, i32, i32
  }
  func.func @transform_19(%arg0: i32) -> (i32, i32, i32) {
    %c0_i32 = arith.constant 0 : i32
    %c0_i32_0 = arith.constant 0 : i32
    %c0_i32_1 = arith.constant 0 : i32
    %c0_i32_2 = arith.constant 0 : i32
    return %c0_i32, %c0_i32_0, %c0_i32_1 : i32, i32, i32
  }
  func.func @transform_20(%arg0: i32) -> (i32, i32) {
    %c0_i32 = arith.constant 0 : i32
    %c0_i32_0 = arith.constant 0 : i32
    %c0_i32_1 = arith.constant 0 : i32
    return %c0_i32, %c0_i32_0 : i32, i32
  }
  func.func @transform_21(%arg0: i32) -> (i32, i32) {
    %c0_i32 = arith.constant 0 : i32
    %c0_i32_0 = arith.constant 0 : i32
    %c0_i32_1 = arith.constant 0 : i32
    return %c0_i32, %c0_i32_0 : i32, i32
  }
  func.func @transform_22(%arg0: i32) -> (i32, i32) {
    %c0_i32 = arith.constant 0 : i32
    %c0_i32_0 = arith.constant 0 : i32
    return %arg0, %c0_i32 : i32, i32
  }
}

</mosaic_0001>

<llo_original>
// kernel: model_transformer_forward.1
$region0: #{model_transformer_forward.1}
  #allocation0 [shape = 'u32[]', space=smem, size = 0x4, offset = 0x4, fixed_abs, tag = 'smem constant byte address 0x4 - core index']
  #allocation1 [shape = 'u32[72,128]{1,0:T(1,128)}', space=vmem, size = 0x9000, scoped, tag = 'internal scratch']
  #allocation2 [shape = 'f32[1,1]{1,0:T(1,128)S(1)}', space=vmem, size = 0x200, scoped, tag = 'scoped memory for model_transformer_forward.1']
  %s0 = inlined_call_operand.vmem [shape: f32[2,8], index: 0, kind: input, shape index: {}]
  %s1 = inlined_call_operand.vmem [shape: f32[8,64], index: 1, kind: input, shape index: {}]
  %s2 = inlined_call_operand.vmem [shape: f32[1,64], index: 2, kind: input, shape index: {}]
  %s3 = inlined_call_operand.vmem [shape: f32[1,64], index: 3, kind: input, shape index: {}]
  %s4 = inlined_call_operand.vmem [shape: bf16[2,64,64], index: 4, kind: input, shape index: {}]
  %s5 = inlined_call_operand.vmem [shape: f32[2,1,64], index: 5, kind: input, shape index: {}]
  %s6 = inlined_call_operand.vmem [shape: bf16[2,64,64], index: 6, kind: input, shape index: {}]
  %s7 = inlined_call_operand.vmem [shape: f32[2,1,64], index: 7, kind: input, shape index: {}]
  %s8 = inlined_call_operand.vmem [shape: bf16[2,64,64], index: 8, kind: input, shape index: {}]
  %s9 = inlined_call_operand.vmem [shape: f32[2,1,64], index: 9, kind: input, shape index: {}]
  %s10 = inlined_call_operand.vmem [shape: bf16[2,64,64], index: 10, kind: input, shape index: {}]
  %s11 = inlined_call_operand.vmem [shape: f32[2,1,64], index: 11, kind: input, shape index: {}]
  %s12 = inlined_call_operand.vmem [shape: bf16[2,4,64,512], index: 12, kind: input, shape index: {}]
  %s13 = inlined_call_operand.vmem [shape: f32[2,4,1,512], index: 13, kind: input, shape index: {}]
  %s14 = inlined_call_operand.vmem [shape: bf16[2,4,512,64], index: 14, kind: input, shape index: {}]
  %s15 = inlined_call_operand.vmem [shape: f32[2,1,64], index: 15, kind: input, shape index: {}]
  %s16 = inlined_call_operand.vmem [shape: f32[2,1,64], index: 16, kind: input, shape index: {}]
  %s17 = inlined_call_operand.vmem [shape: f32[2,1,64], index: 17, kind: input, shape index: {}]
  %s18 = inlined_call_operand.vmem [shape: f32[2,1,64], index: 18, kind: input, shape index: {}]
  %s19 = inlined_call_operand.vmem [shape: f32[2,1,64], index: 19, kind: input, shape index: {}]
  %s20 = inlined_call_operand.vmem [shape: f32[1,64], index: 20, kind: input, shape index: {}]
  %s21 = inlined_call_operand.<no memory space> [shape: f32[1,1], index: 21, kind: input, shape index: {}]
  %s22 = inlined_call_operand.vmem [shape: f32[2,1], index: 22, kind: output, shape index: {}]
  %s23 = sld [smem:[#allocation0]]
  $region98: #{model_transformer_forward.1} parent=0
    _
  %s25 = ssub.s32 1, %s23
  %s26 = scalar_select 0, %s25, %s23
  %v27 = vstv %s21
  %28 = vst [vmem:[#allocation2] sm:$0x1] %v27
  // Predicated region
  $region2: #{model_transformer_forward.1} parent=0 // pred_check
    _
  $region3: #{model_transformer_forward.1} parent=0 // pred_check_branch
    %30 = sbr.rel (0) target = $region5
  $region4: #{model_transformer_forward.1} parent=0 // pred_region
    _
  $region5: #{model_transformer_forward.1} parent=0 // pred_fallthru
    _
  // Predicated region
  $region6: #{model_transformer_forward.1} parent=0 // pred_check
    _
  $region7: #{model_transformer_forward.1} parent=0 // pred_check_branch
    %32 = sbr.rel (0) target = $region9
  $region8: #{model_transformer_forward.1} parent=0 // pred_region
    _
  $region9: #{model_transformer_forward.1} parent=0 // pred_fallthru
    _
  // Predicated region
  $region10: #{model_transformer_forward.1} parent=0 // pred_check
    _
  $region11: #{model_transformer_forward.1} parent=0 // pred_check_branch
    %34 = sbr.rel (0) target = $region13
  $region12: #{model_transformer_forward.1} parent=0 // pred_region
    _
  $region13: #{model_transformer_forward.1} parent=0 // pred_fallthru
    _
  // Predicated region
  $region14: #{model_transformer_forward.1} parent=0 // pred_check
    _
  $region15: #{model_transformer_forward.1} parent=0 // pred_check_branch
    %36 = sbr.rel (0) target = $region17
  $region16: #{model_transformer_forward.1} parent=0 // pred_region
    _
  $region17: #{model_transformer_forward.1} parent=0 // pred_fallthru
    _
  // Predicated region
  $region18: #{model_transformer_forward.1} parent=0 // pred_check
    _
  $region19: #{model_transformer_forward.1} parent=0 // pred_check_branch
    %38 = sbr.rel (0) target = $region21
  $region20: #{model_transformer_forward.1} parent=0 // pred_region
    _
  $region21: #{model_transformer_forward.1} parent=0 // pred_fallthru
    _
  // Predicated region
  $region22: #{model_transformer_forward.1} parent=0 // pred_check
    _
  $region23: #{model_transformer_forward.1} parent=0 // pred_check_branch
    %40 = sbr.rel (0) target = $region25
  $region24: #{model_transformer_forward.1} parent=0 // pred_region
    _
  $region25: #{model_transformer_forward.1} parent=0 // pred_fallthru
    _
  // Predicated region
  $region26: #{model_transformer_forward.1} parent=0 // pred_check
    _
  $region27: #{model_transformer_forward.1} parent=0 // pred_check_branch
    %42 = sbr.rel (0) target = $region29
  $region28: #{model_transformer_forward.1} parent=0 // pred_region
    _
  $region29: #{model_transformer_forward.1} parent=0 // pred_fallthru
    _
  // Predicated region
  $region30: #{model_transformer_forward.1} parent=0 // pred_check
    _
  $region31: #{model_transformer_forward.1} parent=0 // pred_check_branch
    %44 = sbr.rel (0) target = $region33
  $region32: #{model_transformer_forward.1} parent=0 // pred_region
    _
  $region33: #{model_transformer_forward.1} parent=0 // pred_fallthru
    _
  // Predicated region
  $region34: #{model_transformer_forward.1} parent=0 // pred_check
    _
  $region35: #{model_transformer_forward.1} parent=0 // pred_check_branch
    %46 = sbr.rel (0) target = $region37
  $region36: #{model_transformer_forward.1} parent=0 // pred_region
    _
  $region37: #{model_transformer_forward.1} parent=0 // pred_fallthru
    _
  // Predicated region
  $region38: #{model_transformer_forward.1} parent=0 // pred_check
    _
  $region39: #{model_transformer_forward.1} parent=0 // pred_check_branch
    %48 = sbr.rel (0) target = $region41
  $region40: #{model_transformer_forward.1} parent=0 // pred_region
    _
  $region41: #{model_transformer_forward.1} parent=0 // pred_fallthru
    _
  // Predicated region
  $region42: #{model_transformer_forward.1} parent=0 // pred_check
    _
  $region43: #{model_transformer_forward.1} parent=0 // pred_check_branch
    %50 = sbr.rel (0) target = $region45
  $region44: #{model_transformer_forward.1} parent=0 // pred_region
    _
  $region45: #{model_transformer_forward.1} parent=0 // pred_fallthru
    _
  // Predicated region
  $region46: #{model_transformer_forward.1} parent=0 // pred_check
    _
  $region47: #{model_transformer_forward.1} parent=0 // pred_check_branch
    %52 = sbr.rel (0) target = $region49
  $region48: #{model_transformer_forward.1} parent=0 // pred_region
    _
  $region49: #{model_transformer_forward.1} parent=0 // pred_fallthru
    _
  // Predicated region
  $region50: #{model_transformer_forward.1} parent=0 // pred_check
    _
  $region51: #{model_transformer_forward.1} parent=0 // pred_check_branch
    %54 = sbr.rel (0) target = $region53
  $region52: #{model_transformer_forward.1} parent=0 // pred_region
    _
  $region53: #{model_transformer_forward.1} parent=0 // pred_fallthru
    _
  // Predicated region
  $region54: #{model_transformer_forward.1} parent=0 // pred_check
    _
  $region55: #{model_transformer_forward.1} parent=0 // pred_check_branch
    %56 = sbr.rel (0) target = $region57
  $region56: #{model_transformer_forward.1} parent=0 // pred_region
    _
  $region57: #{model_transformer_forward.1} parent=0 // pred_fallthru
    _
  // Predicated region
  $region58: #{model_transformer_forward.1} parent=0 // pred_check
    _
  $region59: #{model_transformer_forward.1} parent=0 // pred_check_branch
    %58 = sbr.rel (0) target = $region61
  $region60: #{model_transformer_forward.1} parent=0 // pred_region
    _
  $region61: #{model_transformer_forward.1} parent=0 // pred_fallthru
    _
  // Predicated region
  $region62: #{model_transformer_forward.1} parent=0 // pred_check
    _
  $region63: #{model_transformer_forward.1} parent=0 // pred_check_branch
    %60 = sbr.rel (0) target = $region65
  $region64: #{model_transformer_forward.1} parent=0 // pred_region
    _
  $region65: #{model_transformer_forward.1} parent=0 // pred_fallthru
    _
  // Predicated region
  $region66: #{model_transformer_forward.1} parent=0 // pred_check
    _
  $region67: #{model_transformer_forward.1} parent=0 // pred_check_branch
    %62 = sbr.rel (0) target = $region69
  $region68: #{model_transformer_forward.1} parent=0 // pred_region
    _
  $region69: #{model_transformer_forward.1} parent=0 // pred_fallthru
    _
  // Predicated region
  $region70: #{model_transformer_forward.1} parent=0 // pred_check
    _
  $region71: #{model_transformer_forward.1} parent=0 // pred_check_branch
    %64 = sbr.rel (0) target = $region73
  $region72: #{model_transformer_forward.1} parent=0 // pred_region
    _
  $region73: #{model_transformer_forward.1} parent=0 // pred_fallthru
    _
  // Predicated region
  $region74: #{model_transformer_forward.1} parent=0 // pred_check
    _
  $region75: #{model_transformer_forward.1} parent=0 // pred_check_branch
    %66 = sbr.rel (0) target = $region77
  $region76: #{model_transformer_forward.1} parent=0 // pred_region
    _
  $region77: #{model_transformer_forward.1} parent=0 // pred_fallthru
    _
  // Predicated region
  $region78: #{model_transformer_forward.1} parent=0 // pred_check
    _
  $region79: #{model_transformer_forward.1} parent=0 // pred_check_branch
    %68 = sbr.rel (0) target = $region81
  $region80: #{model_transformer_forward.1} parent=0 // pred_region
    _
  $region81: #{model_transformer_forward.1} parent=0 // pred_fallthru
    _
  // Predicated region
  $region82: #{model_transformer_forward.1} parent=0 // pred_check
    _
  $region83: #{model_transformer_forward.1} parent=0 // pred_check_branch
    %70 = sbr.rel (0) target = $region85
  $region84: #{model_transformer_forward.1} parent=0 // pred_region
    _
  $region85: #{model_transformer_forward.1} parent=0 // pred_fallthru
    _
  // Predicated region
  $region86: #{model_transformer_forward.1} parent=0 // pred_check
    _
  $region87: #{model_transformer_forward.1} parent=0 // pred_check_branch
    %72 = sbr.rel (0) target = $region89
  $region88: #{model_transformer_forward.1} parent=0 // pred_region
    _
  $region89: #{model_transformer_forward.1} parent=0 // pred_fallthru
    _
  %v74 = vld [vmem:[%s0] sm:$0x3]
  %v75 = vperm.slane %v74, 0
  %v76 = vlaneseq
  %v77 = vshrl.u32 %v76, 7
  %79 = vset.pattern.permute.xlu0 %v77
  %80 = vperm.xlu0 %79, %v75
  %v81 = vpop.permute.xlu0 %80
  %v82 = vperm.slane %v74, 1
  %v83 = vlaneseq
  %v84 = vshrl.u32 %v83, 7
  %86 = vset.pattern.permute.xlu0 %v84
  %87 = vperm.xlu0 %86, %v82
  %v88 = vpop.permute.xlu0 %87
  %v89 = vld [vmem:[%s2] sm:$0x1]
  %v91 = vperm.slane %v89, 0
  %v93 = vmul.f32 %v81, %v91
  %v94 = vmul.f32 %v88, %v91
  %v95 = vld [vmem:[%s3] sm:$0x1]
  %v97 = vperm.slane %v95, 0
  %v99 = vadd.f32 %v93, %v97
  %v100 = vadd.f32 %v94, %v97
  %v101 = vld [vmem:[%s1] sm:$0xff]
  %v102 = vadd.f32 %v99, %v101
  %v103 = vadd.f32 %v100, %v101
  %v104 = vpack.c.bf16 %v103, %v102
  %v105 = vld [vmem:[%s4] sm:$0xf]
  %v106 = vld [vmem:[%s4 + $0x4] sm:$0xf]
  %v107 = vld [vmem:[%s4 + $0x8] sm:$0xf]
  %v108 = vld [vmem:[%s4 + $0xc] sm:$0xf]
  %v109 = vld [vmem:[%s4 + $0x10] sm:$0xf]
  %v110 = vld [vmem:[%s4 + $0x14] sm:$0xf]
  %v111 = vld [vmem:[%s4 + $0x18] sm:$0xf]
  %v112 = vld [vmem:[%s4 + $0x1c] sm:$0xf]
  %v113 = vld [vmem:[%s5] sm:$0x1]
  %v115 = vperm.slane %v113, 0
  %v125 = vunpack.c.l.b16 %v105
  %v126 = vunpack.c.l.b16 %v106
  %v127 = vunpack.c.l.b16 %v107
  %v128 = vunpack.c.l.b16 %v108
  %v129 = vunpack.c.l.b16 %v109
  %v130 = vunpack.c.l.b16 %v110
  %v131 = vunpack.c.l.b16 %v111
  %v132 = vunpack.c.l.b16 %v112
  %v133 = vpack.c.b16 %v126, %v125
  %v134 = vpack.c.b16 %v128, %v127
  %v135 = vpack.c.b16 %v130, %v129
  %v136 = vpack.c.b16 %v132, %v131
  %vm141 = vcmask 523264
  %v143 = vsel %vm141, %v104, 0
  %145 = vmatpush.bf16.msra.mxu0 0
  %146 = vmatpush.bf16.msra.mxu0 0
  %147 = vmatpush.bf16.msra.mxu0 0
  %148 = vmatpush.bf16.msra.mxu0 0
  %149 = vmatpush.bf16.msra.mxu0 %v136
  %150 = vmatpush.bf16.msra.mxu0 %v135
  %151 = vmatpush.bf16.msra.mxu0 %v134
  %152 = vmatpush.bf16.msra.mxu0 %v133
  %153 = vmatmul.bf16.gmra.mxu0 %v143
  %v154 = vpop.f32.mrf.mxu0
  %v155 = vadd.f32 %v115, %v154
  %v156 = vpop.f32.mrf.mxu0
  %v157 = vadd.f32 %v115, %v156
  %158 = vdwg.mxu0
  %v159 = vld [vmem:[%s6] sm:$0xf]
  %v160 = vld [vmem:[%s6 + $0x4] sm:$0xf]
  %v161 = vld [vmem:[%s6 + $0x8] sm:$0xf]
  %v162 = vld [vmem:[%s6 + $0xc] sm:$0xf]
  %v163 = vld [vmem:[%s6 + $0x10] sm:$0xf]
  %v164 = vld [vmem:[%s6 + $0x14] sm:$0xf]
  %v165 = vld [vmem:[%s6 + $0x18] sm:$0xf]
  %v166 = vld [vmem:[%s6 + $0x1c] sm:$0xf]
  %v167 = vld [vmem:[%s7] sm:$0x1]
  %v169 = vperm.slane %v167, 0
  %v179 = vunpack.c.l.b16 %v159
  %v180 = vunpack.c.l.b16 %v160
  %v181 = vunpack.c.l.b16 %v161
  %v182 = vunpack.c.l.b16 %v162
  %v183 = vunpack.c.l.b16 %v163
  %v184 = vunpack.c.l.b16 %v164
  %v185 = vunpack.c.l.b16 %v165
  %v186 = vunpack.c.l.b16 %v166
  %v187 = vpack.c.b16 %v180, %v179
  %v188 = vpack.c.b16 %v182, %v181
  %v189 = vpack.c.b16 %v184, %v183
  %v190 = vpack.c.b16 %v186, %v185
  %195 = vmatpush.bf16.msra.mxu0 0
  %196 = vmatpush.bf16.msra.mxu0 0
  %197 = vmatpush.bf16.msra.mxu0 0
  %198 = vmatpush.bf16.msra.mxu0 0
  %199 = vmatpush.bf16.msra.mxu0 %v190
  %200 = vmatpush.bf16.msra.mxu0 %v189
  %201 = vmatpush.bf16.msra.mxu0 %v188
  %202 = vmatpush.bf16.msra.mxu0 %v187
  %203 = vmatmul.bf16.gmra.mxu0 %v143
  %v204 = vpop.f32.mrf.mxu0
  %v205 = vadd.f32 %v169, %v204
  %v206 = vpop.f32.mrf.mxu0
  %v207 = vadd.f32 %v169, %v206
  %208 = vdwg.mxu0
  %v209 = vld [vmem:[%s8] sm:$0xf]
  %v210 = vld [vmem:[%s8 + $0x4] sm:$0xf]
  %v211 = vld [vmem:[%s8 + $0x8] sm:$0xf]
  %v212 = vld [vmem:[%s8 + $0xc] sm:$0xf]
  %v213 = vld [vmem:[%s8 + $0x10] sm:$0xf]
  %v214 = vld [vmem:[%s8 + $0x14] sm:$0xf]
  %v215 = vld [vmem:[%s8 + $0x18] sm:$0xf]
  %v216 = vld [vmem:[%s8 + $0x1c] sm:$0xf]
  %v217 = vld [vmem:[%s9] sm:$0x1]
  %v219 = vperm.slane %v217, 0
  %v229 = vunpack.c.l.b16 %v209
  %v230 = vunpack.c.l.b16 %v210
  %v231 = vunpack.c.l.b16 %v211
  %v232 = vunpack.c.l.b16 %v212
  %v233 = vunpack.c.l.b16 %v213
  %v234 = vunpack.c.l.b16 %v214
  %v235 = vunpack.c.l.b16 %v215
  %v236 = vunpack.c.l.b16 %v216
  %v237 = vpack.c.b16 %v230, %v229
  %v238 = vpack.c.b16 %v232, %v231
  %v239 = vpack.c.b16 %v234, %v233
  %v240 = vpack.c.b16 %v236, %v235
  %245 = vmatpush.bf16.msra.mxu0 0
  %246 = vmatpush.bf16.msra.mxu0 0
  %247 = vmatpush.bf16.msra.mxu0 0
  %248 = vmatpush.bf16.msra.mxu0 0
  %249 = vmatpush.bf16.msra.mxu0 %v240
  %250 = vmatpush.bf16.msra.mxu0 %v239
  %251 = vmatpush.bf16.msra.mxu0 %v238
  %252 = vmatpush.bf16.msra.mxu0 %v237
  %253 = vmatmul.bf16.gmra.mxu0 %v143
  %v254 = vpop.f32.mrf.mxu0
  %v255 = vadd.f32 %v219, %v254
  %v256 = vpop.f32.mrf.mxu0
  %v257 = vadd.f32 %v219, %v256
  %258 = vdwg.mxu0
  %v259 = vpack.c.bf16 %v155, %v155
  %v260 = vpack.c.bf16 %v157, %v157
  %v261 = vpack.c.bf16 %v205, %v205
  %v262 = vpack.c.bf16 %v207, %v207
  %v263 = vpack.c.bf16 %v255, %v255
  %v264 = vpack.c.bf16 %v257, %v257
  %vm265 = vcmask 130048
  %v267 = vsel %vm265, %v259, 0
  %v270 = vsel %vm265, %v261, 0
  %272 = vmatpush.bf16.xpose.msra.mxu0 0
  %273 = vmatpush.bf16.xpose.msra.mxu0 0
  %274 = vmatpush.bf16.xpose.msra.mxu0 0
  %275 = vmatpush.bf16.xpose.msra.mxu0 0
  %276 = vmatpush.bf16.xpose.msra.mxu0 0
  %277 = vmatpush.bf16.xpose.msra.mxu0 0
  %278 = vmatpush.bf16.xpose.msra.mxu0 0
  %279 = vmatpush.bf16.xpose.msra.mxu0 %v270
  %280 = vmatmul.bf16.gmra.mxu0 %v267
  %v281 = vpop.f32.mrf.mxu0
  %v282 = vadd.f32 0.0, %v281
  %v283 = vpop.f32.mrf.mxu0
  %284 = vdwg.mxu0
  %v286 = vsel %vm265, %v260, 0
  %v289 = vsel %vm265, %v262, 0
  %291 = vmatpush.bf16.xpose.msra.mxu0 0
  %292 = vmatpush.bf16.xpose.msra.mxu0 0
  %293 = vmatpush.bf16.xpose.msra.mxu0 0
  %294 = vmatpush.bf16.xpose.msra.mxu0 0
  %295 = vmatpush.bf16.xpose.msra.mxu0 0
  %296 = vmatpush.bf16.xpose.msra.mxu0 0
  %297 = vmatpush.bf16.xpose.msra.mxu0 0
  %298 = vmatpush.bf16.xpose.msra.mxu0 %v289
  %299 = vmatmul.bf16.gmra.mxu0 %v286
  %v300 = vpop.f32.mrf.mxu0
  %v301 = vadd.f32 0.0, %v300
  %v302 = vpop.f32.mrf.mxu0
  %303 = vdwg.mxu0
  %vm304 = vcmask 64512
  %v305 = vsel %vm304, %v282, -inf
  %306 = vmax.xlane.f32.xlu0 %v305
  %v307 = vpop.xlane.xlu0 %306
  %v308 = vsel %vm304, %v301, -inf
  %309 = vmax.xlane.f32.xlu0 %v308
  %v310 = vpop.xlane.xlu0 %309
  %v311 = vsub.f32 %v282, %v307
  %v312 = vsub.f32 %v301, %v310
  %v313 = vmul.f32 %v311, 1.442695
  %v314 = vpow.pop %v313
  %v315 = vmul.f32 %v312, 1.442695
  %v316 = vpow.pop %v315
  %v317 = vsel %vm304, %v314, 0.0
  %318 = vadd.xlane.f32.xlu0 %v317
  %v319 = vpop.xlane.xlu0 %318
  %v320 = vsel %vm304, %v316, 0.0
  %321 = vadd.xlane.f32.xlu0 %v320
  %v322 = vpop.xlane.xlu0 %321
  %v323 = vrcp.pop %v319
  %v324 = vrcp.pop %v322
  %v325 = vmul.f32 %v314, %v323
  %v326 = vmul.f32 %v316, %v324
  %v327 = vpack.c.bf16 %v325, %v325
  %v328 = vpack.c.bf16 %v326, %v326
  %v330 = vsel %vm304, %v327, 0
  %vm332 = vcmask 1043456
  %v334 = vsel %vm332, %v263, 0
  %336 = vmatpush.bf16.msra.mxu0 0
  %337 = vmatpush.bf16.msra.mxu0 0
  %338 = vmatpush.bf16.msra.mxu0 0
  %339 = vmatpush.bf16.msra.mxu0 0
  %340 = vmatpush.bf16.msra.mxu0 0
  %341 = vmatpush.bf16.msra.mxu0 0
  %342 = vmatpush.bf16.msra.mxu0 0
  %343 = vmatpush.bf16.msra.mxu0 %v334
  %344 = vmatmul.bf16.gmra.mxu0 %v330
  %v345 = vpop.f32.mrf.mxu0
  %v346 = vadd.f32 0.0, %v345
  %v347 = vpop.f32.mrf.mxu0
  %348 = vdwg.mxu0
  %v350 = vsel %vm304, %v328, 0
  %v353 = vsel %vm332, %v264, 0
  %355 = vmatpush.bf16.msra.mxu0 0
  %356 = vmatpush.bf16.msra.mxu0 0
  %357 = vmatpush.bf16.msra.mxu0 0
  %358 = vmatpush.bf16.msra.mxu0 0
  %359 = vmatpush.bf16.msra.mxu0 0
  %360 = vmatpush.bf16.msra.mxu0 0
  %361 = vmatpush.bf16.msra.mxu0 0
  %362 = vmatpush.bf16.msra.mxu0 %v353
  %363 = vmatmul.bf16.gmra.mxu0 %v350
  %v364 = vpop.f32.mrf.mxu0
  %v365 = vadd.f32 0.0, %v364
  %v366 = vpop.f32.mrf.mxu0
  %367 = vdwg.mxu0
  %v369 = vunpack.c.l.b16 %v259
  %v370 = vpack.c.b16 %v369, %v369
  %371 = vrot.lane.b32.xlu0 %v370, 112
  %v372 = vpop.permute.xlu0 %371
  %v374 = vunpack.c.l.b16 %v261
  %v375 = vpack.c.b16 %v374, %v374
  %376 = vrot.lane.b32.xlu0 %v375, 112
  %v377 = vpop.permute.xlu0 %376
  %v379 = vsel %vm265, %v372, 0
  %v382 = vsel %vm265, %v377, 0
  %384 = vmatpush.bf16.xpose.msra.mxu0 0
  %385 = vmatpush.bf16.xpose.msra.mxu0 0
  %386 = vmatpush.bf16.xpose.msra.mxu0 0
  %387 = vmatpush.bf16.xpose.msra.mxu0 0
  %388 = vmatpush.bf16.xpose.msra.mxu0 0
  %389 = vmatpush.bf16.xpose.msra.mxu0 0
  %390 = vmatpush.bf16.xpose.msra.mxu0 0
  %391 = vmatpush.bf16.xpose.msra.mxu0 %v382
  %392 = vmatmul.bf16.gmra.mxu0 %v379
  %v393 = vpop.f32.mrf.mxu0
  %v394 = vadd.f32 0.0, %v393
  %v395 = vpop.f32.mrf.mxu0
  %396 = vdwg.mxu0
  %v398 = vunpack.c.l.b16 %v260
  %v399 = vpack.c.b16 %v398, %v398
  %400 = vrot.lane.b32.xlu0 %v399, 112
  %v401 = vpop.permute.xlu0 %400
  %v403 = vunpack.c.l.b16 %v262
  %v404 = vpack.c.b16 %v403, %v403
  %405 = vrot.lane.b32.xlu0 %v404, 112
  %v406 = vpop.permute.xlu0 %405
  %v408 = vsel %vm265, %v401, 0
  %v411 = vsel %vm265, %v406, 0
  %413 = vmatpush.bf16.xpose.msra.mxu0 0
  %414 = vmatpush.bf16.xpose.msra.mxu0 0
  %415 = vmatpush.bf16.xpose.msra.mxu0 0
  %416 = vmatpush.bf16.xpose.msra.mxu0 0
  %417 = vmatpush.bf16.xpose.msra.mxu0 0
  %418 = vmatpush.bf16.xpose.msra.mxu0 0
  %419 = vmatpush.bf16.xpose.msra.mxu0 0
  %420 = vmatpush.bf16.xpose.msra.mxu0 %v411
  %421 = vmatmul.bf16.gmra.mxu0 %v408
  %v422 = vpop.f32.mrf.mxu0
  %v423 = vadd.f32 0.0, %v422
  %v424 = vpop.f32.mrf.mxu0
  %425 = vdwg.mxu0
  %v426 = vsel %vm304, %v394, -inf
  %427 = vmax.xlane.f32.xlu0 %v426
  %v428 = vpop.xlane.xlu0 %427
  %v429 = vsel %vm304, %v423, -inf
  %430 = vmax.xlane.f32.xlu0 %v429
  %v431 = vpop.xlane.xlu0 %430
  %v432 = vsub.f32 %v394, %v428
  %v433 = vsub.f32 %v423, %v431
  %v434 = vmul.f32 %v432, 1.442695
  %v435 = vpow.pop %v434
  %v436 = vmul.f32 %v433, 1.442695
  %v437 = vpow.pop %v436
  %v438 = vsel %vm304, %v435, 0.0
  %439 = vadd.xlane.f32.xlu0 %v438
  %v440 = vpop.xlane.xlu0 %439
  %v441 = vsel %vm304, %v437, 0.0
  %442 = vadd.xlane.f32.xlu0 %v441
  %v443 = vpop.xlane.xlu0 %442
  %v444 = vrcp.pop %v440
  %v445 = vrcp.pop %v443
  %v446 = vmul.f32 %v435, %v444
  %v447 = vmul.f32 %v437, %v445
  %v448 = vpack.c.bf16 %v446, %v446
  %v449 = vpack.c.bf16 %v447, %v447
  %v451 = vunpack.c.l.b16 %v263
  %v452 = vpack.c.b16 %v451, %v451
  %453 = vrot.lane.b32.xlu0 %v452, 112
  %v454 = vpop.permute.xlu0 %453
  %v456 = vsel %vm304, %v448, 0
  %v459 = vsel %vm332, %v454, 0
  %461 = vmatpush.bf16.msra.mxu0 0
  %462 = vmatpush.bf16.msra.mxu0 0
  %463 = vmatpush.bf16.msra.mxu0 0
  %464 = vmatpush.bf16.msra.mxu0 0
  %465 = vmatpush.bf16.msra.mxu0 0
  %466 = vmatpush.bf16.msra.mxu0 0
  %467 = vmatpush.bf16.msra.mxu0 0
  %468 = vmatpush.bf16.msra.mxu0 %v459
  %469 = vmatmul.bf16.gmra.mxu0 %v456
  %v470 = vpop.f32.mrf.mxu0
  %v471 = vadd.f32 0.0, %v470
  %v472 = vpop.f32.mrf.mxu0
  %473 = vdwg.mxu0
  %v475 = vunpack.c.l.b16 %v264
  %v476 = vpack.c.b16 %v475, %v475
  %477 = vrot.lane.b32.xlu0 %v476, 112
  %v478 = vpop.permute.xlu0 %477
  %v480 = vsel %vm304, %v449, 0
  %v483 = vsel %vm332, %v478, 0
  %485 = vmatpush.bf16.msra.mxu0 0
  %486 = vmatpush.bf16.msra.mxu0 0
  %487 = vmatpush.bf16.msra.mxu0 0
  %488 = vmatpush.bf16.msra.mxu0 0
  %489 = vmatpush.bf16.msra.mxu0 0
  %490 = vmatpush.bf16.msra.mxu0 0
  %491 = vmatpush.bf16.msra.mxu0 0
  %492 = vmatpush.bf16.msra.mxu0 %v483
  %493 = vmatmul.bf16.gmra.mxu0 %v480
  %v494 = vpop.f32.mrf.mxu0
  %v495 = vadd.f32 0.0, %v494
  %v496 = vpop.f32.mrf.mxu0
  %497 = vdwg.mxu0
  %498 = vrot.lane.b32.xlu0 %v370, 96
  %v499 = vpop.permute.xlu0 %498
  %500 = vrot.lane.b32.xlu0 %v375, 96
  %v501 = vpop.permute.xlu0 %500
  %v503 = vsel %vm265, %v499, 0
  %v506 = vsel %vm265, %v501, 0
  %508 = vmatpush.bf16.xpose.msra.mxu0 0
  %509 = vmatpush.bf16.xpose.msra.mxu0 0
  %510 = vmatpush.bf16.xpose.msra.mxu0 0
  %511 = vmatpush.bf16.xpose.msra.mxu0 0
  %512 = vmatpush.bf16.xpose.msra.mxu0 0
  %513 = vmatpush.bf16.xpose.msra.mxu0 0
  %514 = vmatpush.bf16.xpose.msra.mxu0 0
  %515 = vmatpush.bf16.xpose.msra.mxu0 %v506
  %516 = vmatmul.bf16.gmra.mxu0 %v503
  %v517 = vpop.f32.mrf.mxu0
  %v518 = vadd.f32 0.0, %v517
  %v519 = vpop.f32.mrf.mxu0
  %520 = vdwg.mxu0
  %521 = vrot.lane.b32.xlu0 %v399, 96
  %v522 = vpop.permute.xlu0 %521
  %523 = vrot.lane.b32.xlu0 %v404, 96
  %v524 = vpop.permute.xlu0 %523
  %v526 = vsel %vm265, %v522, 0
  %v529 = vsel %vm265, %v524, 0
  %531 = vmatpush.bf16.xpose.msra.mxu0 0
  %532 = vmatpush.bf16.xpose.msra.mxu0 0
  %533 = vmatpush.bf16.xpose.msra.mxu0 0
  %534 = vmatpush.bf16.xpose.msra.mxu0 0
  %535 = vmatpush.bf16.xpose.msra.mxu0 0
  %536 = vmatpush.bf16.xpose.msra.mxu0 0
  %537 = vmatpush.bf16.xpose.msra.mxu0 0
  %538 = vmatpush.bf16.xpose.msra.mxu0 %v529
  %539 = vmatmul.bf16.gmra.mxu0 %v526
  %v540 = vpop.f32.mrf.mxu0
  %v541 = vadd.f32 0.0, %v540
  %v542 = vpop.f32.mrf.mxu0
  %543 = vdwg.mxu0
  %v544 = vsel %vm304, %v518, -inf
  %545 = vmax.xlane.f32.xlu0 %v544
  %v546 = vpop.xlane.xlu0 %545
  %v547 = vsel %vm304, %v541, -inf
  %548 = vmax.xlane.f32.xlu0 %v547
  %v549 = vpop.xlane.xlu0 %548
  %v550 = vsub.f32 %v518, %v546
  %v551 = vsub.f32 %v541, %v549
  %v552 = vmul.f32 %v550, 1.442695
  %v553 = vpow.pop %v552
  %v554 = vmul.f32 %v551, 1.442695
  %v555 = vpow.pop %v554
  %v556 = vsel %vm304, %v553, 0.0
  %557 = vadd.xlane.f32.xlu0 %v556
  %v558 = vpop.xlane.xlu0 %557
  %v559 = vsel %vm304, %v555, 0.0
  %560 = vadd.xlane.f32.xlu0 %v559
  %v561 = vpop.xlane.xlu0 %560
  %v562 = vrcp.pop %v558
  %v563 = vrcp.pop %v561
  %v564 = vmul.f32 %v553, %v562
  %v565 = vmul.f32 %v555, %v563
  %v566 = vpack.c.bf16 %v564, %v564
  %v567 = vpack.c.bf16 %v565, %v565
  %568 = vrot.lane.b32.xlu0 %v452, 96
  %v569 = vpop.permute.xlu0 %568
  %v571 = vsel %vm304, %v566, 0
  %v574 = vsel %vm332, %v569, 0
  %576 = vmatpush.bf16.msra.mxu0 0
  %577 = vmatpush.bf16.msra.mxu0 0
  %578 = vmatpush.bf16.msra.mxu0 0
  %579 = vmatpush.bf16.msra.mxu0 0
  %580 = vmatpush.bf16.msra.mxu0 0
  %581 = vmatpush.bf16.msra.mxu0 0
  %582 = vmatpush.bf16.msra.mxu0 0
  %583 = vmatpush.bf16.msra.mxu0 %v574
  %584 = vmatmul.bf16.gmra.mxu0 %v571
  %v585 = vpop.f32.mrf.mxu0
  %v586 = vadd.f32 0.0, %v585
  %v587 = vpop.f32.mrf.mxu0
  %588 = vdwg.mxu0
  %589 = vrot.lane.b32.xlu0 %v476, 96
  %v590 = vpop.permute.xlu0 %589
  %v592 = vsel %vm304, %v567, 0
  %v595 = vsel %vm332, %v590, 0
  %597 = vmatpush.bf16.msra.mxu0 0
  %598 = vmatpush.bf16.msra.mxu0 0
  %599 = vmatpush.bf16.msra.mxu0 0
  %600 = vmatpush.bf16.msra.mxu0 0
  %601 = vmatpush.bf16.msra.mxu0 0
  %602 = vmatpush.bf16.msra.mxu0 0
  %603 = vmatpush.bf16.msra.mxu0 0
  %604 = vmatpush.bf16.msra.mxu0 %v595
  %605 = vmatmul.bf16.gmra.mxu0 %v592
  %v606 = vpop.f32.mrf.mxu0
  %v607 = vadd.f32 0.0, %v606
  %v608 = vpop.f32.mrf.mxu0
  %609 = vdwg.mxu0
  %610 = vrot.lane.b32.xlu0 %v370, 80
  %v611 = vpop.permute.xlu0 %610
  %612 = vrot.lane.b32.xlu0 %v375, 80
  %v613 = vpop.permute.xlu0 %612
  %v615 = vsel %vm265, %v611, 0
  %v618 = vsel %vm265, %v613, 0
  %620 = vmatpush.bf16.xpose.msra.mxu0 0
  %621 = vmatpush.bf16.xpose.msra.mxu0 0
  %622 = vmatpush.bf16.xpose.msra.mxu0 0
  %623 = vmatpush.bf16.xpose.msra.mxu0 0
  %624 = vmatpush.bf16.xpose.msra.mxu0 0
  %625 = vmatpush.bf16.xpose.msra.mxu0 0
  %626 = vmatpush.bf16.xpose.msra.mxu0 0
  %627 = vmatpush.bf16.xpose.msra.mxu0 %v618
  %628 = vmatmul.bf16.gmra.mxu0 %v615
  %v629 = vpop.f32.mrf.mxu0
  %v630 = vadd.f32 0.0, %v629
  %v631 = vpop.f32.mrf.mxu0
  %632 = vdwg.mxu0
  %633 = vrot.lane.b32.xlu0 %v399, 80
  %v634 = vpop.permute.xlu0 %633
  %635 = vrot.lane.b32.xlu0 %v404, 80
  %v636 = vpop.permute.xlu0 %635
  %v638 = vsel %vm265, %v634, 0
  %v641 = vsel %vm265, %v636, 0
  %643 = vmatpush.bf16.xpose.msra.mxu0 0
  %644 = vmatpush.bf16.xpose.msra.mxu0 0
  %645 = vmatpush.bf16.xpose.msra.mxu0 0
  %646 = vmatpush.bf16.xpose.msra.mxu0 0
  %647 = vmatpush.bf16.xpose.msra.mxu0 0
  %648 = vmatpush.bf16.xpose.msra.mxu0 0
  %649 = vmatpush.bf16.xpose.msra.mxu0 0
  %650 = vmatpush.bf16.xpose.msra.mxu0 %v641
  %651 = vmatmul.bf16.gmra.mxu0 %v638
  %v652 = vpop.f32.mrf.mxu0
  %v653 = vadd.f32 0.0, %v652
  %v654 = vpop.f32.mrf.mxu0
  %655 = vdwg.mxu0
  %v656 = vsel %vm304, %v630, -inf
  %657 = vmax.xlane.f32.xlu0 %v656
  %v658 = vpop.xlane.xlu0 %657
  %v659 = vsel %vm304, %v653, -inf
  %660 = vmax.xlane.f32.xlu0 %v659
  %v661 = vpop.xlane.xlu0 %660
  %v662 = vsub.f32 %v630, %v658
  %v663 = vsub.f32 %v653, %v661
  %v664 = vmul.f32 %v662, 1.442695
  %v665 = vpow.pop %v664
  %v666 = vmul.f32 %v663, 1.442695
  %v667 = vpow.pop %v666
  %v668 = vsel %vm304, %v665, 0.0
  %669 = vadd.xlane.f32.xlu0 %v668
  %v670 = vpop.xlane.xlu0 %669
  %v671 = vsel %vm304, %v667, 0.0
  %672 = vadd.xlane.f32.xlu0 %v671
  %v673 = vpop.xlane.xlu0 %672
  %v674 = vrcp.pop %v670
  %v675 = vrcp.pop %v673
  %v676 = vmul.f32 %v665, %v674
  %v677 = vmul.f32 %v667, %v675
  %v678 = vpack.c.bf16 %v676, %v676
  %v679 = vpack.c.bf16 %v677, %v677
  %680 = vrot.lane.b32.xlu0 %v452, 80
  %v681 = vpop.permute.xlu0 %680
  %v683 = vsel %vm304, %v678, 0
  %v686 = vsel %vm332, %v681, 0
  %688 = vmatpush.bf16.msra.mxu0 0
  %689 = vmatpush.bf16.msra.mxu0 0
  %690 = vmatpush.bf16.msra.mxu0 0
  %691 = vmatpush.bf16.msra.mxu0 0
  %692 = vmatpush.bf16.msra.mxu0 0
  %693 = vmatpush.bf16.msra.mxu0 0
  %694 = vmatpush.bf16.msra.mxu0 0
  %695 = vmatpush.bf16.msra.mxu0 %v686
  %696 = vmatmul.bf16.gmra.mxu0 %v683
  %v697 = vpop.f32.mrf.mxu0
  %v698 = vadd.f32 0.0, %v697
  %v699 = vpop.f32.mrf.mxu0
  %700 = vdwg.mxu0
  %701 = vrot.lane.b32.xlu0 %v476, 80
  %v702 = vpop.permute.xlu0 %701
  %v704 = vsel %vm304, %v679, 0
  %v707 = vsel %vm332, %v702, 0
  %709 = vmatpush.bf16.msra.mxu0 0
  %710 = vmatpush.bf16.msra.mxu0 0
  %711 = vmatpush.bf16.msra.mxu0 0
  %712 = vmatpush.bf16.msra.mxu0 0
  %713 = vmatpush.bf16.msra.mxu0 0
  %714 = vmatpush.bf16.msra.mxu0 0
  %715 = vmatpush.bf16.msra.mxu0 0
  %716 = vmatpush.bf16.msra.mxu0 %v707
  %717 = vmatmul.bf16.gmra.mxu0 %v704
  %v718 = vpop.f32.mrf.mxu0
  %v719 = vadd.f32 0.0, %v718
  %v720 = vpop.f32.mrf.mxu0
  %721 = vdwg.mxu0
  %724 = vrot.lane.b32.xlu0 %v471, 16
  %v725 = vpop.permute.xlu0 %724
  %726 = vrot.lane.b32.xlu0 %v495, 16
  %v727 = vpop.permute.xlu0 %726
  %732 = vrot.lane.b32.xlu0 %v586, 32
  %v733 = vpop.permute.xlu0 %732
  %734 = vrot.lane.b32.xlu0 %v607, 32
  %v735 = vpop.permute.xlu0 %734
  %740 = vrot.lane.b32.xlu0 %v698, 48
  %v741 = vpop.permute.xlu0 %740
  %742 = vrot.lane.b32.xlu0 %v719, 48
  %v743 = vpop.permute.xlu0 %742
  %v746 = vsel %vm265, %v346, %v725
  %v747 = vsel %vm265, %v365, %v727
  %vm748 = vcmask 261120
  %v749 = vsel %vm748, %v746, %v733
  %v750 = vsel %vm748, %v747, %v735
  %vm751 = vcmask 392192
  %v752 = vsel %vm751, %v749, %v741
  %v753 = vsel %vm751, %v750, %v743
  %v754 = vpack.c.bf16 %v753, %v752
  %v755 = vld [vmem:[%s10] sm:$0xf]
  %v756 = vld [vmem:[%s10 + $0x4] sm:$0xf]
  %v757 = vld [vmem:[%s10 + $0x8] sm:$0xf]
  %v758 = vld [vmem:[%s10 + $0xc] sm:$0xf]
  %v759 = vld [vmem:[%s10 + $0x10] sm:$0xf]
  %v760 = vld [vmem:[%s10 + $0x14] sm:$0xf]
  %v761 = vld [vmem:[%s10 + $0x18] sm:$0xf]
  %v762 = vld [vmem:[%s10 + $0x1c] sm:$0xf]
  %v763 = vld [vmem:[%s11] sm:$0x1]
  %v765 = vperm.slane %v763, 0
  %v775 = vunpack.c.l.b16 %v755
  %v776 = vunpack.c.l.b16 %v756
  %v777 = vunpack.c.l.b16 %v757
  %v778 = vunpack.c.l.b16 %v758
  %v779 = vunpack.c.l.b16 %v759
  %v780 = vunpack.c.l.b16 %v760
  %v781 = vunpack.c.l.b16 %v761
  %v782 = vunpack.c.l.b16 %v762
  %v783 = vpack.c.b16 %v776, %v775
  %v784 = vpack.c.b16 %v778, %v777
  %v785 = vpack.c.b16 %v780, %v779
  %v786 = vpack.c.b16 %v782, %v781
  %v792 = vsel %vm141, %v754, 0
  %794 = vmatpush.bf16.msra.mxu0 0
  %795 = vmatpush.bf16.msra.mxu0 0
  %796 = vmatpush.bf16.msra.mxu0 0
  %797 = vmatpush.bf16.msra.mxu0 0
  %798 = vmatpush.bf16.msra.mxu0 %v786
  %799 = vmatpush.bf16.msra.mxu0 %v785
  %800 = vmatpush.bf16.msra.mxu0 %v784
  %801 = vmatpush.bf16.msra.mxu0 %v783
  %802 = vmatmul.bf16.gmra.mxu0 %v792
  %v803 = vpop.f32.mrf.mxu0
  %v804 = vadd.f32 %v765, %v803
  %v805 = vpop.f32.mrf.mxu0
  %v806 = vadd.f32 %v765, %v805
  %807 = vdwg.mxu0
  %v808 = vadd.f32 %v102, %v804
  %v809 = vadd.f32 %v103, %v806
  %v810 = vld [vmem:[%s16] sm:$0x1]
  %v811 = vld [vmem:[%s17] sm:$0x1]
  %v812 = vsel %vm141, %v808, 0.0
  %813 = vadd.xlane.f32.xlu0 %v812
  %v814 = vpop.xlane.xlu0 %813
  %v815 = vsel %vm141, %v809, 0.0
  %816 = vadd.xlane.f32.xlu0 %v815
  %v817 = vpop.xlane.xlu0 %816
  %v818 = vrcp.pop 64.0
  %v819 = vmul.f32 64.0, %v818
  %v820 = vsub.f32 1.0, %v819
  %v821 = vmul.f32 %v818, %v820
  %v822 = vadd.f32 %v818, %v821
  %vm823 = vweird.f32 %v818
  %v824 = vsel %vm823, %v818, %v822
  %v825 = vmul.f32 %v814, %v824
  %v826 = vmul.f32 %v817, %v824
  %v827 = vsub.f32 %v808, %v825
  %v828 = vsub.f32 %v809, %v826
  %v829 = vmul.f32 %v827, %v827
  %v830 = vmul.f32 %v828, %v828
  %v831 = vsel %vm141, %v829, 0.0
  %832 = vadd.xlane.f32.xlu0 %v831
  %v833 = vpop.xlane.xlu0 %832
  %v834 = vsel %vm141, %v830, 0.0
  %835 = vadd.xlane.f32.xlu0 %v834
  %v836 = vpop.xlane.xlu0 %835
  %v837 = vmul.f32 %v833, %v824
  %v838 = vmul.f32 %v836, %v824
  %v839 = vadd.f32 %v837, 1e-05
  %v840 = vadd.f32 %v838, 1e-05
  %v841 = vrsqrt.pop %v839
  %v842 = vmul.f32 %v841, %v839
  %v843 = vmul.f32 %v842, %v841
  %v844 = vmul.f32 0.5, %v843
  %v845 = vsub.f32 1.5, %v844
  %v846 = vmul.f32 %v841, %v845
  %vm847 = vweird.f32 %v839
  %vm848 = vweird.f32 %v841
  %vm849 = vmor %vm847, %vm848
  %v850 = vsel %vm849, %v841, %v846
  %v851 = vrsqrt.pop %v840
  %v852 = vmul.f32 %v851, %v840
  %v853 = vmul.f32 %v852, %v851
  %v854 = vmul.f32 0.5, %v853
  %v855 = vsub.f32 1.5, %v854
  %v856 = vmul.f32 %v851, %v855
  %vm857 = vweird.f32 %v840
  %vm858 = vweird.f32 %v851
  %vm859 = vmor %vm857, %vm858
  %v860 = vsel %vm859, %v851, %v856
  %v861 = vmul.f32 %v827, %v850
  %v862 = vmul.f32 %v828, %v860
  %v864 = vperm.slane %v810, 0
  %v866 = vmul.f32 %v861, %v864
  %v867 = vmul.f32 %v862, %v864
  %v869 = vperm.slane %v811, 0
  %v871 = vadd.f32 %v866, %v869
  %v872 = vadd.f32 %v867, %v869
  %v873 = vpack.c.bf16 %v872, %v871
  %v874 = vld [vmem:[%s12] sm:$0xff]
  %v875 = vld [vmem:[%s12 + $0x8] sm:$0xff]
  %v876 = vld [vmem:[%s12 + $0x10] sm:$0xff]
  %v877 = vld [vmem:[%s12 + $0x18] sm:$0xff]
  %v878 = vld [vmem:[%s12 + $0x20] sm:$0xff]
  %v879 = vld [vmem:[%s12 + $0x28] sm:$0xff]
  %v880 = vld [vmem:[%s12 + $0x30] sm:$0xff]
  %v881 = vld [vmem:[%s12 + $0x38] sm:$0xff]
  %v882 = vld [vmem:[%s12 + $0x40] sm:$0xff]
  %v883 = vld [vmem:[%s12 + $0x48] sm:$0xff]
  %v884 = vld [vmem:[%s12 + $0x50] sm:$0xff]
  %v885 = vld [vmem:[%s12 + $0x58] sm:$0xff]
  %v886 = vld [vmem:[%s12 + $0x60] sm:$0xff]
  %v887 = vld [vmem:[%s12 + $0x68] sm:$0xff]
  %v888 = vld [vmem:[%s12 + $0x70] sm:$0xff]
  %v889 = vld [vmem:[%s12 + $0x78] sm:$0xff]
  %v890 = vld [vmem:[%s13] sm:$0xf]
  %v892 = vperm.slane %v890, 0
  %v893 = vperm.slane %v890, 1
  %v894 = vperm.slane %v890, 2
  %v895 = vperm.slane %v890, 3
  %v916 = vunpack.c.l.b16 %v874
  %v917 = vunpack.c.h.b16 %v874
  %v918 = vunpack.c.l.b16 %v875
  %v919 = vunpack.c.h.b16 %v875
  %v920 = vunpack.c.l.b16 %v876
  %v921 = vunpack.c.h.b16 %v876
  %v922 = vunpack.c.l.b16 %v877
  %v923 = vunpack.c.h.b16 %v877
  %v924 = vunpack.c.l.b16 %v878
  %v925 = vunpack.c.h.b16 %v878
  %v926 = vunpack.c.l.b16 %v879
  %v927 = vunpack.c.h.b16 %v879
  %v928 = vunpack.c.l.b16 %v880
  %v929 = vunpack.c.h.b16 %v880
  %v930 = vunpack.c.l.b16 %v881
  %v931 = vunpack.c.h.b16 %v881
  %v932 = vunpack.c.l.b16 %v882
  %v933 = vunpack.c.h.b16 %v882
  %v934 = vunpack.c.l.b16 %v883
  %v935 = vunpack.c.h.b16 %v883
  %v936 = vunpack.c.l.b16 %v884
  %v937 = vunpack.c.h.b16 %v884
  %v938 = vunpack.c.l.b16 %v885
  %v939 = vunpack.c.h.b16 %v885
  %v940 = vunpack.c.l.b16 %v886
  %v941 = vunpack.c.h.b16 %v886
  %v942 = vunpack.c.l.b16 %v887
  %v943 = vunpack.c.h.b16 %v887
  %v944 = vunpack.c.l.b16 %v888
  %v945 = vunpack.c.h.b16 %v888
  %v946 = vunpack.c.l.b16 %v889
  %v947 = vunpack.c.h.b16 %v889
  %v948 = vpack.c.b16 %v920, %v916
  %v949 = vpack.c.b16 %v921, %v917
  %v950 = vpack.c.b16 %v922, %v918
  %v951 = vpack.c.b16 %v923, %v919
  %v952 = vpack.c.b16 %v928, %v924
  %v953 = vpack.c.b16 %v929, %v925
  %v954 = vpack.c.b16 %v930, %v926
  %v955 = vpack.c.b16 %v931, %v927
  %v956 = vpack.c.b16 %v936, %v932
  %v957 = vpack.c.b16 %v937, %v933
  %v958 = vpack.c.b16 %v938, %v934
  %v959 = vpack.c.b16 %v939, %v935
  %v960 = vpack.c.b16 %v944, %v940
  %v961 = vpack.c.b16 %v945, %v941
  %v962 = vpack.c.b16 %v946, %v942
  %v963 = vpack.c.b16 %v947, %v943
  %v981 = vsel %vm141, %v873, 0
  %983 = vmatpush.bf16.msra.mxu0 0
  %984 = vmatpush.bf16.msra.mxu0 0
  %985 = vmatpush.bf16.msra.mxu0 0
  %986 = vmatpush.bf16.msra.mxu0 0
  %987 = vmatpush.bf16.msra.mxu0 %v960
  %988 = vmatpush.bf16.msra.mxu0 %v956
  %989 = vmatpush.bf16.msra.mxu0 %v952
  %990 = vmatpush.bf16.msra.mxu0 %v948
  %991 = vmatmul.bf16.gmra.mxu0 %v981
  %v992 = vpop.f32.mrf.mxu0
  %v993 = vadd.f32 %v892, %v992
  %v994 = vpop.f32.mrf.mxu0
  %v995 = vadd.f32 %v892, %v994
  %996 = vdwg.mxu0
  %997 = vmatpush.bf16.msra.mxu0 0
  %998 = vmatpush.bf16.msra.mxu0 0
  %999 = vmatpush.bf16.msra.mxu0 0
  %1000 = vmatpush.bf16.msra.mxu0 0
  %1001 = vmatpush.bf16.msra.mxu0 %v961
  %1002 = vmatpush.bf16.msra.mxu0 %v957
  %1003 = vmatpush.bf16.msra.mxu0 %v953
  %1004 = vmatpush.bf16.msra.mxu0 %v949
  %1005 = vmatmul.bf16.gmra.mxu0 %v981
  %v1006 = vpop.f32.mrf.mxu0
  %v1007 = vadd.f32 %v893, %v1006
  %v1008 = vpop.f32.mrf.mxu0
  %v1009 = vadd.f32 %v893, %v1008
  %1010 = vdwg.mxu0
  %1011 = vmatpush.bf16.msra.mxu0 0
  %1012 = vmatpush.bf16.msra.mxu0 0
  %1013 = vmatpush.bf16.msra.mxu0 0
  %1014 = vmatpush.bf16.msra.mxu0 0
  %1015 = vmatpush.bf16.msra.mxu0 %v962
  %1016 = vmatpush.bf16.msra.mxu0 %v958
  %1017 = vmatpush.bf16.msra.mxu0 %v954
  %1018 = vmatpush.bf16.msra.mxu0 %v950
  %1019 = vmatmul.bf16.gmra.mxu0 %v981
  %v1020 = vpop.f32.mrf.mxu0
  %v1021 = vadd.f32 %v894, %v1020
  %v1022 = vpop.f32.mrf.mxu0
  %v1023 = vadd.f32 %v894, %v1022
  %1024 = vdwg.mxu0
  %1025 = vmatpush.bf16.msra.mxu0 0
  %1026 = vmatpush.bf16.msra.mxu0 0
  %1027 = vmatpush.bf16.msra.mxu0 0
  %1028 = vmatpush.bf16.msra.mxu0 0
  %1029 = vmatpush.bf16.msra.mxu0 %v963
  %1030 = vmatpush.bf16.msra.mxu0 %v959
  %1031 = vmatpush.bf16.msra.mxu0 %v955
  %1032 = vmatpush.bf16.msra.mxu0 %v951
  %1033 = vmatmul.bf16.gmra.mxu0 %v981
  %v1034 = vpop.f32.mrf.mxu0
  %v1035 = vadd.f32 %v895, %v1034
  %v1036 = vpop.f32.mrf.mxu0
  %v1037 = vadd.f32 %v895, %v1036
  %1038 = vdwg.mxu0
  %v1039 = vmax.f32 %v993, 0.0
  %v1040 = vmax.f32 %v1007, 0.0
  %v1041 = vmax.f32 %v1021, 0.0
  %v1042 = vmax.f32 %v1035, 0.0
  %v1043 = vmax.f32 %v995, 0.0
  %v1044 = vmax.f32 %v1009, 0.0
  %v1045 = vmax.f32 %v1023, 0.0
  %v1046 = vmax.f32 %v1037, 0.0
  %v1047 = vpack.c.bf16 %v1043, %v1039
  %v1048 = vpack.c.bf16 %v1044, %v1040
  %v1049 = vpack.c.bf16 %v1045, %v1041
  %v1050 = vpack.c.bf16 %v1046, %v1042
  %v1051 = vld [vmem:[%s14] sm:$0xf]
  %v1052 = vld [vmem:[%s14 + $0x4] sm:$0xf]
  %v1053 = vld [vmem:[%s14 + $0x8] sm:$0xf]
  %v1054 = vld [vmem:[%s14 + $0xc] sm:$0xf]
  %v1055 = vld [vmem:[%s14 + $0x10] sm:$0xf]
  %v1056 = vld [vmem:[%s14 + $0x14] sm:$0xf]
  %v1057 = vld [vmem:[%s14 + $0x18] sm:$0xf]
  %v1058 = vld [vmem:[%s14 + $0x1c] sm:$0xf]
  %v1059 = vld [vmem:[%s14 + $0x20] sm:$0xf]
  %v1060 = vld [vmem:[%s14 + $0x24] sm:$0xf]
  %v1061 = vld [vmem:[%s14 + $0x28] sm:$0xf]
  %v1062 = vld [vmem:[%s14 + $0x2c] sm:$0xf]
  %v1063 = vld [vmem:[%s14 + $0x30] sm:$0xf]
  %v1064 = vld [vmem:[%s14 + $0x34] sm:$0xf]
  %v1065 = vld [vmem:[%s14 + $0x38] sm:$0xf]
  %v1066 = vld [vmem:[%s14 + $0x3c] sm:$0xf]
  %v1067 = vld [vmem:[%s14 + $0x40] sm:$0xf]
  %v1068 = vld [vmem:[%s14 + $0x44] sm:$0xf]
  %v1069 = vld [vmem:[%s14 + $0x48] sm:$0xf]
  %v1070 = vld [vmem:[%s14 + $0x4c] sm:$0xf]
  %v1071 = vld [vmem:[%s14 + $0x50] sm:$0xf]
  %v1072 = vld [vmem:[%s14 + $0x54] sm:$0xf]
  %v1073 = vld [vmem:[%s14 + $0x58] sm:$0xf]
  %v1074 = vld [vmem:[%s14 + $0x5c] sm:$0xf]
  %v1075 = vld [vmem:[%s14 + $0x60] sm:$0xf]
  %v1076 = vld [vmem:[%s14 + $0x64] sm:$0xf]
  %v1077 = vld [vmem:[%s14 + $0x68] sm:$0xf]
  %v1078 = vld [vmem:[%s14 + $0x6c] sm:$0xf]
  %v1079 = vld [vmem:[%s14 + $0x70] sm:$0xf]
  %v1080 = vld [vmem:[%s14 + $0x74] sm:$0xf]
  %v1081 = vld [vmem:[%s14 + $0x78] sm:$0xf]
  %v1082 = vld [vmem:[%s14 + $0x7c] sm:$0xf]
  %v1083 = vld [vmem:[%s14 + $0x80] sm:$0xf]
  %v1084 = vld [vmem:[%s14 + $0x84] sm:$0xf]
  %v1085 = vld [vmem:[%s14 + $0x88] sm:$0xf]
  %v1086 = vld [vmem:[%s14 + $0x8c] sm:$0xf]
  %v1087 = vld [vmem:[%s14 + $0x90] sm:$0xf]
  %v1088 = vld [vmem:[%s14 + $0x94] sm:$0xf]
  %v1089 = vld [vmem:[%s14 + $0x98] sm:$0xf]
  %v1090 = vld [vmem:[%s14 + $0x9c] sm:$0xf]
  %v1091 = vld [vmem:[%s14 + $0xa0] sm:$0xf]
  %v1092 = vld [vmem:[%s14 + $0xa4] sm:$0xf]
  %v1093 = vld [vmem:[%s14 + $0xa8] sm:$0xf]
  %v1094 = vld [vmem:[%s14 + $0xac] sm:$0xf]
  %v1095 = vld [vmem:[%s14 + $0xb0] sm:$0xf]
  %v1096 = vld [vmem:[%s14 + $0xb4] sm:$0xf]
  %v1097 = vld [vmem:[%s14 + $0xb8] sm:$0xf]
  %v1098 = vld [vmem:[%s14 + $0xbc] sm:$0xf]
  %v1099 = vld [vmem:[%s14 + $0xc0] sm:$0xf]
  %v1100 = vld [vmem:[%s14 + $0xc4] sm:$0xf]
  %v1101 = vld [vmem:[%s14 + $0xc8] sm:$0xf]
  %v1102 = vld [vmem:[%s14 + $0xcc] sm:$0xf]
  %v1103 = vld [vmem:[%s14 + $0xd0] sm:$0xf]
  %v1104 = vld [vmem:[%s14 + $0xd4] sm:$0xf]
  %v1105 = vld [vmem:[%s14 + $0xd8] sm:$0xf]
  %v1106 = vld [vmem:[%s14 + $0xdc] sm:$0xf]
  %v1107 = vld [vmem:[%s14 + $0xe0] sm:$0xf]
  %v1108 = vld [vmem:[%s14 + $0xe4] sm:$0xf]
  %v1109 = vld [vmem:[%s14 + $0xe8] sm:$0xf]
  %v1110 = vld [vmem:[%s14 + $0xec] sm:$0xf]
  %v1111 = vld [vmem:[%s14 + $0xf0] sm:$0xf]
  %v1112 = vld [vmem:[%s14 + $0xf4] sm:$0xf]
  %v1113 = vld [vmem:[%s14 + $0xf8] sm:$0xf]
  %v1114 = vld [vmem:[%s14 + $0xfc] sm:$0xf]
  %s1115 = scalar_lea.vmem %s12, 128
  %v1116 = vld [vmem:[%s1115] sm:$0xff]
  %v1117 = vld [vmem:[%s1115 + $0x8] sm:$0xff]
  %v1118 = vld [vmem:[%s1115 + $0x10] sm:$0xff]
  %v1119 = vld [vmem:[%s1115 + $0x18] sm:$0xff]
  %v1120 = vld [vmem:[%s1115 + $0x20] sm:$0xff]
  %v1121 = vld [vmem:[%s1115 + $0x28] sm:$0xff]
  %v1122 = vld [vmem:[%s1115 + $0x30] sm:$0xff]
  %v1123 = vld [vmem:[%s1115 + $0x38] sm:$0xff]
  %v1124 = vld [vmem:[%s1115 + $0x40] sm:$0xff]
  %v1125 = vld [vmem:[%s1115 + $0x48] sm:$0xff]
  %v1126 = vld [vmem:[%s1115 + $0x50] sm:$0xff]
  %v1127 = vld [vmem:[%s1115 + $0x58] sm:$0xff]
  %v1128 = vld [vmem:[%s1115 + $0x60] sm:$0xff]
  %v1129 = vld [vmem:[%s1115 + $0x68] sm:$0xff]
  %v1130 = vld [vmem:[%s1115 + $0x70] sm:$0xff]
  %v1131 = vld [vmem:[%s1115 + $0x78] sm:$0xff]
  %s1132 = scalar_lea.vmem %s13, 4
  %v1133 = vld [vmem:[%s1132] sm:$0xf]
  %v1135 = vperm.slane %v1133, 0
  %v1136 = vperm.slane %v1133, 1
  %v1137 = vperm.slane %v1133, 2
  %v1138 = vperm.slane %v1133, 3
  %v1159 = vunpack.c.l.b16 %v1116
  %v1160 = vunpack.c.h.b16 %v1116
  %v1161 = vunpack.c.l.b16 %v1117
  %v1162 = vunpack.c.h.b16 %v1117
  %v1163 = vunpack.c.l.b16 %v1118
  %v1164 = vunpack.c.h.b16 %v1118
  %v1165 = vunpack.c.l.b16 %v1119
  %v1166 = vunpack.c.h.b16 %v1119
  %v1167 = vunpack.c.l.b16 %v1120
  %v1168 = vunpack.c.h.b16 %v1120
  %v1169 = vunpack.c.l.b16 %v1121
  %v1170 = vunpack.c.h.b16 %v1121
  %v1171 = vunpack.c.l.b16 %v1122
  %v1172 = vunpack.c.h.b16 %v1122
  %v1173 = vunpack.c.l.b16 %v1123
  %v1174 = vunpack.c.h.b16 %v1123
  %v1175 = vunpack.c.l.b16 %v1124
  %v1176 = vunpack.c.h.b16 %v1124
  %v1177 = vunpack.c.l.b16 %v1125
  %v1178 = vunpack.c.h.b16 %v1125
  %v1179 = vunpack.c.l.b16 %v1126
  %v1180 = vunpack.c.h.b16 %v1126
  %v1181 = vunpack.c.l.b16 %v1127
  %v1182 = vunpack.c.h.b16 %v1127
  %v1183 = vunpack.c.l.b16 %v1128
  %v1184 = vunpack.c.h.b16 %v1128
  %v1185 = vunpack.c.l.b16 %v1129
  %v1186 = vunpack.c.h.b16 %v1129
  %v1187 = vunpack.c.l.b16 %v1130
  %v1188 = vunpack.c.h.b16 %v1130
  %v1189 = vunpack.c.l.b16 %v1131
  %v1190 = vunpack.c.h.b16 %v1131
  %v1191 = vpack.c.b16 %v1163, %v1159
  %v1192 = vpack.c.b16 %v1164, %v1160
  %v1193 = vpack.c.b16 %v1165, %v1161
  %v1194 = vpack.c.b16 %v1166, %v1162
  %v1195 = vpack.c.b16 %v1171, %v1167
  %v1196 = vpack.c.b16 %v1172, %v1168
  %v1197 = vpack.c.b16 %v1173, %v1169
  %v1198 = vpack.c.b16 %v1174, %v1170
  %v1199 = vpack.c.b16 %v1179, %v1175
  %v1200 = vpack.c.b16 %v1180, %v1176
  %v1201 = vpack.c.b16 %v1181, %v1177
  %v1202 = vpack.c.b16 %v1182, %v1178
  %v1203 = vpack.c.b16 %v1187, %v1183
  %v1204 = vpack.c.b16 %v1188, %v1184
  %v1205 = vpack.c.b16 %v1189, %v1185
  %v1206 = vpack.c.b16 %v1190, %v1186
  %1223 = vmatpush.bf16.msra.mxu0 0
  %1224 = vmatpush.bf16.msra.mxu0 0
  %1225 = vmatpush.bf16.msra.mxu0 0
  %1226 = vmatpush.bf16.msra.mxu0 0
  %1227 = vmatpush.bf16.msra.mxu0 %v1203
  %1228 = vmatpush.bf16.msra.mxu0 %v1199
  %1229 = vmatpush.bf16.msra.mxu0 %v1195
  %1230 = vmatpush.bf16.msra.mxu0 %v1191
  %1231 = vmatmul.bf16.gmra.mxu0 %v981
  %v1232 = vpop.f32.mrf.mxu0
  %v1233 = vadd.f32 %v1135, %v1232
  %v1234 = vpop.f32.mrf.mxu0
  %v1235 = vadd.f32 %v1135, %v1234
  %1236 = vdwg.mxu0
  %1237 = vmatpush.bf16.msra.mxu0 0
  %1238 = vmatpush.bf16.msra.mxu0 0
  %1239 = vmatpush.bf16.msra.mxu0 0
  %1240 = vmatpush.bf16.msra.mxu0 0
  %1241 = vmatpush.bf16.msra.mxu0 %v1204
  %1242 = vmatpush.bf16.msra.mxu0 %v1200
  %1243 = vmatpush.bf16.msra.mxu0 %v1196
  %1244 = vmatpush.bf16.msra.mxu0 %v1192
  %1245 = vmatmul.bf16.gmra.mxu0 %v981
  %v1246 = vpop.f32.mrf.mxu0
  %v1247 = vadd.f32 %v1136, %v1246
  %v1248 = vpop.f32.mrf.mxu0
  %v1249 = vadd.f32 %v1136, %v1248
  %1250 = vdwg.mxu0
  %1251 = vmatpush.bf16.msra.mxu0 0
  %1252 = vmatpush.bf16.msra.mxu0 0
  %1253 = vmatpush.bf16.msra.mxu0 0
  %1254 = vmatpush.bf16.msra.mxu0 0
  %1255 = vmatpush.bf16.msra.mxu0 %v1205
  %1256 = vmatpush.bf16.msra.mxu0 %v1201
  %1257 = vmatpush.bf16.msra.mxu0 %v1197
  %1258 = vmatpush.bf16.msra.mxu0 %v1193
  %1259 = vmatmul.bf16.gmra.mxu0 %v981
  %v1260 = vpop.f32.mrf.mxu0
  %v1261 = vadd.f32 %v1137, %v1260
  %v1262 = vpop.f32.mrf.mxu0
  %v1263 = vadd.f32 %v1137, %v1262
  %1264 = vdwg.mxu0
  %1265 = vmatpush.bf16.msra.mxu0 0
  %1266 = vmatpush.bf16.msra.mxu0 0
  %1267 = vmatpush.bf16.msra.mxu0 0
  %1268 = vmatpush.bf16.msra.mxu0 0
  %1269 = vmatpush.bf16.msra.mxu0 %v1206
  %1270 = vmatpush.bf16.msra.mxu0 %v1202
  %1271 = vmatpush.bf16.msra.mxu0 %v1198
  %1272 = vmatpush.bf16.msra.mxu0 %v1194
  %1273 = vmatmul.bf16.gmra.mxu0 %v981
  %v1274 = vpop.f32.mrf.mxu0
  %v1275 = vadd.f32 %v1138, %v1274
  %v1276 = vpop.f32.mrf.mxu0
  %v1277 = vadd.f32 %v1138, %v1276
  %1278 = vdwg.mxu0
  %v1279 = vmax.f32 %v1233, 0.0
  %v1280 = vmax.f32 %v1247, 0.0
  %v1281 = vmax.f32 %v1261, 0.0
  %v1282 = vmax.f32 %v1275, 0.0
  %v1283 = vmax.f32 %v1235, 0.0
  %v1284 = vmax.f32 %v1249, 0.0
  %v1285 = vmax.f32 %v1263, 0.0
  %v1286 = vmax.f32 %v1277, 0.0
  %v1287 = vpack.c.bf16 %v1283, %v1279
  %v1288 = vpack.c.bf16 %v1284, %v1280
  %v1289 = vpack.c.bf16 %v1285, %v1281
  %v1290 = vpack.c.bf16 %v1286, %v1282
  %s1291 = scalar_lea.vmem %s14, 256
  %v1292 = vld [vmem:[%s1291] sm:$0xf]
  %v1293 = vld [vmem:[%s1291 + $0x4] sm:$0xf]
  %v1294 = vld [vmem:[%s1291 + $0x8] sm:$0xf]
  %v1295 = vld [vmem:[%s1291 + $0xc] sm:$0xf]
  %v1296 = vld [vmem:[%s1291 + $0x10] sm:$0xf]
  %v1297 = vld [vmem:[%s1291 + $0x14] sm:$0xf]
  %v1298 = vld [vmem:[%s1291 + $0x18] sm:$0xf]
  %v1299 = vld [vmem:[%s1291 + $0x1c] sm:$0xf]
  %v1300 = vld [vmem:[%s1291 + $0x20] sm:$0xf]
  %v1301 = vld [vmem:[%s1291 + $0x24] sm:$0xf]
  %v1302 = vld [vmem:[%s1291 + $0x28] sm:$0xf]
  %v1303 = vld [vmem:[%s1291 + $0x2c] sm:$0xf]
  %v1304 = vld [vmem:[%s1291 + $0x30] sm:$0xf]
  %v1305 = vld [vmem:[%s1291 + $0x34] sm:$0xf]
  %v1306 = vld [vmem:[%s1291 + $0x38] sm:$0xf]
  %v1307 = vld [vmem:[%s1291 + $0x3c] sm:$0xf]
  %v1308 = vld [vmem:[%s1291 + $0x40] sm:$0xf]
  %v1309 = vld [vmem:[%s1291 + $0x44] sm:$0xf]
  %v1310 = vld [vmem:[%s1291 + $0x48] sm:$0xf]
  %v1311 = vld [vmem:[%s1291 + $0x4c] sm:$0xf]
  %v1312 = vld [vmem:[%s1291 + $0x50] sm:$0xf]
  %v1313 = vld [vmem:[%s1291 + $0x54] sm:$0xf]
  %v1314 = vld [vmem:[%s1291 + $0x58] sm:$0xf]
  %v1315 = vld [vmem:[%s1291 + $0x5c] sm:$0xf]
  %v1316 = vld [vmem:[%s1291 + $0x60] sm:$0xf]
  %v1317 = vld [vmem:[%s1291 + $0x64] sm:$0xf]
  %v1318 = vld [vmem:[%s1291 + $0x68] sm:$0xf]
  %v1319 = vld [vmem:[%s1291 + $0x6c] sm:$0xf]
  %v1320 = vld [vmem:[%s1291 + $0x70] sm:$0xf]
  %v1321 = vld [vmem:[%s1291 + $0x74] sm:$0xf]
  %v1322 = vld [vmem:[%s1291 + $0x78] sm:$0xf]
  %v1323 = vld [vmem:[%s1291 + $0x7c] sm:$0xf]
  %v1324 = vld [vmem:[%s1291 + $0x80] sm:$0xf]
  %v1325 = vld [vmem:[%s1291 + $0x84] sm:$0xf]
  %v1326 = vld [vmem:[%s1291 + $0x88] sm:$0xf]
  %v1327 = vld [vmem:[%s1291 + $0x8c] sm:$0xf]
  %v1328 = vld [vmem:[%s1291 + $0x90] sm:$0xf]
  %v1329 = vld [vmem:[%s1291 + $0x94] sm:$0xf]
  %v1330 = vld [vmem:[%s1291 + $0x98] sm:$0xf]
  %v1331 = vld [vmem:[%s1291 + $0x9c] sm:$0xf]
  %v1332 = vld [vmem:[%s1291 + $0xa0] sm:$0xf]
  %v1333 = vld [vmem:[%s1291 + $0xa4] sm:$0xf]
  %v1334 = vld [vmem:[%s1291 + $0xa8] sm:$0xf]
  %v1335 = vld [vmem:[%s1291 + $0xac] sm:$0xf]
  %v1336 = vld [vmem:[%s1291 + $0xb0] sm:$0xf]
  %v1337 = vld [vmem:[%s1291 + $0xb4] sm:$0xf]
  %v1338 = vld [vmem:[%s1291 + $0xb8] sm:$0xf]
  %v1339 = vld [vmem:[%s1291 + $0xbc] sm:$0xf]
  %v1340 = vld [vmem:[%s1291 + $0xc0] sm:$0xf]
  %v1341 = vld [vmem:[%s1291 + $0xc4] sm:$0xf]
  %v1342 = vld [vmem:[%s1291 + $0xc8] sm:$0xf]
  %v1343 = vld [vmem:[%s1291 + $0xcc] sm:$0xf]
  %v1344 = vld [vmem:[%s1291 + $0xd0] sm:$0xf]
  %v1345 = vld [vmem:[%s1291 + $0xd4] sm:$0xf]
  %v1346 = vld [vmem:[%s1291 + $0xd8] sm:$0xf]
  %v1347 = vld [vmem:[%s1291 + $0xdc] sm:$0xf]
  %v1348 = vld [vmem:[%s1291 + $0xe0] sm:$0xf]
  %v1349 = vld [vmem:[%s1291 + $0xe4] sm:$0xf]
  %v1350 = vld [vmem:[%s1291 + $0xe8] sm:$0xf]
  %v1351 = vld [vmem:[%s1291 + $0xec] sm:$0xf]
  %v1352 = vld [vmem:[%s1291 + $0xf0] sm:$0xf]
  %v1353 = vld [vmem:[%s1291 + $0xf4] sm:$0xf]
  %v1354 = vld [vmem:[%s1291 + $0xf8] sm:$0xf]
  %v1355 = vld [vmem:[%s1291 + $0xfc] sm:$0xf]
  %v1420 = vunpack.c.l.b16 %v1292
  %v1421 = vunpack.c.l.b16 %v1293
  %v1422 = vunpack.c.l.b16 %v1294
  %v1423 = vunpack.c.l.b16 %v1295
  %v1424 = vunpack.c.l.b16 %v1296
  %v1425 = vunpack.c.l.b16 %v1297
  %v1426 = vunpack.c.l.b16 %v1298
  %v1427 = vunpack.c.l.b16 %v1299
  %v1428 = vunpack.c.l.b16 %v1300
  %v1429 = vunpack.c.l.b16 %v1301
  %v1430 = vunpack.c.l.b16 %v1302
  %v1431 = vunpack.c.l.b16 %v1303
  %v1432 = vunpack.c.l.b16 %v1304
  %v1433 = vunpack.c.l.b16 %v1305
  %v1434 = vunpack.c.l.b16 %v1306
  %v1435 = vunpack.c.l.b16 %v1307
  %v1436 = vunpack.c.l.b16 %v1308
  %v1437 = vunpack.c.l.b16 %v1309
  %v1438 = vunpack.c.l.b16 %v1310
  %v1439 = vunpack.c.l.b16 %v1311
  %v1440 = vunpack.c.l.b16 %v1312
  %v1441 = vunpack.c.l.b16 %v1313
  %v1442 = vunpack.c.l.b16 %v1314
  %v1443 = vunpack.c.l.b16 %v1315
  %v1444 = vunpack.c.l.b16 %v1316
  %v1445 = vunpack.c.l.b16 %v1317
  %v1446 = vunpack.c.l.b16 %v1318
  %v1447 = vunpack.c.l.b16 %v1319
  %v1448 = vunpack.c.l.b16 %v1320
  %v1449 = vunpack.c.l.b16 %v1321
  %v1450 = vunpack.c.l.b16 %v1322
  %v1451 = vunpack.c.l.b16 %v1323
  %v1452 = vunpack.c.l.b16 %v1324
  %v1453 = vunpack.c.l.b16 %v1325
  %v1454 = vunpack.c.l.b16 %v1326
  %v1455 = vunpack.c.l.b16 %v1327
  %v1456 = vunpack.c.l.b16 %v1328
  %v1457 = vunpack.c.l.b16 %v1329
  %v1458 = vunpack.c.l.b16 %v1330
  %v1459 = vunpack.c.l.b16 %v1331
  %v1460 = vunpack.c.l.b16 %v1332
  %v1461 = vunpack.c.l.b16 %v1333
  %v1462 = vunpack.c.l.b16 %v1334
  %v1463 = vunpack.c.l.b16 %v1335
  %v1464 = vunpack.c.l.b16 %v1336
  %v1465 = vunpack.c.l.b16 %v1337
  %v1466 = vunpack.c.l.b16 %v1338
  %v1467 = vunpack.c.l.b16 %v1339
  %v1468 = vunpack.c.l.b16 %v1340
  %v1469 = vunpack.c.l.b16 %v1341
  %v1470 = vunpack.c.l.b16 %v1342
  %v1471 = vunpack.c.l.b16 %v1343
  %v1472 = vunpack.c.l.b16 %v1344
  %v1473 = vunpack.c.l.b16 %v1345
  %v1474 = vunpack.c.l.b16 %v1346
  %v1475 = vunpack.c.l.b16 %v1347
  %v1476 = vunpack.c.l.b16 %v1348
  %v1477 = vunpack.c.l.b16 %v1349
  %v1478 = vunpack.c.l.b16 %v1350
  %v1479 = vunpack.c.l.b16 %v1351
  %v1480 = vunpack.c.l.b16 %v1352
  %v1481 = vunpack.c.l.b16 %v1353
  %v1482 = vunpack.c.l.b16 %v1354
  %v1483 = vunpack.c.l.b16 %v1355
  %v1484 = vpack.c.b16 %v1421, %v1420
  %v1485 = vpack.c.b16 %v1423, %v1422
  %v1486 = vpack.c.b16 %v1425, %v1424
  %v1487 = vpack.c.b16 %v1427, %v1426
  %v1488 = vpack.c.b16 %v1429, %v1428
  %v1489 = vpack.c.b16 %v1431, %v1430
  %v1490 = vpack.c.b16 %v1433, %v1432
  %v1491 = vpack.c.b16 %v1435, %v1434
  %v1492 = vpack.c.b16 %v1437, %v1436
  %v1493 = vpack.c.b16 %v1439, %v1438
  %v1494 = vpack.c.b16 %v1441, %v1440
  %v1495 = vpack.c.b16 %v1443, %v1442
  %v1496 = vpack.c.b16 %v1445, %v1444
  %v1497 = vpack.c.b16 %v1447, %v1446
  %v1498 = vpack.c.b16 %v1449, %v1448
  %v1499 = vpack.c.b16 %v1451, %v1450
  %v1500 = vpack.c.b16 %v1453, %v1452
  %v1501 = vpack.c.b16 %v1455, %v1454
  %v1502 = vpack.c.b16 %v1457, %v1456
  %v1503 = vpack.c.b16 %v1459, %v1458
  %v1504 = vpack.c.b16 %v1461, %v1460
  %v1505 = vpack.c.b16 %v1463, %v1462
  %v1506 = vpack.c.b16 %v1465, %v1464
  %v1507 = vpack.c.b16 %v1467, %v1466
  %v1508 = vpack.c.b16 %v1469, %v1468
  %v1509 = vpack.c.b16 %v1471, %v1470
  %v1510 = vpack.c.b16 %v1473, %v1472
  %v1511 = vpack.c.b16 %v1475, %v1474
  %v1512 = vpack.c.b16 %v1477, %v1476
  %v1513 = vpack.c.b16 %v1479, %v1478
  %v1514 = vpack.c.b16 %v1481, %v1480
  %v1515 = vpack.c.b16 %v1483, %v1482
  %1548 = vmatpush.bf16.msra.mxu0 %v1491
  %1549 = vmatpush.bf16.msra.mxu0 %v1490
  %1550 = vmatpush.bf16.msra.mxu0 %v1489
  %1551 = vmatpush.bf16.msra.mxu0 %v1488
  %1552 = vmatpush.bf16.msra.mxu0 %v1487
  %1553 = vmatpush.bf16.msra.mxu0 %v1486
  %1554 = vmatpush.bf16.msra.mxu0 %v1485
  %1555 = vmatpush.bf16.msra.mxu0 %v1484
  %1556 = vmatmul.bf16.gmra.mxu0 %v1287
  %v1557 = vpop.f32.mrf.mxu0
  %v1558 = vadd.f32 0.0, %v1557
  %v1559 = vpop.f32.mrf.mxu0
  %v1560 = vadd.f32 0.0, %v1559
  %1561 = vdwg.mxu0
  %1562 = vmatpush.bf16.msra.mxu0 %v1499
  %1563 = vmatpush.bf16.msra.mxu0 %v1498
  %1564 = vmatpush.bf16.msra.mxu0 %v1497
  %1565 = vmatpush.bf16.msra.mxu0 %v1496
  %1566 = vmatpush.bf16.msra.mxu0 %v1495
  %1567 = vmatpush.bf16.msra.mxu0 %v1494
  %1568 = vmatpush.bf16.msra.mxu0 %v1493
  %1569 = vmatpush.bf16.msra.mxu0 %v1492
  %1570 = vmatmul.bf16.gmra.mxu0 %v1288
  %v1571 = vpop.f32.mrf.mxu0
  %v1572 = vadd.f32 %v1558, %v1571
  %v1573 = vpop.f32.mrf.mxu0
  %v1574 = vadd.f32 %v1560, %v1573
  %1575 = vdwg.mxu0
  %1576 = vmatpush.bf16.msra.mxu0 %v1507
  %1577 = vmatpush.bf16.msra.mxu0 %v1506
  %1578 = vmatpush.bf16.msra.mxu0 %v1505
  %1579 = vmatpush.bf16.msra.mxu0 %v1504
  %1580 = vmatpush.bf16.msra.mxu0 %v1503
  %1581 = vmatpush.bf16.msra.mxu0 %v1502
  %1582 = vmatpush.bf16.msra.mxu0 %v1501
  %1583 = vmatpush.bf16.msra.mxu0 %v1500
  %1584 = vmatmul.bf16.gmra.mxu0 %v1289
  %v1585 = vpop.f32.mrf.mxu0
  %v1586 = vadd.f32 %v1572, %v1585
  %v1587 = vpop.f32.mrf.mxu0
  %v1588 = vadd.f32 %v1574, %v1587
  %1589 = vdwg.mxu0
  %1590 = vmatpush.bf16.msra.mxu0 %v1515
  %1591 = vmatpush.bf16.msra.mxu0 %v1514
  %1592 = vmatpush.bf16.msra.mxu0 %v1513
  %1593 = vmatpush.bf16.msra.mxu0 %v1512
  %1594 = vmatpush.bf16.msra.mxu0 %v1511
  %1595 = vmatpush.bf16.msra.mxu0 %v1510
  %1596 = vmatpush.bf16.msra.mxu0 %v1509
  %1597 = vmatpush.bf16.msra.mxu0 %v1508
  %1598 = vmatmul.bf16.gmra.mxu0 %v1290
  %v1599 = vpop.f32.mrf.mxu0
  %v1600 = vadd.f32 %v1586, %v1599
  %v1601 = vpop.f32.mrf.mxu0
  %v1602 = vadd.f32 %v1588, %v1601
  %1603 = vdwg.mxu0
  %v1668 = vunpack.c.l.b16 %v1051
  %v1669 = vunpack.c.l.b16 %v1052
  %v1670 = vunpack.c.l.b16 %v1053
  %v1671 = vunpack.c.l.b16 %v1054
  %v1672 = vunpack.c.l.b16 %v1055
  %v1673 = vunpack.c.l.b16 %v1056
  %v1674 = vunpack.c.l.b16 %v1057
  %v1675 = vunpack.c.l.b16 %v1058
  %v1676 = vunpack.c.l.b16 %v1059
  %v1677 = vunpack.c.l.b16 %v1060
  %v1678 = vunpack.c.l.b16 %v1061
  %v1679 = vunpack.c.l.b16 %v1062
  %v1680 = vunpack.c.l.b16 %v1063
  %v1681 = vunpack.c.l.b16 %v1064
  %v1682 = vunpack.c.l.b16 %v1065
  %v1683 = vunpack.c.l.b16 %v1066
  %v1684 = vunpack.c.l.b16 %v1067
  %v1685 = vunpack.c.l.b16 %v1068
  %v1686 = vunpack.c.l.b16 %v1069
  %v1687 = vunpack.c.l.b16 %v1070
  %v1688 = vunpack.c.l.b16 %v1071
  %v1689 = vunpack.c.l.b16 %v1072
  %v1690 = vunpack.c.l.b16 %v1073
  %v1691 = vunpack.c.l.b16 %v1074
  %v1692 = vunpack.c.l.b16 %v1075
  %v1693 = vunpack.c.l.b16 %v1076
  %v1694 = vunpack.c.l.b16 %v1077
  %v1695 = vunpack.c.l.b16 %v1078
  %v1696 = vunpack.c.l.b16 %v1079
  %v1697 = vunpack.c.l.b16 %v1080
  %v1698 = vunpack.c.l.b16 %v1081
  %v1699 = vunpack.c.l.b16 %v1082
  %v1700 = vunpack.c.l.b16 %v1083
  %v1701 = vunpack.c.l.b16 %v1084
  %v1702 = vunpack.c.l.b16 %v1085
  %v1703 = vunpack.c.l.b16 %v1086
  %v1704 = vunpack.c.l.b16 %v1087
  %v1705 = vunpack.c.l.b16 %v1088
  %v1706 = vunpack.c.l.b16 %v1089
  %v1707 = vunpack.c.l.b16 %v1090
  %v1708 = vunpack.c.l.b16 %v1091
  %v1709 = vunpack.c.l.b16 %v1092
  %v1710 = vunpack.c.l.b16 %v1093
  %v1711 = vunpack.c.l.b16 %v1094
  %v1712 = vunpack.c.l.b16 %v1095
  %v1713 = vunpack.c.l.b16 %v1096
  %v1714 = vunpack.c.l.b16 %v1097
  %v1715 = vunpack.c.l.b16 %v1098
  %v1716 = vunpack.c.l.b16 %v1099
  %v1717 = vunpack.c.l.b16 %v1100
  %v1718 = vunpack.c.l.b16 %v1101
  %v1719 = vunpack.c.l.b16 %v1102
  %v1720 = vunpack.c.l.b16 %v1103
  %v1721 = vunpack.c.l.b16 %v1104
  %v1722 = vunpack.c.l.b16 %v1105
  %v1723 = vunpack.c.l.b16 %v1106
  %v1724 = vunpack.c.l.b16 %v1107
  %v1725 = vunpack.c.l.b16 %v1108
  %v1726 = vunpack.c.l.b16 %v1109
  %v1727 = vunpack.c.l.b16 %v1110
  %v1728 = vunpack.c.l.b16 %v1111
  %v1729 = vunpack.c.l.b16 %v1112
  %v1730 = vunpack.c.l.b16 %v1113
  %v1731 = vunpack.c.l.b16 %v1114
  %v1732 = vpack.c.b16 %v1669, %v1668
  %v1733 = vpack.c.b16 %v1671, %v1670
  %v1734 = vpack.c.b16 %v1673, %v1672
  %v1735 = vpack.c.b16 %v1675, %v1674
  %v1736 = vpack.c.b16 %v1677, %v1676
  %v1737 = vpack.c.b16 %v1679, %v1678
  %v1738 = vpack.c.b16 %v1681, %v1680
  %v1739 = vpack.c.b16 %v1683, %v1682
  %v1740 = vpack.c.b16 %v1685, %v1684
  %v1741 = vpack.c.b16 %v1687, %v1686
  %v1742 = vpack.c.b16 %v1689, %v1688
  %v1743 = vpack.c.b16 %v1691, %v1690
  %v1744 = vpack.c.b16 %v1693, %v1692
  %v1745 = vpack.c.b16 %v1695, %v1694
  %v1746 = vpack.c.b16 %v1697, %v1696
  %v1747 = vpack.c.b16 %v1699, %v1698
  %v1748 = vpack.c.b16 %v1701, %v1700
  %v1749 = vpack.c.b16 %v1703, %v1702
  %v1750 = vpack.c.b16 %v1705, %v1704
  %v1751 = vpack.c.b16 %v1707, %v1706
  %v1752 = vpack.c.b16 %v1709, %v1708
  %v1753 = vpack.c.b16 %v1711, %v1710
  %v1754 = vpack.c.b16 %v1713, %v1712
  %v1755 = vpack.c.b16 %v1715, %v1714
  %v1756 = vpack.c.b16 %v1717, %v1716
  %v1757 = vpack.c.b16 %v1719, %v1718
  %v1758 = vpack.c.b16 %v1721, %v1720
  %v1759 = vpack.c.b16 %v1723, %v1722
  %v1760 = vpack.c.b16 %v1725, %v1724
  %v1761 = vpack.c.b16 %v1727, %v1726
  %v1762 = vpack.c.b16 %v1729, %v1728
  %v1763 = vpack.c.b16 %v1731, %v1730
  %1796 = vmatpush.bf16.msra.mxu0 %v1739
  %1797 = vmatpush.bf16.msra.mxu0 %v1738
  %1798 = vmatpush.bf16.msra.mxu0 %v1737
  %1799 = vmatpush.bf16.msra.mxu0 %v1736
  %1800 = vmatpush.bf16.msra.mxu0 %v1735
  %1801 = vmatpush.bf16.msra.mxu0 %v1734
  %1802 = vmatpush.bf16.msra.mxu0 %v1733
  %1803 = vmatpush.bf16.msra.mxu0 %v1732
  %1804 = vmatmul.bf16.gmra.mxu0 %v1047
  %v1805 = vpop.f32.mrf.mxu0
  %v1806 = vadd.f32 %v1600, %v1805
  %v1807 = vpop.f32.mrf.mxu0
  %v1808 = vadd.f32 %v1602, %v1807
  %1809 = vdwg.mxu0
  %1810 = vmatpush.bf16.msra.mxu0 %v1747
  %1811 = vmatpush.bf16.msra.mxu0 %v1746
  %1812 = vmatpush.bf16.msra.mxu0 %v1745
  %1813 = vmatpush.bf16.msra.mxu0 %v1744
  %1814 = vmatpush.bf16.msra.mxu0 %v1743
  %1815 = vmatpush.bf16.msra.mxu0 %v1742
  %1816 = vmatpush.bf16.msra.mxu0 %v1741
  %1817 = vmatpush.bf16.msra.mxu0 %v1740
  %1818 = vmatmul.bf16.gmra.mxu0 %v1048
  %v1819 = vpop.f32.mrf.mxu0
  %v1820 = vadd.f32 %v1806, %v1819
  %v1821 = vpop.f32.mrf.mxu0
  %v1822 = vadd.f32 %v1808, %v1821
  %1823 = vdwg.mxu0
  %1824 = vmatpush.bf16.msra.mxu0 %v1755
  %1825 = vmatpush.bf16.msra.mxu0 %v1754
  %1826 = vmatpush.bf16.msra.mxu0 %v1753
  %1827 = vmatpush.bf16.msra.mxu0 %v1752
  %1828 = vmatpush.bf16.msra.mxu0 %v1751
  %1829 = vmatpush.bf16.msra.mxu0 %v1750
  %1830 = vmatpush.bf16.msra.mxu0 %v1749
  %1831 = vmatpush.bf16.msra.mxu0 %v1748
  %1832 = vmatmul.bf16.gmra.mxu0 %v1049
  %v1833 = vpop.f32.mrf.mxu0
  %v1834 = vadd.f32 %v1820, %v1833
  %v1835 = vpop.f32.mrf.mxu0
  %v1836 = vadd.f32 %v1822, %v1835
  %1837 = vdwg.mxu0
  %1838 = vmatpush.bf16.msra.mxu0 %v1763
  %1839 = vmatpush.bf16.msra.mxu0 %v1762
  %1840 = vmatpush.bf16.msra.mxu0 %v1761
  %1841 = vmatpush.bf16.msra.mxu0 %v1760
  %1842 = vmatpush.bf16.msra.mxu0 %v1759
  %1843 = vmatpush.bf16.msra.mxu0 %v1758
  %1844 = vmatpush.bf16.msra.mxu0 %v1757
  %1845 = vmatpush.bf16.msra.mxu0 %v1756
  %1846 = vmatmul.bf16.gmra.mxu0 %v1050
  %v1847 = vpop.f32.mrf.mxu0
  %v1848 = vadd.f32 %v1834, %v1847
  %v1849 = vpop.f32.mrf.mxu0
  %v1850 = vadd.f32 %v1836, %v1849
  %1851 = vdwg.mxu0
  %s1852 = scalar_lea.vmem %s12, 256
  %v1853 = vld [vmem:[%s1852] sm:$0xff]
  %v1854 = vld [vmem:[%s1852 + $0x8] sm:$0xff]
  %v1855 = vld [vmem:[%s1852 + $0x10] sm:$0xff]
  %v1856 = vld [vmem:[%s1852 + $0x18] sm:$0xff]
  %v1857 = vld [vmem:[%s1852 + $0x20] sm:$0xff]
  %v1858 = vld [vmem:[%s1852 + $0x28] sm:$0xff]
  %v1859 = vld [vmem:[%s1852 + $0x30] sm:$0xff]
  %v1860 = vld [vmem:[%s1852 + $0x38] sm:$0xff]
  %v1861 = vld [vmem:[%s1852 + $0x40] sm:$0xff]
  %v1862 = vld [vmem:[%s1852 + $0x48] sm:$0xff]
  %v1863 = vld [vmem:[%s1852 + $0x50] sm:$0xff]
  %v1864 = vld [vmem:[%s1852 + $0x58] sm:$0xff]
  %v1865 = vld [vmem:[%s1852 + $0x60] sm:$0xff]
  %v1866 = vld [vmem:[%s1852 + $0x68] sm:$0xff]
  %v1867 = vld [vmem:[%s1852 + $0x70] sm:$0xff]
  %v1868 = vld [vmem:[%s1852 + $0x78] sm:$0xff]
  %s1869 = scalar_lea.vmem %s13, 8
  %v1870 = vld [vmem:[%s1869] sm:$0xf]
  %v1872 = vperm.slane %v1870, 0
  %v1873 = vperm.slane %v1870, 1
  %v1874 = vperm.slane %v1870, 2
  %v1875 = vperm.slane %v1870, 3
  %v1896 = vunpack.c.l.b16 %v1853
  %v1897 = vunpack.c.h.b16 %v1853
  %v1898 = vunpack.c.l.b16 %v1854
  %v1899 = vunpack.c.h.b16 %v1854
  %v1900 = vunpack.c.l.b16 %v1855
  %v1901 = vunpack.c.h.b16 %v1855
  %v1902 = vunpack.c.l.b16 %v1856
  %v1903 = vunpack.c.h.b16 %v1856
  %v1904 = vunpack.c.l.b16 %v1857
  %v1905 = vunpack.c.h.b16 %v1857
  %v1906 = vunpack.c.l.b16 %v1858
  %v1907 = vunpack.c.h.b16 %v1858
  %v1908 = vunpack.c.l.b16 %v1859
  %v1909 = vunpack.c.h.b16 %v1859
  %v1910 = vunpack.c.l.b16 %v1860
  %v1911 = vunpack.c.h.b16 %v1860
  %v1912 = vunpack.c.l.b16 %v1861
  %v1913 = vunpack.c.h.b16 %v1861
  %v1914 = vunpack.c.l.b16 %v1862
  %v1915 = vunpack.c.h.b16 %v1862
  %v1916 = vunpack.c.l.b16 %v1863
  %v1917 = vunpack.c.h.b16 %v1863
  %v1918 = vunpack.c.l.b16 %v1864
  %v1919 = vunpack.c.h.b16 %v1864
  %v1920 = vunpack.c.l.b16 %v1865
  %v1921 = vunpack.c.h.b16 %v1865
  %v1922 = vunpack.c.l.b16 %v1866
  %v1923 = vunpack.c.h.b16 %v1866
  %v1924 = vunpack.c.l.b16 %v1867
  %v1925 = vunpack.c.h.b16 %v1867
  %v1926 = vunpack.c.l.b16 %v1868
  %v1927 = vunpack.c.h.b16 %v1868
  %v1928 = vpack.c.b16 %v1900, %v1896
  %v1929 = vpack.c.b16 %v1901, %v1897
  %v1930 = vpack.c.b16 %v1902, %v1898
  %v1931 = vpack.c.b16 %v1903, %v1899
  %v1932 = vpack.c.b16 %v1908, %v1904
  %v1933 = vpack.c.b16 %v1909, %v1905
  %v1934 = vpack.c.b16 %v1910, %v1906
  %v1935 = vpack.c.b16 %v1911, %v1907
  %v1936 = vpack.c.b16 %v1916, %v1912
  %v1937 = vpack.c.b16 %v1917, %v1913
  %v1938 = vpack.c.b16 %v1918, %v1914
  %v1939 = vpack.c.b16 %v1919, %v1915
  %v1940 = vpack.c.b16 %v1924, %v1920
  %v1941 = vpack.c.b16 %v1925, %v1921
  %v1942 = vpack.c.b16 %v1926, %v1922
  %v1943 = vpack.c.b16 %v1927, %v1923
  %1960 = vmatpush.bf16.msra.mxu0 0
  %1961 = vmatpush.bf16.msra.mxu0 0
  %1962 = vmatpush.bf16.msra.mxu0 0
  %1963 = vmatpush.bf16.msra.mxu0 0
  %1964 = vmatpush.bf16.msra.mxu0 %v1940
  %1965 = vmatpush.bf16.msra.mxu0 %v1936
  %1966 = vmatpush.bf16.msra.mxu0 %v1932
  %1967 = vmatpush.bf16.msra.mxu0 %v1928
  %1968 = vmatmul.bf16.gmra.mxu0 %v981
  %v1969 = vpop.f32.mrf.mxu0
  %v1970 = vadd.f32 %v1872, %v1969
  %v1971 = vpop.f32.mrf.mxu0
  %v1972 = vadd.f32 %v1872, %v1971
  %1973 = vdwg.mxu0
  %1974 = vmatpush.bf16.msra.mxu0 0
  %1975 = vmatpush.bf16.msra.mxu0 0
  %1976 = vmatpush.bf16.msra.mxu0 0
  %1977 = vmatpush.bf16.msra.mxu0 0
  %1978 = vmatpush.bf16.msra.mxu0 %v1941
  %1979 = vmatpush.bf16.msra.mxu0 %v1937
  %1980 = vmatpush.bf16.msra.mxu0 %v1933
  %1981 = vmatpush.bf16.msra.mxu0 %v1929
  %1982 = vmatmul.bf16.gmra.mxu0 %v981
  %v1983 = vpop.f32.mrf.mxu0
  %v1984 = vadd.f32 %v1873, %v1983
  %v1985 = vpop.f32.mrf.mxu0
  %v1986 = vadd.f32 %v1873, %v1985
  %1987 = vdwg.mxu0
  %1988 = vmatpush.bf16.msra.mxu0 0
  %1989 = vmatpush.bf16.msra.mxu0 0
  %1990 = vmatpush.bf16.msra.mxu0 0
  %1991 = vmatpush.bf16.msra.mxu0 0
  %1992 = vmatpush.bf16.msra.mxu0 %v1942
  %1993 = vmatpush.bf16.msra.mxu0 %v1938
  %1994 = vmatpush.bf16.msra.mxu0 %v1934
  %1995 = vmatpush.bf16.msra.mxu0 %v1930
  %1996 = vmatmul.bf16.gmra.mxu0 %v981
  %v1997 = vpop.f32.mrf.mxu0
  %v1998 = vadd.f32 %v1874, %v1997
  %v1999 = vpop.f32.mrf.mxu0
  %v2000 = vadd.f32 %v1874, %v1999
  %2001 = vdwg.mxu0
  %2002 = vmatpush.bf16.msra.mxu0 0
  %2003 = vmatpush.bf16.msra.mxu0 0
  %2004 = vmatpush.bf16.msra.mxu0 0
  %2005 = vmatpush.bf16.msra.mxu0 0
  %2006 = vmatpush.bf16.msra.mxu0 %v1943
  %2007 = vmatpush.bf16.msra.mxu0 %v1939
  %2008 = vmatpush.bf16.msra.mxu0 %v1935
  %2009 = vmatpush.bf16.msra.mxu0 %v1931
  %2010 = vmatmul.bf16.gmra.mxu0 %v981
  %v2011 = vpop.f32.mrf.mxu0
  %v2012 = vadd.f32 %v1875, %v2011
  %v2013 = vpop.f32.mrf.mxu0
  %v2014 = vadd.f32 %v1875, %v2013
  %2015 = vdwg.mxu0
  %v2016 = vmax.f32 %v1970, 0.0
  %v2017 = vmax.f32 %v1984, 0.0
  %v2018 = vmax.f32 %v1998, 0.0
  %v2019 = vmax.f32 %v2012, 0.0
  %v2020 = vmax.f32 %v1972, 0.0
  %v2021 = vmax.f32 %v1986, 0.0
  %v2022 = vmax.f32 %v2000, 0.0
  %v2023 = vmax.f32 %v2014, 0.0
  %v2024 = vpack.c.bf16 %v2020, %v2016
  %v2025 = vpack.c.bf16 %v2021, %v2017
  %v2026 = vpack.c.bf16 %v2022, %v2018
  %v2027 = vpack.c.bf16 %v2023, %v2019
  %s2028 = scalar_lea.vmem %s14, 512
  %v2029 = vld [vmem:[%s2028] sm:$0xf]
  %v2030 = vld [vmem:[%s2028 + $0x4] sm:$0xf]
  %v2031 = vld [vmem:[%s2028 + $0x8] sm:$0xf]
  %v2032 = vld [vmem:[%s2028 + $0xc] sm:$0xf]
  %v2033 = vld [vmem:[%s2028 + $0x10] sm:$0xf]
  %v2034 = vld [vmem:[%s2028 + $0x14] sm:$0xf]
  %v2035 = vld [vmem:[%s2028 + $0x18] sm:$0xf]
  %v2036 = vld [vmem:[%s2028 + $0x1c] sm:$0xf]
  %v2037 = vld [vmem:[%s2028 + $0x20] sm:$0xf]
  %v2038 = vld [vmem:[%s2028 + $0x24] sm:$0xf]
  %v2039 = vld [vmem:[%s2028 + $0x28] sm:$0xf]
  %v2040 = vld [vmem:[%s2028 + $0x2c] sm:$0xf]
  %v2041 = vld [vmem:[%s2028 + $0x30] sm:$0xf]
  %v2042 = vld [vmem:[%s2028 + $0x34] sm:$0xf]
  %v2043 = vld [vmem:[%s2028 + $0x38] sm:$0xf]
  %v2044 = vld [vmem:[%s2028 + $0x3c] sm:$0xf]
  %v2045 = vld [vmem:[%s2028 + $0x40] sm:$0xf]
  %v2046 = vld [vmem:[%s2028 + $0x44] sm:$0xf]
  %v2047 = vld [vmem:[%s2028 + $0x48] sm:$0xf]
  %v2048 = vld [vmem:[%s2028 + $0x4c] sm:$0xf]
  %v2049 = vld [vmem:[%s2028 + $0x50] sm:$0xf]
  %v2050 = vld [vmem:[%s2028 + $0x54] sm:$0xf]
  %v2051 = vld [vmem:[%s2028 + $0x58] sm:$0xf]
  %v2052 = vld [vmem:[%s2028 + $0x5c] sm:$0xf]
  %v2053 = vld [vmem:[%s2028 + $0x60] sm:$0xf]
  %v2054 = vld [vmem:[%s2028 + $0x64] sm:$0xf]
  %v2055 = vld [vmem:[%s2028 + $0x68] sm:$0xf]
  %v2056 = vld [vmem:[%s2028 + $0x6c] sm:$0xf]
  %v2057 = vld [vmem:[%s2028 + $0x70] sm:$0xf]
  %v2058 = vld [vmem:[%s2028 + $0x74] sm:$0xf]
  %v2059 = vld [vmem:[%s2028 + $0x78] sm:$0xf]
  %v2060 = vld [vmem:[%s2028 + $0x7c] sm:$0xf]
  %v2061 = vld [vmem:[%s2028 + $0x80] sm:$0xf]
  %v2062 = vld [vmem:[%s2028 + $0x84] sm:$0xf]
  %v2063 = vld [vmem:[%s2028 + $0x88] sm:$0xf]
  %v2064 = vld [vmem:[%s2028 + $0x8c] sm:$0xf]
  %v2065 = vld [vmem:[%s2028 + $0x90] sm:$0xf]
  %v2066 = vld [vmem:[%s2028 + $0x94] sm:$0xf]
  %v2067 = vld [vmem:[%s2028 + $0x98] sm:$0xf]
  %v2068 = vld [vmem:[%s2028 + $0x9c] sm:$0xf]
  %v2069 = vld [vmem:[%s2028 + $0xa0] sm:$0xf]
  %v2070 = vld [vmem:[%s2028 + $0xa4] sm:$0xf]
  %v2071 = vld [vmem:[%s2028 + $0xa8] sm:$0xf]
  %v2072 = vld [vmem:[%s2028 + $0xac] sm:$0xf]
  %v2073 = vld [vmem:[%s2028 + $0xb0] sm:$0xf]
  %v2074 = vld [vmem:[%s2028 + $0xb4] sm:$0xf]
  %v2075 = vld [vmem:[%s2028 + $0xb8] sm:$0xf]
  %v2076 = vld [vmem:[%s2028 + $0xbc] sm:$0xf]
  %v2077 = vld [vmem:[%s2028 + $0xc0] sm:$0xf]
  %v2078 = vld [vmem:[%s2028 + $0xc4] sm:$0xf]
  %v2079 = vld [vmem:[%s2028 + $0xc8] sm:$0xf]
  %v2080 = vld [vmem:[%s2028 + $0xcc] sm:$0xf]
  %v2081 = vld [vmem:[%s2028 + $0xd0] sm:$0xf]
  %v2082 = vld [vmem:[%s2028 + $0xd4] sm:$0xf]
  %v2083 = vld [vmem:[%s2028 + $0xd8] sm:$0xf]
  %v2084 = vld [vmem:[%s2028 + $0xdc] sm:$0xf]
  %v2085 = vld [vmem:[%s2028 + $0xe0] sm:$0xf]
  %v2086 = vld [vmem:[%s2028 + $0xe4] sm:$0xf]
  %v2087 = vld [vmem:[%s2028 + $0xe8] sm:$0xf]
  %v2088 = vld [vmem:[%s2028 + $0xec] sm:$0xf]
  %v2089 = vld [vmem:[%s2028 + $0xf0] sm:$0xf]
  %v2090 = vld [vmem:[%s2028 + $0xf4] sm:$0xf]
  %v2091 = vld [vmem:[%s2028 + $0xf8] sm:$0xf]
  %v2092 = vld [vmem:[%s2028 + $0xfc] sm:$0xf]
  %v2157 = vunpack.c.l.b16 %v2029
  %v2158 = vunpack.c.l.b16 %v2030
  %v2159 = vunpack.c.l.b16 %v2031
  %v2160 = vunpack.c.l.b16 %v2032
  %v2161 = vunpack.c.l.b16 %v2033
  %v2162 = vunpack.c.l.b16 %v2034
  %v2163 = vunpack.c.l.b16 %v2035
  %v2164 = vunpack.c.l.b16 %v2036
  %v2165 = vunpack.c.l.b16 %v2037
  %v2166 = vunpack.c.l.b16 %v2038
  %v2167 = vunpack.c.l.b16 %v2039
  %v2168 = vunpack.c.l.b16 %v2040
  %v2169 = vunpack.c.l.b16 %v2041
  %v2170 = vunpack.c.l.b16 %v2042
  %v2171 = vunpack.c.l.b16 %v2043
  %v2172 = vunpack.c.l.b16 %v2044
  %v2173 = vunpack.c.l.b16 %v2045
  %v2174 = vunpack.c.l.b16 %v2046
  %v2175 = vunpack.c.l.b16 %v2047
  %v2176 = vunpack.c.l.b16 %v2048
  %v2177 = vunpack.c.l.b16 %v2049
  %v2178 = vunpack.c.l.b16 %v2050
  %v2179 = vunpack.c.l.b16 %v2051
  %v2180 = vunpack.c.l.b16 %v2052
  %v2181 = vunpack.c.l.b16 %v2053
  %v2182 = vunpack.c.l.b16 %v2054
  %v2183 = vunpack.c.l.b16 %v2055
  %v2184 = vunpack.c.l.b16 %v2056
  %v2185 = vunpack.c.l.b16 %v2057
  %v2186 = vunpack.c.l.b16 %v2058
  %v2187 = vunpack.c.l.b16 %v2059
  %v2188 = vunpack.c.l.b16 %v2060
  %v2189 = vunpack.c.l.b16 %v2061
  %v2190 = vunpack.c.l.b16 %v2062
  %v2191 = vunpack.c.l.b16 %v2063
  %v2192 = vunpack.c.l.b16 %v2064
  %v2193 = vunpack.c.l.b16 %v2065
  %v2194 = vunpack.c.l.b16 %v2066
  %v2195 = vunpack.c.l.b16 %v2067
  %v2196 = vunpack.c.l.b16 %v2068
  %v2197 = vunpack.c.l.b16 %v2069
  %v2198 = vunpack.c.l.b16 %v2070
  %v2199 = vunpack.c.l.b16 %v2071
  %v2200 = vunpack.c.l.b16 %v2072
  %v2201 = vunpack.c.l.b16 %v2073
  %v2202 = vunpack.c.l.b16 %v2074
  %v2203 = vunpack.c.l.b16 %v2075
  %v2204 = vunpack.c.l.b16 %v2076
  %v2205 = vunpack.c.l.b16 %v2077
  %v2206 = vunpack.c.l.b16 %v2078
  %v2207 = vunpack.c.l.b16 %v2079
  %v2208 = vunpack.c.l.b16 %v2080
  %v2209 = vunpack.c.l.b16 %v2081
  %v2210 = vunpack.c.l.b16 %v2082
  %v2211 = vunpack.c.l.b16 %v2083
  %v2212 = vunpack.c.l.b16 %v2084
  %v2213 = vunpack.c.l.b16 %v2085
  %v2214 = vunpack.c.l.b16 %v2086
  %v2215 = vunpack.c.l.b16 %v2087
  %v2216 = vunpack.c.l.b16 %v2088
  %v2217 = vunpack.c.l.b16 %v2089
  %v2218 = vunpack.c.l.b16 %v2090
  %v2219 = vunpack.c.l.b16 %v2091
  %v2220 = vunpack.c.l.b16 %v2092
  %v2221 = vpack.c.b16 %v2158, %v2157
  %v2222 = vpack.c.b16 %v2160, %v2159
  %v2223 = vpack.c.b16 %v2162, %v2161
  %v2224 = vpack.c.b16 %v2164, %v2163
  %v2225 = vpack.c.b16 %v2166, %v2165
  %v2226 = vpack.c.b16 %v2168, %v2167
  %v2227 = vpack.c.b16 %v2170, %v2169
  %v2228 = vpack.c.b16 %v2172, %v2171
  %v2229 = vpack.c.b16 %v2174, %v2173
  %v2230 = vpack.c.b16 %v2176, %v2175
  %v2231 = vpack.c.b16 %v2178, %v2177
  %v2232 = vpack.c.b16 %v2180, %v2179
  %v2233 = vpack.c.b16 %v2182, %v2181
  %v2234 = vpack.c.b16 %v2184, %v2183
  %v2235 = vpack.c.b16 %v2186, %v2185
  %v2236 = vpack.c.b16 %v2188, %v2187
  %v2237 = vpack.c.b16 %v2190, %v2189
  %v2238 = vpack.c.b16 %v2192, %v2191
  %v2239 = vpack.c.b16 %v2194, %v2193
  %v2240 = vpack.c.b16 %v2196, %v2195
  %v2241 = vpack.c.b16 %v2198, %v2197
  %v2242 = vpack.c.b16 %v2200, %v2199
  %v2243 = vpack.c.b16 %v2202, %v2201
  %v2244 = vpack.c.b16 %v2204, %v2203
  %v2245 = vpack.c.b16 %v2206, %v2205
  %v2246 = vpack.c.b16 %v2208, %v2207
  %v2247 = vpack.c.b16 %v2210, %v2209
  %v2248 = vpack.c.b16 %v2212, %v2211
  %v2249 = vpack.c.b16 %v2214, %v2213
  %v2250 = vpack.c.b16 %v2216, %v2215
  %v2251 = vpack.c.b16 %v2218, %v2217
  %v2252 = vpack.c.b16 %v2220, %v2219
  %2285 = vmatpush.bf16.msra.mxu0 %v2228
  %2286 = vmatpush.bf16.msra.mxu0 %v2227
  %2287 = vmatpush.bf16.msra.mxu0 %v2226
  %2288 = vmatpush.bf16.msra.mxu0 %v2225
  %2289 = vmatpush.bf16.msra.mxu0 %v2224
  %2290 = vmatpush.bf16.msra.mxu0 %v2223
  %2291 = vmatpush.bf16.msra.mxu0 %v2222
  %2292 = vmatpush.bf16.msra.mxu0 %v2221
  %2293 = vmatmul.bf16.gmra.mxu0 %v2024
  %v2294 = vpop.f32.mrf.mxu0
  %v2295 = vadd.f32 0.0, %v2294
  %v2296 = vpop.f32.mrf.mxu0
  %v2297 = vadd.f32 0.0, %v2296
  %2298 = vdwg.mxu0
  %2299 = vmatpush.bf16.msra.mxu0 %v2236
  %2300 = vmatpush.bf16.msra.mxu0 %v2235
  %2301 = vmatpush.bf16.msra.mxu0 %v2234
  %2302 = vmatpush.bf16.msra.mxu0 %v2233
  %2303 = vmatpush.bf16.msra.mxu0 %v2232
  %2304 = vmatpush.bf16.msra.mxu0 %v2231
  %2305 = vmatpush.bf16.msra.mxu0 %v2230
  %2306 = vmatpush.bf16.msra.mxu0 %v2229
  %2307 = vmatmul.bf16.gmra.mxu0 %v2025
  %v2308 = vpop.f32.mrf.mxu0
  %v2309 = vadd.f32 %v2295, %v2308
  %v2310 = vpop.f32.mrf.mxu0
  %v2311 = vadd.f32 %v2297, %v2310
  %2312 = vdwg.mxu0
  %2313 = vmatpush.bf16.msra.mxu0 %v2244
  %2314 = vmatpush.bf16.msra.mxu0 %v2243
  %2315 = vmatpush.bf16.msra.mxu0 %v2242
  %2316 = vmatpush.bf16.msra.mxu0 %v2241
  %2317 = vmatpush.bf16.msra.mxu0 %v2240
  %2318 = vmatpush.bf16.msra.mxu0 %v2239
  %2319 = vmatpush.bf16.msra.mxu0 %v2238
  %2320 = vmatpush.bf16.msra.mxu0 %v2237
  %2321 = vmatmul.bf16.gmra.mxu0 %v2026
  %v2322 = vpop.f32.mrf.mxu0
  %v2323 = vadd.f32 %v2309, %v2322
  %v2324 = vpop.f32.mrf.mxu0
  %v2325 = vadd.f32 %v2311, %v2324
  %2326 = vdwg.mxu0
  %2327 = vmatpush.bf16.msra.mxu0 %v2252
  %2328 = vmatpush.bf16.msra.mxu0 %v2251
  %2329 = vmatpush.bf16.msra.mxu0 %v2250
  %2330 = vmatpush.bf16.msra.mxu0 %v2249
  %2331 = vmatpush.bf16.msra.mxu0 %v2248
  %2332 = vmatpush.bf16.msra.mxu0 %v2247
  %2333 = vmatpush.bf16.msra.mxu0 %v2246
  %2334 = vmatpush.bf16.msra.mxu0 %v2245
  %2335 = vmatmul.bf16.gmra.mxu0 %v2027
  %v2336 = vpop.f32.mrf.mxu0
  %v2337 = vadd.f32 %v2323, %v2336
  %v2338 = vpop.f32.mrf.mxu0
  %v2339 = vadd.f32 %v2325, %v2338
  %2340 = vdwg.mxu0
  %v2341 = vadd.f32 %v1848, %v2337
  %v2342 = vadd.f32 %v1850, %v2339
  %s2343 = scalar_lea.vmem %s12, 384
  %v2344 = vld [vmem:[%s2343] sm:$0xff]
  %v2345 = vld [vmem:[%s2343 + $0x8] sm:$0xff]
  %v2346 = vld [vmem:[%s2343 + $0x10] sm:$0xff]
  %v2347 = vld [vmem:[%s2343 + $0x18] sm:$0xff]
  %v2348 = vld [vmem:[%s2343 + $0x20] sm:$0xff]
  %v2349 = vld [vmem:[%s2343 + $0x28] sm:$0xff]
  %v2350 = vld [vmem:[%s2343 + $0x30] sm:$0xff]
  %v2351 = vld [vmem:[%s2343 + $0x38] sm:$0xff]
  %v2352 = vld [vmem:[%s2343 + $0x40] sm:$0xff]
  %v2353 = vld [vmem:[%s2343 + $0x48] sm:$0xff]
  %v2354 = vld [vmem:[%s2343 + $0x50] sm:$0xff]
  %v2355 = vld [vmem:[%s2343 + $0x58] sm:$0xff]
  %v2356 = vld [vmem:[%s2343 + $0x60] sm:$0xff]
  %v2357 = vld [vmem:[%s2343 + $0x68] sm:$0xff]
  %v2358 = vld [vmem:[%s2343 + $0x70] sm:$0xff]
  %v2359 = vld [vmem:[%s2343 + $0x78] sm:$0xff]
  %s2360 = scalar_lea.vmem %s13, 12
  %v2361 = vld [vmem:[%s2360] sm:$0xf]
  %v2363 = vperm.slane %v2361, 0
  %v2364 = vperm.slane %v2361, 1
  %v2365 = vperm.slane %v2361, 2
  %v2366 = vperm.slane %v2361, 3
  %v2387 = vunpack.c.l.b16 %v2344
  %v2388 = vunpack.c.h.b16 %v2344
  %v2389 = vunpack.c.l.b16 %v2345
  %v2390 = vunpack.c.h.b16 %v2345
  %v2391 = vunpack.c.l.b16 %v2346
  %v2392 = vunpack.c.h.b16 %v2346
  %v2393 = vunpack.c.l.b16 %v2347
  %v2394 = vunpack.c.h.b16 %v2347
  %v2395 = vunpack.c.l.b16 %v2348
  %v2396 = vunpack.c.h.b16 %v2348
  %v2397 = vunpack.c.l.b16 %v2349
  %v2398 = vunpack.c.h.b16 %v2349
  %v2399 = vunpack.c.l.b16 %v2350
  %v2400 = vunpack.c.h.b16 %v2350
  %v2401 = vunpack.c.l.b16 %v2351
  %v2402 = vunpack.c.h.b16 %v2351
  %v2403 = vunpack.c.l.b16 %v2352
  %v2404 = vunpack.c.h.b16 %v2352
  %v2405 = vunpack.c.l.b16 %v2353
  %v2406 = vunpack.c.h.b16 %v2353
  %v2407 = vunpack.c.l.b16 %v2354
  %v2408 = vunpack.c.h.b16 %v2354
  %v2409 = vunpack.c.l.b16 %v2355
  %v2410 = vunpack.c.h.b16 %v2355
  %v2411 = vunpack.c.l.b16 %v2356
  %v2412 = vunpack.c.h.b16 %v2356
  %v2413 = vunpack.c.l.b16 %v2357
  %v2414 = vunpack.c.h.b16 %v2357
  %v2415 = vunpack.c.l.b16 %v2358
  %v2416 = vunpack.c.h.b16 %v2358
  %v2417 = vunpack.c.l.b16 %v2359
  %v2418 = vunpack.c.h.b16 %v2359
  %v2419 = vpack.c.b16 %v2391, %v2387
  %v2420 = vpack.c.b16 %v2392, %v2388
  %v2421 = vpack.c.b16 %v2393, %v2389
  %v2422 = vpack.c.b16 %v2394, %v2390
  %v2423 = vpack.c.b16 %v2399, %v2395
  %v2424 = vpack.c.b16 %v2400, %v2396
  %v2425 = vpack.c.b16 %v2401, %v2397
  %v2426 = vpack.c.b16 %v2402, %v2398
  %v2427 = vpack.c.b16 %v2407, %v2403
  %v2428 = vpack.c.b16 %v2408, %v2404
  %v2429 = vpack.c.b16 %v2409, %v2405
  %v2430 = vpack.c.b16 %v2410, %v2406
  %v2431 = vpack.c.b16 %v2415, %v2411
  %v2432 = vpack.c.b16 %v2416, %v2412
  %v2433 = vpack.c.b16 %v2417, %v2413
  %v2434 = vpack.c.b16 %v2418, %v2414
  %2451 = vmatpush.bf16.msra.mxu0 0
  %2452 = vmatpush.bf16.msra.mxu0 0
  %2453 = vmatpush.bf16.msra.mxu0 0
  %2454 = vmatpush.bf16.msra.mxu0 0
  %2455 = vmatpush.bf16.msra.mxu0 %v2431
  %2456 = vmatpush.bf16.msra.mxu0 %v2427
  %2457 = vmatpush.bf16.msra.mxu0 %v2423
  %2458 = vmatpush.bf16.msra.mxu0 %v2419
  %2459 = vmatmul.bf16.gmra.mxu0 %v981
  %v2460 = vpop.f32.mrf.mxu0
  %v2461 = vadd.f32 %v2363, %v2460
  %v2462 = vpop.f32.mrf.mxu0
  %v2463 = vadd.f32 %v2363, %v2462
  %2464 = vdwg.mxu0
  %2465 = vmatpush.bf16.msra.mxu0 0
  %2466 = vmatpush.bf16.msra.mxu0 0
  %2467 = vmatpush.bf16.msra.mxu0 0
  %2468 = vmatpush.bf16.msra.mxu0 0
  %2469 = vmatpush.bf16.msra.mxu0 %v2432
  %2470 = vmatpush.bf16.msra.mxu0 %v2428
  %2471 = vmatpush.bf16.msra.mxu0 %v2424
  %2472 = vmatpush.bf16.msra.mxu0 %v2420
  %2473 = vmatmul.bf16.gmra.mxu0 %v981
  %v2474 = vpop.f32.mrf.mxu0
  %v2475 = vadd.f32 %v2364, %v2474
  %v2476 = vpop.f32.mrf.mxu0
  %v2477 = vadd.f32 %v2364, %v2476
  %2478 = vdwg.mxu0
  %2479 = vmatpush.bf16.msra.mxu0 0
  %2480 = vmatpush.bf16.msra.mxu0 0
  %2481 = vmatpush.bf16.msra.mxu0 0
  %2482 = vmatpush.bf16.msra.mxu0 0
  %2483 = vmatpush.bf16.msra.mxu0 %v2433
  %2484 = vmatpush.bf16.msra.mxu0 %v2429
  %2485 = vmatpush.bf16.msra.mxu0 %v2425
  %2486 = vmatpush.bf16.msra.mxu0 %v2421
  %2487 = vmatmul.bf16.gmra.mxu0 %v981
  %v2488 = vpop.f32.mrf.mxu0
  %v2489 = vadd.f32 %v2365, %v2488
  %v2490 = vpop.f32.mrf.mxu0
  %v2491 = vadd.f32 %v2365, %v2490
  %2492 = vdwg.mxu0
  %2493 = vmatpush.bf16.msra.mxu0 0
  %2494 = vmatpush.bf16.msra.mxu0 0
  %2495 = vmatpush.bf16.msra.mxu0 0
  %2496 = vmatpush.bf16.msra.mxu0 0
  %2497 = vmatpush.bf16.msra.mxu0 %v2434
  %2498 = vmatpush.bf16.msra.mxu0 %v2430
  %2499 = vmatpush.bf16.msra.mxu0 %v2426
  %2500 = vmatpush.bf16.msra.mxu0 %v2422
  %2501 = vmatmul.bf16.gmra.mxu0 %v981
  %v2502 = vpop.f32.mrf.mxu0
  %v2503 = vadd.f32 %v2366, %v2502
  %v2504 = vpop.f32.mrf.mxu0
  %v2505 = vadd.f32 %v2366, %v2504
  %2506 = vdwg.mxu0
  %v2507 = vmax.f32 %v2461, 0.0
  %v2508 = vmax.f32 %v2475, 0.0
  %v2509 = vmax.f32 %v2489, 0.0
  %v2510 = vmax.f32 %v2503, 0.0
  %v2511 = vmax.f32 %v2463, 0.0
  %v2512 = vmax.f32 %v2477, 0.0
  %v2513 = vmax.f32 %v2491, 0.0
  %v2514 = vmax.f32 %v2505, 0.0
  %v2515 = vpack.c.bf16 %v2511, %v2507
  %v2516 = vpack.c.bf16 %v2512, %v2508
  %v2517 = vpack.c.bf16 %v2513, %v2509
  %v2518 = vpack.c.bf16 %v2514, %v2510
  %s2519 = scalar_lea.vmem %s14, 768
  %v2520 = vld [vmem:[%s2519] sm:$0xf]
  %v2521 = vld [vmem:[%s2519 + $0x4] sm:$0xf]
  %v2522 = vld [vmem:[%s2519 + $0x8] sm:$0xf]
  %v2523 = vld [vmem:[%s2519 + $0xc] sm:$0xf]
  %v2524 = vld [vmem:[%s2519 + $0x10] sm:$0xf]
  %v2525 = vld [vmem:[%s2519 + $0x14] sm:$0xf]
  %v2526 = vld [vmem:[%s2519 + $0x18] sm:$0xf]
  %v2527 = vld [vmem:[%s2519 + $0x1c] sm:$0xf]
  %v2528 = vld [vmem:[%s2519 + $0x20] sm:$0xf]
  %v2529 = vld [vmem:[%s2519 + $0x24] sm:$0xf]
  %v2530 = vld [vmem:[%s2519 + $0x28] sm:$0xf]
  %v2531 = vld [vmem:[%s2519 + $0x2c] sm:$0xf]
  %v2532 = vld [vmem:[%s2519 + $0x30] sm:$0xf]
  %v2533 = vld [vmem:[%s2519 + $0x34] sm:$0xf]
  %v2534 = vld [vmem:[%s2519 + $0x38] sm:$0xf]
  %v2535 = vld [vmem:[%s2519 + $0x3c] sm:$0xf]
  %v2536 = vld [vmem:[%s2519 + $0x40] sm:$0xf]
  %v2537 = vld [vmem:[%s2519 + $0x44] sm:$0xf]
  %v2538 = vld [vmem:[%s2519 + $0x48] sm:$0xf]
  %v2539 = vld [vmem:[%s2519 + $0x4c] sm:$0xf]
  %v2540 = vld [vmem:[%s2519 + $0x50] sm:$0xf]
  %v2541 = vld [vmem:[%s2519 + $0x54] sm:$0xf]
  %v2542 = vld [vmem:[%s2519 + $0x58] sm:$0xf]
  %v2543 = vld [vmem:[%s2519 + $0x5c] sm:$0xf]
  %v2544 = vld [vmem:[%s2519 + $0x60] sm:$0xf]
  %v2545 = vld [vmem:[%s2519 + $0x64] sm:$0xf]
  %v2546 = vld [vmem:[%s2519 + $0x68] sm:$0xf]
  %v2547 = vld [vmem:[%s2519 + $0x6c] sm:$0xf]
  %v2548 = vld [vmem:[%s2519 + $0x70] sm:$0xf]
  %v2549 = vld [vmem:[%s2519 + $0x74] sm:$0xf]
  %v2550 = vld [vmem:[%s2519 + $0x78] sm:$0xf]
  %v2551 = vld [vmem:[%s2519 + $0x7c] sm:$0xf]
  %v2552 = vld [vmem:[%s2519 + $0x80] sm:$0xf]
  %v2553 = vld [vmem:[%s2519 + $0x84] sm:$0xf]
  %v2554 = vld [vmem:[%s2519 + $0x88] sm:$0xf]
  %v2555 = vld [vmem:[%s2519 + $0x8c] sm:$0xf]
  %v2556 = vld [vmem:[%s2519 + $0x90] sm:$0xf]
  %v2557 = vld [vmem:[%s2519 + $0x94] sm:$0xf]
  %v2558 = vld [vmem:[%s2519 + $0x98] sm:$0xf]
  %v2559 = vld [vmem:[%s2519 + $0x9c] sm:$0xf]
  %v2560 = vld [vmem:[%s2519 + $0xa0] sm:$0xf]
  %v2561 = vld [vmem:[%s2519 + $0xa4] sm:$0xf]
  %v2562 = vld [vmem:[%s2519 + $0xa8] sm:$0xf]
  %v2563 = vld [vmem:[%s2519 + $0xac] sm:$0xf]
  %v2564 = vld [vmem:[%s2519 + $0xb0] sm:$0xf]
  %v2565 = vld [vmem:[%s2519 + $0xb4] sm:$0xf]
  %v2566 = vld [vmem:[%s2519 + $0xb8] sm:$0xf]
  %v2567 = vld [vmem:[%s2519 + $0xbc] sm:$0xf]
  %v2568 = vld [vmem:[%s2519 + $0xc0] sm:$0xf]
  %v2569 = vld [vmem:[%s2519 + $0xc4] sm:$0xf]
  %v2570 = vld [vmem:[%s2519 + $0xc8] sm:$0xf]
  %v2571 = vld [vmem:[%s2519 + $0xcc] sm:$0xf]
  %v2572 = vld [vmem:[%s2519 + $0xd0] sm:$0xf]
  %v2573 = vld [vmem:[%s2519 + $0xd4] sm:$0xf]
  %v2574 = vld [vmem:[%s2519 + $0xd8] sm:$0xf]
  %v2575 = vld [vmem:[%s2519 + $0xdc] sm:$0xf]
  %v2576 = vld [vmem:[%s2519 + $0xe0] sm:$0xf]
  %v2577 = vld [vmem:[%s2519 + $0xe4] sm:$0xf]
  %v2578 = vld [vmem:[%s2519 + $0xe8] sm:$0xf]
  %v2579 = vld [vmem:[%s2519 + $0xec] sm:$0xf]
  %v2580 = vld [vmem:[%s2519 + $0xf0] sm:$0xf]
  %v2581 = vld [vmem:[%s2519 + $0xf4] sm:$0xf]
  %v2582 = vld [vmem:[%s2519 + $0xf8] sm:$0xf]
  %v2583 = vld [vmem:[%s2519 + $0xfc] sm:$0xf]
  %v2648 = vunpack.c.l.b16 %v2520
  %v2649 = vunpack.c.l.b16 %v2521
  %v2650 = vunpack.c.l.b16 %v2522
  %v2651 = vunpack.c.l.b16 %v2523
  %v2652 = vunpack.c.l.b16 %v2524
  %v2653 = vunpack.c.l.b16 %v2525
  %v2654 = vunpack.c.l.b16 %v2526
  %v2655 = vunpack.c.l.b16 %v2527
  %v2656 = vunpack.c.l.b16 %v2528
  %v2657 = vunpack.c.l.b16 %v2529
  %v2658 = vunpack.c.l.b16 %v2530
  %v2659 = vunpack.c.l.b16 %v2531
  %v2660 = vunpack.c.l.b16 %v2532
  %v2661 = vunpack.c.l.b16 %v2533
  %v2662 = vunpack.c.l.b16 %v2534
  %v2663 = vunpack.c.l.b16 %v2535
  %v2664 = vunpack.c.l.b16 %v2536
  %v2665 = vunpack.c.l.b16 %v2537
  %v2666 = vunpack.c.l.b16 %v2538
  %v2667 = vunpack.c.l.b16 %v2539
  %v2668 = vunpack.c.l.b16 %v2540
  %v2669 = vunpack.c.l.b16 %v2541
  %v2670 = vunpack.c.l.b16 %v2542
  %v2671 = vunpack.c.l.b16 %v2543
  %v2672 = vunpack.c.l.b16 %v2544
  %v2673 = vunpack.c.l.b16 %v2545
  %v2674 = vunpack.c.l.b16 %v2546
  %v2675 = vunpack.c.l.b16 %v2547
  %v2676 = vunpack.c.l.b16 %v2548
  %v2677 = vunpack.c.l.b16 %v2549
  %v2678 = vunpack.c.l.b16 %v2550
  %v2679 = vunpack.c.l.b16 %v2551
  %v2680 = vunpack.c.l.b16 %v2552
  %v2681 = vunpack.c.l.b16 %v2553
  %v2682 = vunpack.c.l.b16 %v2554
  %v2683 = vunpack.c.l.b16 %v2555
  %v2684 = vunpack.c.l.b16 %v2556
  %v2685 = vunpack.c.l.b16 %v2557
  %v2686 = vunpack.c.l.b16 %v2558
  %v2687 = vunpack.c.l.b16 %v2559
  %v2688 = vunpack.c.l.b16 %v2560
  %v2689 = vunpack.c.l.b16 %v2561
  %v2690 = vunpack.c.l.b16 %v2562
  %v2691 = vunpack.c.l.b16 %v2563
  %v2692 = vunpack.c.l.b16 %v2564
  %v2693 = vunpack.c.l.b16 %v2565
  %v2694 = vunpack.c.l.b16 %v2566
  %v2695 = vunpack.c.l.b16 %v2567
  %v2696 = vunpack.c.l.b16 %v2568
  %v2697 = vunpack.c.l.b16 %v2569
  %v2698 = vunpack.c.l.b16 %v2570
  %v2699 = vunpack.c.l.b16 %v2571
  %v2700 = vunpack.c.l.b16 %v2572
  %v2701 = vunpack.c.l.b16 %v2573
  %v2702 = vunpack.c.l.b16 %v2574
  %v2703 = vunpack.c.l.b16 %v2575
  %v2704 = vunpack.c.l.b16 %v2576
  %v2705 = vunpack.c.l.b16 %v2577
  %v2706 = vunpack.c.l.b16 %v2578
  %v2707 = vunpack.c.l.b16 %v2579
  %v2708 = vunpack.c.l.b16 %v2580
  %v2709 = vunpack.c.l.b16 %v2581
  %v2710 = vunpack.c.l.b16 %v2582
  %v2711 = vunpack.c.l.b16 %v2583
  %v2712 = vpack.c.b16 %v2649, %v2648
  %v2713 = vpack.c.b16 %v2651, %v2650
  %v2714 = vpack.c.b16 %v2653, %v2652
  %v2715 = vpack.c.b16 %v2655, %v2654
  %v2716 = vpack.c.b16 %v2657, %v2656
  %v2717 = vpack.c.b16 %v2659, %v2658
  %v2718 = vpack.c.b16 %v2661, %v2660
  %v2719 = vpack.c.b16 %v2663, %v2662
  %v2720 = vpack.c.b16 %v2665, %v2664
  %v2721 = vpack.c.b16 %v2667, %v2666
  %v2722 = vpack.c.b16 %v2669, %v2668
  %v2723 = vpack.c.b16 %v2671, %v2670
  %v2724 = vpack.c.b16 %v2673, %v2672
  %v2725 = vpack.c.b16 %v2675, %v2674
  %v2726 = vpack.c.b16 %v2677, %v2676
  %v2727 = vpack.c.b16 %v2679, %v2678
  %v2728 = vpack.c.b16 %v2681, %v2680
  %v2729 = vpack.c.b16 %v2683, %v2682
  %v2730 = vpack.c.b16 %v2685, %v2684
  %v2731 = vpack.c.b16 %v2687, %v2686
  %v2732 = vpack.c.b16 %v2689, %v2688
  %v2733 = vpack.c.b16 %v2691, %v2690
  %v2734 = vpack.c.b16 %v2693, %v2692
  %v2735 = vpack.c.b16 %v2695, %v2694
  %v2736 = vpack.c.b16 %v2697, %v2696
  %v2737 = vpack.c.b16 %v2699, %v2698
  %v2738 = vpack.c.b16 %v2701, %v2700
  %v2739 = vpack.c.b16 %v2703, %v2702
  %v2740 = vpack.c.b16 %v2705, %v2704
  %v2741 = vpack.c.b16 %v2707, %v2706
  %v2742 = vpack.c.b16 %v2709, %v2708
  %v2743 = vpack.c.b16 %v2711, %v2710
  %2776 = vmatpush.bf16.msra.mxu0 %v2719
  %2777 = vmatpush.bf16.msra.mxu0 %v2718
  %2778 = vmatpush.bf16.msra.mxu0 %v2717
  %2779 = vmatpush.bf16.msra.mxu0 %v2716
  %2780 = vmatpush.bf16.msra.mxu0 %v2715
  %2781 = vmatpush.bf16.msra.mxu0 %v2714
  %2782 = vmatpush.bf16.msra.mxu0 %v2713
  %2783 = vmatpush.bf16.msra.mxu0 %v2712
  %2784 = vmatmul.bf16.gmra.mxu0 %v2515
  %v2785 = vpop.f32.mrf.mxu0
  %v2786 = vadd.f32 0.0, %v2785
  %v2787 = vpop.f32.mrf.mxu0
  %v2788 = vadd.f32 0.0, %v2787
  %2789 = vdwg.mxu0
  %2790 = vmatpush.bf16.msra.mxu0 %v2727
  %2791 = vmatpush.bf16.msra.mxu0 %v2726
  %2792 = vmatpush.bf16.msra.mxu0 %v2725
  %2793 = vmatpush.bf16.msra.mxu0 %v2724
  %2794 = vmatpush.bf16.msra.mxu0 %v2723
  %2795 = vmatpush.bf16.msra.mxu0 %v2722
  %2796 = vmatpush.bf16.msra.mxu0 %v2721
  %2797 = vmatpush.bf16.msra.mxu0 %v2720
  %2798 = vmatmul.bf16.gmra.mxu0 %v2516
  %v2799 = vpop.f32.mrf.mxu0
  %v2800 = vadd.f32 %v2786, %v2799
  %v2801 = vpop.f32.mrf.mxu0
  %v2802 = vadd.f32 %v2788, %v2801
  %2803 = vdwg.mxu0
  %2804 = vmatpush.bf16.msra.mxu0 %v2735
  %2805 = vmatpush.bf16.msra.mxu0 %v2734
  %2806 = vmatpush.bf16.msra.mxu0 %v2733
  %2807 = vmatpush.bf16.msra.mxu0 %v2732
  %2808 = vmatpush.bf16.msra.mxu0 %v2731
  %2809 = vmatpush.bf16.msra.mxu0 %v2730
  %2810 = vmatpush.bf16.msra.mxu0 %v2729
  %2811 = vmatpush.bf16.msra.mxu0 %v2728
  %2812 = vmatmul.bf16.gmra.mxu0 %v2517
  %v2813 = vpop.f32.mrf.mxu0
  %v2814 = vadd.f32 %v2800, %v2813
  %v2815 = vpop.f32.mrf.mxu0
  %v2816 = vadd.f32 %v2802, %v2815
  %2817 = vdwg.mxu0
  %2818 = vmatpush.bf16.msra.mxu0 %v2743
  %2819 = vmatpush.bf16.msra.mxu0 %v2742
  %2820 = vmatpush.bf16.msra.mxu0 %v2741
  %2821 = vmatpush.bf16.msra.mxu0 %v2740
  %2822 = vmatpush.bf16.msra.mxu0 %v2739
  %2823 = vmatpush.bf16.msra.mxu0 %v2738
  %2824 = vmatpush.bf16.msra.mxu0 %v2737
  %2825 = vmatpush.bf16.msra.mxu0 %v2736
  %2826 = vmatmul.bf16.gmra.mxu0 %v2518
  %v2827 = vpop.f32.mrf.mxu0
  %v2828 = vadd.f32 %v2814, %v2827
  %v2829 = vpop.f32.mrf.mxu0
  %v2830 = vadd.f32 %v2816, %v2829
  %2831 = vdwg.mxu0
  %v2832 = vadd.f32 %v2341, %v2828
  %v2833 = vadd.f32 %v2342, %v2830
  %v2834 = vld [vmem:[%s15] sm:$0x1]
  %v2836 = vperm.slane %v2834, 0
  %v2838 = vadd.f32 %v2832, %v2836
  %v2839 = vadd.f32 %v2833, %v2836
  %v2840 = vadd.f32 %v871, %v2838
  %v2841 = vadd.f32 %v872, %v2839
  %v2842 = vld [vmem:[%s18] sm:$0x1]
  %v2843 = vld [vmem:[%s19] sm:$0x1]
  %v2844 = vsel %vm141, %v2840, 0.0
  %2845 = vadd.xlane.f32.xlu0 %v2844
  %v2846 = vpop.xlane.xlu0 %2845
  %v2847 = vsel %vm141, %v2841, 0.0
  %2848 = vadd.xlane.f32.xlu0 %v2847
  %v2849 = vpop.xlane.xlu0 %2848
  %v2850 = vmul.f32 %v2846, %v824
  %v2851 = vmul.f32 %v2849, %v824
  %v2852 = vsub.f32 %v2840, %v2850
  %v2853 = vsub.f32 %v2841, %v2851
  %v2854 = vmul.f32 %v2852, %v2852
  %v2855 = vmul.f32 %v2853, %v2853
  %v2856 = vsel %vm141, %v2854, 0.0
  %2857 = vadd.xlane.f32.xlu0 %v2856
  %v2858 = vpop.xlane.xlu0 %2857
  %v2859 = vsel %vm141, %v2855, 0.0
  %2860 = vadd.xlane.f32.xlu0 %v2859
  %v2861 = vpop.xlane.xlu0 %2860
  %v2862 = vmul.f32 %v2858, %v824
  %v2863 = vmul.f32 %v2861, %v824
  %v2864 = vadd.f32 %v2862, 1e-05
  %v2865 = vadd.f32 %v2863, 1e-05
  %v2866 = vrsqrt.pop %v2864
  %v2867 = vmul.f32 %v2866, %v2864
  %v2868 = vmul.f32 %v2867, %v2866
  %v2869 = vmul.f32 0.5, %v2868
  %v2870 = vsub.f32 1.5, %v2869
  %v2871 = vmul.f32 %v2866, %v2870
  %vm2872 = vweird.f32 %v2864
  %vm2873 = vweird.f32 %v2866
  %vm2874 = vmor %vm2872, %vm2873
  %v2875 = vsel %vm2874, %v2866, %v2871
  %v2876 = vrsqrt.pop %v2865
  %v2877 = vmul.f32 %v2876, %v2865
  %v2878 = vmul.f32 %v2877, %v2876
  %v2879 = vmul.f32 0.5, %v2878
  %v2880 = vsub.f32 1.5, %v2879
  %v2881 = vmul.f32 %v2876, %v2880
  %vm2882 = vweird.f32 %v2865
  %vm2883 = vweird.f32 %v2876
  %vm2884 = vmor %vm2882, %vm2883
  %v2885 = vsel %vm2884, %v2876, %v2881
  %v2886 = vmul.f32 %v2852, %v2875
  %v2887 = vmul.f32 %v2853, %v2885
  %v2889 = vperm.slane %v2842, 0
  %v2891 = vmul.f32 %v2886, %v2889
  %v2892 = vmul.f32 %v2887, %v2889
  %v2894 = vperm.slane %v2843, 0
  %v2896 = vadd.f32 %v2891, %v2894
  %v2897 = vadd.f32 %v2892, %v2894
  %v2898 = vpack.c.bf16 %v2896, %v2896
  %v2899 = vpack.c.bf16 %v2897, %v2897
  %v2900 = vpack.c.bf16 %v2897, %v2896
  %s2901 = scalar_lea.vmem %s4, 32
  %v2902 = vld [vmem:[%s2901] sm:$0xf]
  %v2903 = vld [vmem:[%s2901 + $0x4] sm:$0xf]
  %v2904 = vld [vmem:[%s2901 + $0x8] sm:$0xf]
  %v2905 = vld [vmem:[%s2901 + $0xc] sm:$0xf]
  %v2906 = vld [vmem:[%s2901 + $0x10] sm:$0xf]
  %v2907 = vld [vmem:[%s2901 + $0x14] sm:$0xf]
  %v2908 = vld [vmem:[%s2901 + $0x18] sm:$0xf]
  %v2909 = vld [vmem:[%s2901 + $0x1c] sm:$0xf]
  %s2910 = scalar_lea.vmem %s5, 1
  %v2911 = vld [vmem:[%s2910] sm:$0x1]
  %v2913 = vperm.slane %v2911, 0
  %v2917 = vunpack.c.l.b16 %v2898
  %v2918 = vunpack.c.l.b16 %v2899
  %v2919 = vrot.slane %v2917, 7
  %v2920 = vrot.slane %v2918, 6
  %vm2921 = vcmask 1041409
  %v2922 = vsel %vm2921, %v2920, %v2919
  %v2923 = vpack.c.b16 %v2922, %v2922
  %v2932 = vunpack.c.l.b16 %v2902
  %v2933 = vunpack.c.l.b16 %v2903
  %v2934 = vunpack.c.l.b16 %v2904
  %v2935 = vunpack.c.l.b16 %v2905
  %v2936 = vunpack.c.l.b16 %v2906
  %v2937 = vunpack.c.l.b16 %v2907
  %v2938 = vunpack.c.l.b16 %v2908
  %v2939 = vunpack.c.l.b16 %v2909
  %v2940 = vpack.c.b16 %v2933, %v2932
  %v2941 = vpack.c.b16 %v2935, %v2934
  %v2942 = vpack.c.b16 %v2937, %v2936
  %v2943 = vpack.c.b16 %v2939, %v2938
  %v2949 = vsel %vm141, %v2923, 0
  %2951 = vmatpush.bf16.msra.mxu0 0
  %2952 = vmatpush.bf16.msra.mxu0 0
  %2953 = vmatpush.bf16.msra.mxu0 0
  %2954 = vmatpush.bf16.msra.mxu0 0
  %2955 = vmatpush.bf16.msra.mxu0 %v2943
  %2956 = vmatpush.bf16.msra.mxu0 %v2942
  %2957 = vmatpush.bf16.msra.mxu0 %v2941
  %2958 = vmatpush.bf16.msra.mxu0 %v2940
  %2959 = vmatmul.bf16.gmra.mxu0 %v2949
  %v2960 = vpop.f32.mrf.mxu0
  %v2961 = vadd.f32 %v2913, %v2960
  %v2962 = vpop.f32.mrf.mxu0
  %2963 = vdwg.mxu0
  %s2964 = scalar_lea.vmem %s6, 32
  %v2965 = vld [vmem:[%s2964] sm:$0xf]
  %v2966 = vld [vmem:[%s2964 + $0x4] sm:$0xf]
  %v2967 = vld [vmem:[%s2964 + $0x8] sm:$0xf]
  %v2968 = vld [vmem:[%s2964 + $0xc] sm:$0xf]
  %v2969 = vld [vmem:[%s2964 + $0x10] sm:$0xf]
  %v2970 = vld [vmem:[%s2964 + $0x14] sm:$0xf]
  %v2971 = vld [vmem:[%s2964 + $0x18] sm:$0xf]
  %v2972 = vld [vmem:[%s2964 + $0x1c] sm:$0xf]
  %s2973 = scalar_lea.vmem %s7, 1
  %v2974 = vld [vmem:[%s2973] sm:$0x1]
  %v2976 = vperm.slane %v2974, 0
  %v2986 = vunpack.c.l.b16 %v2965
  %v2987 = vunpack.c.l.b16 %v2966
  %v2988 = vunpack.c.l.b16 %v2967
  %v2989 = vunpack.c.l.b16 %v2968
  %v2990 = vunpack.c.l.b16 %v2969
  %v2991 = vunpack.c.l.b16 %v2970
  %v2992 = vunpack.c.l.b16 %v2971
  %v2993 = vunpack.c.l.b16 %v2972
  %v2994 = vpack.c.b16 %v2987, %v2986
  %v2995 = vpack.c.b16 %v2989, %v2988
  %v2996 = vpack.c.b16 %v2991, %v2990
  %v2997 = vpack.c.b16 %v2993, %v2992
  %v3003 = vsel %vm141, %v2900, 0
  %3005 = vmatpush.bf16.msra.mxu0 0
  %3006 = vmatpush.bf16.msra.mxu0 0
  %3007 = vmatpush.bf16.msra.mxu0 0
  %3008 = vmatpush.bf16.msra.mxu0 0
  %3009 = vmatpush.bf16.msra.mxu0 %v2997
  %3010 = vmatpush.bf16.msra.mxu0 %v2996
  %3011 = vmatpush.bf16.msra.mxu0 %v2995
  %3012 = vmatpush.bf16.msra.mxu0 %v2994
  %3013 = vmatmul.bf16.gmra.mxu0 %v3003
  %v3014 = vpop.f32.mrf.mxu0
  %v3015 = vadd.f32 %v2976, %v3014
  %v3016 = vpop.f32.mrf.mxu0
  %v3017 = vadd.f32 %v2976, %v3016
  %3018 = vdwg.mxu0
  %s3019 = scalar_lea.vmem %s8, 32
  %v3020 = vld [vmem:[%s3019] sm:$0xf]
  %v3021 = vld [vmem:[%s3019 + $0x4] sm:$0xf]
  %v3022 = vld [vmem:[%s3019 + $0x8] sm:$0xf]
  %v3023 = vld [vmem:[%s3019 + $0xc] sm:$0xf]
  %v3024 = vld [vmem:[%s3019 + $0x10] sm:$0xf]
  %v3025 = vld [vmem:[%s3019 + $0x14] sm:$0xf]
  %v3026 = vld [vmem:[%s3019 + $0x18] sm:$0xf]
  %v3027 = vld [vmem:[%s3019 + $0x1c] sm:$0xf]
  %s3028 = scalar_lea.vmem %s9, 1
  %v3029 = vld [vmem:[%s3028] sm:$0x1]
  %v3031 = vperm.slane %v3029, 0
  %v3041 = vunpack.c.l.b16 %v3020
  %v3042 = vunpack.c.l.b16 %v3021
  %v3043 = vunpack.c.l.b16 %v3022
  %v3044 = vunpack.c.l.b16 %v3023
  %v3045 = vunpack.c.l.b16 %v3024
  %v3046 = vunpack.c.l.b16 %v3025
  %v3047 = vunpack.c.l.b16 %v3026
  %v3048 = vunpack.c.l.b16 %v3027
  %v3049 = vpack.c.b16 %v3042, %v3041
  %v3050 = vpack.c.b16 %v3044, %v3043
  %v3051 = vpack.c.b16 %v3046, %v3045
  %v3052 = vpack.c.b16 %v3048, %v3047
  %3057 = vmatpush.bf16.msra.mxu0 0
  %3058 = vmatpush.bf16.msra.mxu0 0
  %3059 = vmatpush.bf16.msra.mxu0 0
  %3060 = vmatpush.bf16.msra.mxu0 0
  %3061 = vmatpush.bf16.msra.mxu0 %v3052
  %3062 = vmatpush.bf16.msra.mxu0 %v3051
  %3063 = vmatpush.bf16.msra.mxu0 %v3050
  %3064 = vmatpush.bf16.msra.mxu0 %v3049
  %3065 = vmatmul.bf16.gmra.mxu0 %v3003
  %v3066 = vpop.f32.mrf.mxu0
  %v3067 = vadd.f32 %v3031, %v3066
  %v3068 = vpop.f32.mrf.mxu0
  %v3069 = vadd.f32 %v3031, %v3068
  %3070 = vdwg.mxu0
  %v3072 = vrot.slane %v2961, 1
  %v3074 = vpack.c.bf16 %v2961, %v2961
  %v3075 = vpack.c.bf16 %v3072, %v3072
  %v3076 = vpack.c.bf16 %v3015, %v3015
  %v3077 = vpack.c.bf16 %v3017, %v3017
  %v3078 = vpack.c.bf16 %v3067, %v3067
  %v3079 = vpack.c.bf16 %v3069, %v3069
  %v3081 = vsel %vm265, %v3074, 0
  %v3084 = vsel %vm265, %v3076, 0
  %3086 = vmatpush.bf16.xpose.msra.mxu0 0
  %3087 = vmatpush.bf16.xpose.msra.mxu0 0
  %3088 = vmatpush.bf16.xpose.msra.mxu0 0
  %3089 = vmatpush.bf16.xpose.msra.mxu0 0
  %3090 = vmatpush.bf16.xpose.msra.mxu0 0
  %3091 = vmatpush.bf16.xpose.msra.mxu0 0
  %3092 = vmatpush.bf16.xpose.msra.mxu0 0
  %3093 = vmatpush.bf16.xpose.msra.mxu0 %v3084
  %3094 = vmatmul.bf16.gmra.mxu0 %v3081
  %v3095 = vpop.f32.mrf.mxu0
  %v3096 = vadd.f32 0.0, %v3095
  %v3097 = vpop.f32.mrf.mxu0
  %3098 = vdwg.mxu0
  %v3100 = vsel %vm265, %v3075, 0
  %v3103 = vsel %vm265, %v3077, 0
  %3105 = vmatpush.bf16.xpose.msra.mxu0 0
  %3106 = vmatpush.bf16.xpose.msra.mxu0 0
  %3107 = vmatpush.bf16.xpose.msra.mxu0 0
  %3108 = vmatpush.bf16.xpose.msra.mxu0 0
  %3109 = vmatpush.bf16.xpose.msra.mxu0 0
  %3110 = vmatpush.bf16.xpose.msra.mxu0 0
  %3111 = vmatpush.bf16.xpose.msra.mxu0 0
  %3112 = vmatpush.bf16.xpose.msra.mxu0 %v3103
  %3113 = vmatmul.bf16.gmra.mxu0 %v3100
  %v3114 = vpop.f32.mrf.mxu0
  %v3115 = vadd.f32 0.0, %v3114
  %v3116 = vpop.f32.mrf.mxu0
  %3117 = vdwg.mxu0
  %vm3118 = vcmask 57344
  %v3119 = vsel %vm3118, %v3096, -inf
  %3120 = vmax.xlane.f32.xlu0 %v3119
  %v3121 = vpop.xlane.xlu0 %3120
  %v3122 = vsel %vm3118, %v3115, -inf
  %3123 = vmax.xlane.f32.xlu0 %v3122
  %v3124 = vpop.xlane.xlu0 %3123
  %v3125 = vsub.f32 %v3096, %v3121
  %v3126 = vsub.f32 %v3115, %v3124
  %v3127 = vmul.f32 %v3125, 1.442695
  %v3128 = vpow.pop %v3127
  %v3129 = vmul.f32 %v3126, 1.442695
  %v3130 = vpow.pop %v3129
  %v3131 = vsel %vm3118, %v3128, 0.0
  %3132 = vadd.xlane.f32.xlu0 %v3131
  %v3133 = vpop.xlane.xlu0 %3132
  %v3134 = vsel %vm3118, %v3130, 0.0
  %3135 = vadd.xlane.f32.xlu0 %v3134
  %v3136 = vpop.xlane.xlu0 %3135
  %v3137 = vrcp.pop %v3133
  %v3138 = vrcp.pop %v3136
  %v3139 = vmul.f32 %v3128, %v3137
  %v3140 = vmul.f32 %v3130, %v3138
  %v3141 = vpack.c.bf16 %v3139, %v3139
  %v3142 = vpack.c.bf16 %v3140, %v3140
  %v3144 = vsel %vm304, %v3141, 0
  %v3147 = vsel %vm332, %v3078, 0
  %3149 = vmatpush.bf16.msra.mxu0 0
  %3150 = vmatpush.bf16.msra.mxu0 0
  %3151 = vmatpush.bf16.msra.mxu0 0
  %3152 = vmatpush.bf16.msra.mxu0 0
  %3153 = vmatpush.bf16.msra.mxu0 0
  %3154 = vmatpush.bf16.msra.mxu0 0
  %3155 = vmatpush.bf16.msra.mxu0 0
  %3156 = vmatpush.bf16.msra.mxu0 %v3147
  %3157 = vmatmul.bf16.gmra.mxu0 %v3144
  %v3158 = vpop.f32.mrf.mxu0
  %v3159 = vadd.f32 0.0, %v3158
  %v3160 = vpop.f32.mrf.mxu0
  %3161 = vdwg.mxu0
  %v3163 = vsel %vm304, %v3142, 0
  %v3166 = vsel %vm332, %v3079, 0
  %3168 = vmatpush.bf16.msra.mxu0 0
  %3169 = vmatpush.bf16.msra.mxu0 0
  %3170 = vmatpush.bf16.msra.mxu0 0
  %3171 = vmatpush.bf16.msra.mxu0 0
  %3172 = vmatpush.bf16.msra.mxu0 0
  %3173 = vmatpush.bf16.msra.mxu0 0
  %3174 = vmatpush.bf16.msra.mxu0 0
  %3175 = vmatpush.bf16.msra.mxu0 %v3166
  %3176 = vmatmul.bf16.gmra.mxu0 %v3163
  %v3177 = vpop.f32.mrf.mxu0
  %v3178 = vadd.f32 0.0, %v3177
  %v3179 = vpop.f32.mrf.mxu0
  %3180 = vdwg.mxu0
  %v3182 = vunpack.c.l.b16 %v3074
  %v3183 = vpack.c.b16 %v3182, %v3182
  %3184 = vrot.lane.b32.xlu0 %v3183, 112
  %v3185 = vpop.permute.xlu0 %3184
  %v3187 = vunpack.c.l.b16 %v3076
  %v3188 = vpack.c.b16 %v3187, %v3187
  %3189 = vrot.lane.b32.xlu0 %v3188, 112
  %v3190 = vpop.permute.xlu0 %3189
  %v3192 = vsel %vm265, %v3185, 0
  %v3195 = vsel %vm265, %v3190, 0
  %3197 = vmatpush.bf16.xpose.msra.mxu0 0
  %3198 = vmatpush.bf16.xpose.msra.mxu0 0
  %3199 = vmatpush.bf16.xpose.msra.mxu0 0
  %3200 = vmatpush.bf16.xpose.msra.mxu0 0
  %3201 = vmatpush.bf16.xpose.msra.mxu0 0
  %3202 = vmatpush.bf16.xpose.msra.mxu0 0
  %3203 = vmatpush.bf16.xpose.msra.mxu0 0
  %3204 = vmatpush.bf16.xpose.msra.mxu0 %v3195
  %3205 = vmatmul.bf16.gmra.mxu0 %v3192
  %v3206 = vpop.f32.mrf.mxu0
  %v3207 = vadd.f32 0.0, %v3206
  %v3208 = vpop.f32.mrf.mxu0
  %3209 = vdwg.mxu0
  %v3211 = vunpack.c.l.b16 %v3075
  %v3212 = vpack.c.b16 %v3211, %v3211
  %3213 = vrot.lane.b32.xlu0 %v3212, 112
  %v3214 = vpop.permute.xlu0 %3213
  %v3216 = vunpack.c.l.b16 %v3077
  %v3217 = vpack.c.b16 %v3216, %v3216
  %3218 = vrot.lane.b32.xlu0 %v3217, 112
  %v3219 = vpop.permute.xlu0 %3218
  %v3221 = vsel %vm265, %v3214, 0
  %v3224 = vsel %vm265, %v3219, 0
  %3226 = vmatpush.bf16.xpose.msra.mxu0 0
  %3227 = vmatpush.bf16.xpose.msra.mxu0 0
  %3228 = vmatpush.bf16.xpose.msra.mxu0 0
  %3229 = vmatpush.bf16.xpose.msra.mxu0 0
  %3230 = vmatpush.bf16.xpose.msra.mxu0 0
  %3231 = vmatpush.bf16.xpose.msra.mxu0 0
  %3232 = vmatpush.bf16.xpose.msra.mxu0 0
  %3233 = vmatpush.bf16.xpose.msra.mxu0 %v3224
  %3234 = vmatmul.bf16.gmra.mxu0 %v3221
  %v3235 = vpop.f32.mrf.mxu0
  %v3236 = vadd.f32 0.0, %v3235
  %v3237 = vpop.f32.mrf.mxu0
  %3238 = vdwg.mxu0
  %v3239 = vsel %vm3118, %v3207, -inf
  %3240 = vmax.xlane.f32.xlu0 %v3239
  %v3241 = vpop.xlane.xlu0 %3240
  %v3242 = vsel %vm3118, %v3236, -inf
  %3243 = vmax.xlane.f32.xlu0 %v3242
  %v3244 = vpop.xlane.xlu0 %3243
  %v3245 = vsub.f32 %v3207, %v3241
  %v3246 = vsub.f32 %v3236, %v3244
  %v3247 = vmul.f32 %v3245, 1.442695
  %v3248 = vpow.pop %v3247
  %v3249 = vmul.f32 %v3246, 1.442695
  %v3250 = vpow.pop %v3249
  %v3251 = vsel %vm3118, %v3248, 0.0
  %3252 = vadd.xlane.f32.xlu0 %v3251
  %v3253 = vpop.xlane.xlu0 %3252
  %v3254 = vsel %vm3118, %v3250, 0.0
  %3255 = vadd.xlane.f32.xlu0 %v3254
  %v3256 = vpop.xlane.xlu0 %3255
  %v3257 = vrcp.pop %v3253
  %v3258 = vrcp.pop %v3256
  %v3259 = vmul.f32 %v3248, %v3257
  %v3260 = vmul.f32 %v3250, %v3258
  %v3261 = vpack.c.bf16 %v3259, %v3259
  %v3262 = vpack.c.bf16 %v3260, %v3260
  %v3264 = vunpack.c.l.b16 %v3078
  %v3265 = vpack.c.b16 %v3264, %v3264
  %3266 = vrot.lane.b32.xlu0 %v3265, 112
  %v3267 = vpop.permute.xlu0 %3266
  %v3269 = vsel %vm304, %v3261, 0
  %v3272 = vsel %vm332, %v3267, 0
  %3274 = vmatpush.bf16.msra.mxu0 0
  %3275 = vmatpush.bf16.msra.mxu0 0
  %3276 = vmatpush.bf16.msra.mxu0 0
  %3277 = vmatpush.bf16.msra.mxu0 0
  %3278 = vmatpush.bf16.msra.mxu0 0
  %3279 = vmatpush.bf16.msra.mxu0 0
  %3280 = vmatpush.bf16.msra.mxu0 0
  %3281 = vmatpush.bf16.msra.mxu0 %v3272
  %3282 = vmatmul.bf16.gmra.mxu0 %v3269
  %v3283 = vpop.f32.mrf.mxu0
  %v3284 = vadd.f32 0.0, %v3283
  %v3285 = vpop.f32.mrf.mxu0
  %3286 = vdwg.mxu0
  %v3288 = vunpack.c.l.b16 %v3079
  %v3289 = vpack.c.b16 %v3288, %v3288
  %3290 = vrot.lane.b32.xlu0 %v3289, 112
  %v3291 = vpop.permute.xlu0 %3290
  %v3293 = vsel %vm304, %v3262, 0
  %v3296 = vsel %vm332, %v3291, 0
  %3298 = vmatpush.bf16.msra.mxu0 0
  %3299 = vmatpush.bf16.msra.mxu0 0
  %3300 = vmatpush.bf16.msra.mxu0 0
  %3301 = vmatpush.bf16.msra.mxu0 0
  %3302 = vmatpush.bf16.msra.mxu0 0
  %3303 = vmatpush.bf16.msra.mxu0 0
  %3304 = vmatpush.bf16.msra.mxu0 0
  %3305 = vmatpush.bf16.msra.mxu0 %v3296
  %3306 = vmatmul.bf16.gmra.mxu0 %v3293
  %v3307 = vpop.f32.mrf.mxu0
  %v3308 = vadd.f32 0.0, %v3307
  %v3309 = vpop.f32.mrf.mxu0
  %3310 = vdwg.mxu0
  %3311 = vrot.lane.b32.xlu0 %v3183, 96
  %v3312 = vpop.permute.xlu0 %3311
  %3313 = vrot.lane.b32.xlu0 %v3188, 96
  %v3314 = vpop.permute.xlu0 %3313
  %v3316 = vsel %vm265, %v3312, 0
  %v3319 = vsel %vm265, %v3314, 0
  %3321 = vmatpush.bf16.xpose.msra.mxu0 0
  %3322 = vmatpush.bf16.xpose.msra.mxu0 0
  %3323 = vmatpush.bf16.xpose.msra.mxu0 0
  %3324 = vmatpush.bf16.xpose.msra.mxu0 0
  %3325 = vmatpush.bf16.xpose.msra.mxu0 0
  %3326 = vmatpush.bf16.xpose.msra.mxu0 0
  %3327 = vmatpush.bf16.xpose.msra.mxu0 0
  %3328 = vmatpush.bf16.xpose.msra.mxu0 %v3319
  %3329 = vmatmul.bf16.gmra.mxu0 %v3316
  %v3330 = vpop.f32.mrf.mxu0
  %v3331 = vadd.f32 0.0, %v3330
  %v3332 = vpop.f32.mrf.mxu0
  %3333 = vdwg.mxu0
  %3334 = vrot.lane.b32.xlu0 %v3212, 96
  %v3335 = vpop.permute.xlu0 %3334
  %3336 = vrot.lane.b32.xlu0 %v3217, 96
  %v3337 = vpop.permute.xlu0 %3336
  %v3339 = vsel %vm265, %v3335, 0
  %v3342 = vsel %vm265, %v3337, 0
  %3344 = vmatpush.bf16.xpose.msra.mxu0 0
  %3345 = vmatpush.bf16.xpose.msra.mxu0 0
  %3346 = vmatpush.bf16.xpose.msra.mxu0 0
  %3347 = vmatpush.bf16.xpose.msra.mxu0 0
  %3348 = vmatpush.bf16.xpose.msra.mxu0 0
  %3349 = vmatpush.bf16.xpose.msra.mxu0 0
  %3350 = vmatpush.bf16.xpose.msra.mxu0 0
  %3351 = vmatpush.bf16.xpose.msra.mxu0 %v3342
  %3352 = vmatmul.bf16.gmra.mxu0 %v3339
  %v3353 = vpop.f32.mrf.mxu0
  %v3354 = vadd.f32 0.0, %v3353
  %v3355 = vpop.f32.mrf.mxu0
  %3356 = vdwg.mxu0
  %v3357 = vsel %vm3118, %v3331, -inf
  %3358 = vmax.xlane.f32.xlu0 %v3357
  %v3359 = vpop.xlane.xlu0 %3358
  %v3360 = vsel %vm3118, %v3354, -inf
  %3361 = vmax.xlane.f32.xlu0 %v3360
  %v3362 = vpop.xlane.xlu0 %3361
  %v3363 = vsub.f32 %v3331, %v3359
  %v3364 = vsub.f32 %v3354, %v3362
  %v3365 = vmul.f32 %v3363, 1.442695
  %v3366 = vpow.pop %v3365
  %v3367 = vmul.f32 %v3364, 1.442695
  %v3368 = vpow.pop %v3367
  %v3369 = vsel %vm3118, %v3366, 0.0
  %3370 = vadd.xlane.f32.xlu0 %v3369
  %v3371 = vpop.xlane.xlu0 %3370
  %v3372 = vsel %vm3118, %v3368, 0.0
  %3373 = vadd.xlane.f32.xlu0 %v3372
  %v3374 = vpop.xlane.xlu0 %3373
  %v3375 = vrcp.pop %v3371
  %v3376 = vrcp.pop %v3374
  %v3377 = vmul.f32 %v3366, %v3375
  %v3378 = vmul.f32 %v3368, %v3376
  %v3379 = vpack.c.bf16 %v3377, %v3377
  %v3380 = vpack.c.bf16 %v3378, %v3378
  %3381 = vrot.lane.b32.xlu0 %v3265, 96
  %v3382 = vpop.permute.xlu0 %3381
  %v3384 = vsel %vm304, %v3379, 0
  %v3387 = vsel %vm332, %v3382, 0
  %3389 = vmatpush.bf16.msra.mxu0 0
  %3390 = vmatpush.bf16.msra.mxu0 0
  %3391 = vmatpush.bf16.msra.mxu0 0
  %3392 = vmatpush.bf16.msra.mxu0 0
  %3393 = vmatpush.bf16.msra.mxu0 0
  %3394 = vmatpush.bf16.msra.mxu0 0
  %3395 = vmatpush.bf16.msra.mxu0 0
  %3396 = vmatpush.bf16.msra.mxu0 %v3387
  %3397 = vmatmul.bf16.gmra.mxu0 %v3384
  %v3398 = vpop.f32.mrf.mxu0
  %v3399 = vadd.f32 0.0, %v3398
  %v3400 = vpop.f32.mrf.mxu0
  %3401 = vdwg.mxu0
  %3402 = vrot.lane.b32.xlu0 %v3289, 96
  %v3403 = vpop.permute.xlu0 %3402
  %v3405 = vsel %vm304, %v3380, 0
  %v3408 = vsel %vm332, %v3403, 0
  %3410 = vmatpush.bf16.msra.mxu0 0
  %3411 = vmatpush.bf16.msra.mxu0 0
  %3412 = vmatpush.bf16.msra.mxu0 0
  %3413 = vmatpush.bf16.msra.mxu0 0
  %3414 = vmatpush.bf16.msra.mxu0 0
  %3415 = vmatpush.bf16.msra.mxu0 0
  %3416 = vmatpush.bf16.msra.mxu0 0
  %3417 = vmatpush.bf16.msra.mxu0 %v3408
  %3418 = vmatmul.bf16.gmra.mxu0 %v3405
  %v3419 = vpop.f32.mrf.mxu0
  %v3420 = vadd.f32 0.0, %v3419
  %v3421 = vpop.f32.mrf.mxu0
  %3422 = vdwg.mxu0
  %3423 = vrot.lane.b32.xlu0 %v3183, 80
  %v3424 = vpop.permute.xlu0 %3423
  %3425 = vrot.lane.b32.xlu0 %v3188, 80
  %v3426 = vpop.permute.xlu0 %3425
  %v3428 = vsel %vm265, %v3424, 0
  %v3431 = vsel %vm265, %v3426, 0
  %3433 = vmatpush.bf16.xpose.msra.mxu0 0
  %3434 = vmatpush.bf16.xpose.msra.mxu0 0
  %3435 = vmatpush.bf16.xpose.msra.mxu0 0
  %3436 = vmatpush.bf16.xpose.msra.mxu0 0
  %3437 = vmatpush.bf16.xpose.msra.mxu0 0
  %3438 = vmatpush.bf16.xpose.msra.mxu0 0
  %3439 = vmatpush.bf16.xpose.msra.mxu0 0
  %3440 = vmatpush.bf16.xpose.msra.mxu0 %v3431
  %3441 = vmatmul.bf16.gmra.mxu0 %v3428
  %v3442 = vpop.f32.mrf.mxu0
  %v3443 = vadd.f32 0.0, %v3442
  %v3444 = vpop.f32.mrf.mxu0
  %3445 = vdwg.mxu0
  %3446 = vrot.lane.b32.xlu0 %v3212, 80
  %v3447 = vpop.permute.xlu0 %3446
  %3448 = vrot.lane.b32.xlu0 %v3217, 80
  %v3449 = vpop.permute.xlu0 %3448
  %v3451 = vsel %vm265, %v3447, 0
  %v3454 = vsel %vm265, %v3449, 0
  %3456 = vmatpush.bf16.xpose.msra.mxu0 0
  %3457 = vmatpush.bf16.xpose.msra.mxu0 0
  %3458 = vmatpush.bf16.xpose.msra.mxu0 0
  %3459 = vmatpush.bf16.xpose.msra.mxu0 0
  %3460 = vmatpush.bf16.xpose.msra.mxu0 0
  %3461 = vmatpush.bf16.xpose.msra.mxu0 0
  %3462 = vmatpush.bf16.xpose.msra.mxu0 0
  %3463 = vmatpush.bf16.xpose.msra.mxu0 %v3454
  %3464 = vmatmul.bf16.gmra.mxu0 %v3451
  %v3465 = vpop.f32.mrf.mxu0
  %v3466 = vadd.f32 0.0, %v3465
  %v3467 = vpop.f32.mrf.mxu0
  %3468 = vdwg.mxu0
  %v3469 = vsel %vm3118, %v3443, -inf
  %3470 = vmax.xlane.f32.xlu0 %v3469
  %v3471 = vpop.xlane.xlu0 %3470
  %v3472 = vsel %vm3118, %v3466, -inf
  %3473 = vmax.xlane.f32.xlu0 %v3472
  %v3474 = vpop.xlane.xlu0 %3473
  %v3475 = vsub.f32 %v3443, %v3471
  %v3476 = vsub.f32 %v3466, %v3474
  %v3477 = vmul.f32 %v3475, 1.442695
  %v3478 = vpow.pop %v3477
  %v3479 = vmul.f32 %v3476, 1.442695
  %v3480 = vpow.pop %v3479
  %v3481 = vsel %vm3118, %v3478, 0.0
  %3482 = vadd.xlane.f32.xlu0 %v3481
  %v3483 = vpop.xlane.xlu0 %3482
  %v3484 = vsel %vm3118, %v3480, 0.0
  %3485 = vadd.xlane.f32.xlu0 %v3484
  %v3486 = vpop.xlane.xlu0 %3485
  %v3487 = vrcp.pop %v3483
  %v3488 = vrcp.pop %v3486
  %v3489 = vmul.f32 %v3478, %v3487
  %v3490 = vmul.f32 %v3480, %v3488
  %v3491 = vpack.c.bf16 %v3489, %v3489
  %v3492 = vpack.c.bf16 %v3490, %v3490
  %3493 = vrot.lane.b32.xlu0 %v3265, 80
  %v3494 = vpop.permute.xlu0 %3493
  %v3496 = vsel %vm304, %v3491, 0
  %v3499 = vsel %vm332, %v3494, 0
  %3501 = vmatpush.bf16.msra.mxu0 0
  %3502 = vmatpush.bf16.msra.mxu0 0
  %3503 = vmatpush.bf16.msra.mxu0 0
  %3504 = vmatpush.bf16.msra.mxu0 0
  %3505 = vmatpush.bf16.msra.mxu0 0
  %3506 = vmatpush.bf16.msra.mxu0 0
  %3507 = vmatpush.bf16.msra.mxu0 0
  %3508 = vmatpush.bf16.msra.mxu0 %v3499
  %3509 = vmatmul.bf16.gmra.mxu0 %v3496
  %v3510 = vpop.f32.mrf.mxu0
  %v3511 = vadd.f32 0.0, %v3510
  %v3512 = vpop.f32.mrf.mxu0
  %3513 = vdwg.mxu0
  %3514 = vrot.lane.b32.xlu0 %v3289, 80
  %v3515 = vpop.permute.xlu0 %3514
  %v3517 = vsel %vm304, %v3492, 0
  %v3520 = vsel %vm332, %v3515, 0
  %3522 = vmatpush.bf16.msra.mxu0 0
  %3523 = vmatpush.bf16.msra.mxu0 0
  %3524 = vmatpush.bf16.msra.mxu0 0
  %3525 = vmatpush.bf16.msra.mxu0 0
  %3526 = vmatpush.bf16.msra.mxu0 0
  %3527 = vmatpush.bf16.msra.mxu0 0
  %3528 = vmatpush.bf16.msra.mxu0 0
  %3529 = vmatpush.bf16.msra.mxu0 %v3520
  %3530 = vmatmul.bf16.gmra.mxu0 %v3517
  %v3531 = vpop.f32.mrf.mxu0
  %v3532 = vadd.f32 0.0, %v3531
  %v3533 = vpop.f32.mrf.mxu0
  %3534 = vdwg.mxu0
  %3537 = vrot.lane.b32.xlu0 %v3284, 16
  %v3538 = vpop.permute.xlu0 %3537
  %3539 = vrot.lane.b32.xlu0 %v3308, 16
  %v3540 = vpop.permute.xlu0 %3539
  %3545 = vrot.lane.b32.xlu0 %v3399, 32
  %v3546 = vpop.permute.xlu0 %3545
  %3547 = vrot.lane.b32.xlu0 %v3420, 32
  %v3548 = vpop.permute.xlu0 %3547
  %3553 = vrot.lane.b32.xlu0 %v3511, 48
  %v3554 = vpop.permute.xlu0 %3553
  %3555 = vrot.lane.b32.xlu0 %v3532, 48
  %v3556 = vpop.permute.xlu0 %3555
  %v3559 = vsel %vm265, %v3159, %v3538
  %v3560 = vsel %vm265, %v3178, %v3540
  %v3561 = vsel %vm748, %v3559, %v3546
  %v3562 = vsel %vm748, %v3560, %v3548
  %v3563 = vsel %vm751, %v3561, %v3554
  %v3564 = vsel %vm751, %v3562, %v3556
  %v3565 = vpack.c.bf16 %v3563, %v3563
  %v3566 = vpack.c.bf16 %v3564, %v3564
  %s3567 = scalar_lea.vmem %s10, 32
  %v3568 = vld [vmem:[%s3567] sm:$0xf]
  %v3569 = vld [vmem:[%s3567 + $0x4] sm:$0xf]
  %v3570 = vld [vmem:[%s3567 + $0x8] sm:$0xf]
  %v3571 = vld [vmem:[%s3567 + $0xc] sm:$0xf]
  %v3572 = vld [vmem:[%s3567 + $0x10] sm:$0xf]
  %v3573 = vld [vmem:[%s3567 + $0x14] sm:$0xf]
  %v3574 = vld [vmem:[%s3567 + $0x18] sm:$0xf]
  %v3575 = vld [vmem:[%s3567 + $0x1c] sm:$0xf]
  %s3576 = scalar_lea.vmem %s11, 1
  %v3577 = vld [vmem:[%s3576] sm:$0x1]
  %v3579 = vperm.slane %v3577, 0
  %v3583 = vunpack.c.l.b16 %v3565
  %v3584 = vunpack.c.l.b16 %v3566
  %v3585 = vrot.slane %v3584, 7
  %v3586 = vsel %vm2921, %v3585, %v3583
  %v3587 = vpack.c.b16 %v3586, %v3586
  %v3596 = vunpack.c.l.b16 %v3568
  %v3597 = vunpack.c.l.b16 %v3569
  %v3598 = vunpack.c.l.b16 %v3570
  %v3599 = vunpack.c.l.b16 %v3571
  %v3600 = vunpack.c.l.b16 %v3572
  %v3601 = vunpack.c.l.b16 %v3573
  %v3602 = vunpack.c.l.b16 %v3574
  %v3603 = vunpack.c.l.b16 %v3575
  %v3604 = vpack.c.b16 %v3597, %v3596
  %v3605 = vpack.c.b16 %v3599, %v3598
  %v3606 = vpack.c.b16 %v3601, %v3600
  %v3607 = vpack.c.b16 %v3603, %v3602
  %v3613 = vsel %vm141, %v3587, 0
  %3615 = vmatpush.bf16.msra.mxu0 0
  %3616 = vmatpush.bf16.msra.mxu0 0
  %3617 = vmatpush.bf16.msra.mxu0 0
  %3618 = vmatpush.bf16.msra.mxu0 0
  %3619 = vmatpush.bf16.msra.mxu0 %v3607
  %3620 = vmatpush.bf16.msra.mxu0 %v3606
  %3621 = vmatpush.bf16.msra.mxu0 %v3605
  %3622 = vmatpush.bf16.msra.mxu0 %v3604
  %3623 = vmatmul.bf16.gmra.mxu0 %v3613
  %v3624 = vpop.f32.mrf.mxu0
  %v3625 = vadd.f32 %v3579, %v3624
  %v3626 = vpop.f32.mrf.mxu0
  %3627 = vdwg.mxu0
  %v3629 = vrot.slane %v3625, 1
  %v3630 = vperm.slane %v3625, 0
  %v3631 = vperm.slane %v3629, 0
  %v3634 = vadd.f32 %v2896, %v3630
  %v3635 = vadd.f32 %v2897, %v3631
  %s3636 = scalar_lea.vmem %s16, 1
  %v3637 = vld [vmem:[%s3636] sm:$0x1]
  %s3638 = scalar_lea.vmem %s17, 1
  %v3639 = vld [vmem:[%s3638] sm:$0x1]
  %vm3640 = vcmask 523271
  %v3641 = vsel %vm3640, %v3634, 0.0
  %3642 = vadd.xlane.f32.xlu0 %v3641
  %v3643 = vpop.xlane.xlu0 %3642
  %v3644 = vsel %vm3640, %v3635, 0.0
  %3645 = vadd.xlane.f32.xlu0 %v3644
  %v3646 = vpop.xlane.xlu0 %3645
  %v3647 = vmul.f32 %v3643, %v824
  %v3648 = vmul.f32 %v3646, %v824
  %v3649 = vsub.f32 %v3634, %v3647
  %v3650 = vsub.f32 %v3635, %v3648
  %v3651 = vmul.f32 %v3649, %v3649
  %v3652 = vmul.f32 %v3650, %v3650
  %v3653 = vsel %vm3640, %v3651, 0.0
  %3654 = vadd.xlane.f32.xlu0 %v3653
  %v3655 = vpop.xlane.xlu0 %3654
  %v3656 = vsel %vm3640, %v3652, 0.0
  %3657 = vadd.xlane.f32.xlu0 %v3656
  %v3658 = vpop.xlane.xlu0 %3657
  %v3659 = vmul.f32 %v3655, %v824
  %v3660 = vmul.f32 %v3658, %v824
  %v3661 = vadd.f32 %v3659, 1e-05
  %v3662 = vadd.f32 %v3660, 1e-05
  %v3663 = vrsqrt.pop %v3661
  %v3664 = vmul.f32 %v3663, %v3661
  %v3665 = vmul.f32 %v3664, %v3663
  %v3666 = vmul.f32 0.5, %v3665
  %v3667 = vsub.f32 1.5, %v3666
  %v3668 = vmul.f32 %v3663, %v3667
  %vm3669 = vweird.f32 %v3661
  %vm3670 = vweird.f32 %v3663
  %vm3671 = vmor %vm3669, %vm3670
  %v3672 = vsel %vm3671, %v3663, %v3668
  %v3673 = vrsqrt.pop %v3662
  %v3674 = vmul.f32 %v3673, %v3662
  %v3675 = vmul.f32 %v3674, %v3673
  %v3676 = vmul.f32 0.5, %v3675
  %v3677 = vsub.f32 1.5, %v3676
  %v3678 = vmul.f32 %v3673, %v3677
  %vm3679 = vweird.f32 %v3662
  %vm3680 = vweird.f32 %v3673
  %vm3681 = vmor %vm3679, %vm3680
  %v3682 = vsel %vm3681, %v3673, %v3678
  %v3683 = vmul.f32 %v3649, %v3672
  %v3684 = vmul.f32 %v3650, %v3682
  %v3686 = vperm.slane %v3637, 0
  %v3688 = vmul.f32 %v3683, %v3686
  %v3689 = vmul.f32 %v3684, %v3686
  %v3691 = vperm.slane %v3639, 0
  %v3693 = vadd.f32 %v3688, %v3691
  %v3694 = vadd.f32 %v3689, %v3691
  %v3695 = vpack.c.bf16 %v3693, %v3693
  %v3696 = vpack.c.bf16 %v3694, %v3694
  %s3697 = scalar_lea.vmem %s12, 512
  %v3698 = vld [vmem:[%s3697] sm:$0xff]
  %v3699 = vld [vmem:[%s3697 + $0x8] sm:$0xff]
  %v3700 = vld [vmem:[%s3697 + $0x10] sm:$0xff]
  %v3701 = vld [vmem:[%s3697 + $0x18] sm:$0xff]
  %v3702 = vld [vmem:[%s3697 + $0x20] sm:$0xff]
  %v3703 = vld [vmem:[%s3697 + $0x28] sm:$0xff]
  %v3704 = vld [vmem:[%s3697 + $0x30] sm:$0xff]
  %v3705 = vld [vmem:[%s3697 + $0x38] sm:$0xff]
  %v3706 = vld [vmem:[%s3697 + $0x40] sm:$0xff]
  %v3707 = vld [vmem:[%s3697 + $0x48] sm:$0xff]
  %v3708 = vld [vmem:[%s3697 + $0x50] sm:$0xff]
  %v3709 = vld [vmem:[%s3697 + $0x58] sm:$0xff]
  %v3710 = vld [vmem:[%s3697 + $0x60] sm:$0xff]
  %v3711 = vld [vmem:[%s3697 + $0x68] sm:$0xff]
  %v3712 = vld [vmem:[%s3697 + $0x70] sm:$0xff]
  %v3713 = vld [vmem:[%s3697 + $0x78] sm:$0xff]
  %s3714 = scalar_lea.vmem %s13, 16
  %v3715 = vld [vmem:[%s3714] sm:$0xf]
  %v3717 = vperm.slane %v3715, 0
  %v3718 = vperm.slane %v3715, 1
  %v3719 = vperm.slane %v3715, 2
  %v3720 = vperm.slane %v3715, 3
  %v3727 = vunpack.c.l.b16 %v3695
  %v3728 = vunpack.c.l.b16 %v3696
  %v3729 = vrot.slane %v3727, 7
  %v3730 = vrot.slane %v3728, 6
  %v3731 = vsel %vm2921, %v3730, %v3729
  %v3732 = vpack.c.b16 %v3731, %v3731
  %v3749 = vunpack.c.l.b16 %v3698
  %v3750 = vunpack.c.h.b16 %v3698
  %v3751 = vunpack.c.l.b16 %v3699
  %v3752 = vunpack.c.h.b16 %v3699
  %v3753 = vunpack.c.l.b16 %v3700
  %v3754 = vunpack.c.h.b16 %v3700
  %v3755 = vunpack.c.l.b16 %v3701
  %v3756 = vunpack.c.h.b16 %v3701
  %v3757 = vunpack.c.l.b16 %v3702
  %v3758 = vunpack.c.h.b16 %v3702
  %v3759 = vunpack.c.l.b16 %v3703
  %v3760 = vunpack.c.h.b16 %v3703
  %v3761 = vunpack.c.l.b16 %v3704
  %v3762 = vunpack.c.h.b16 %v3704
  %v3763 = vunpack.c.l.b16 %v3705
  %v3764 = vunpack.c.h.b16 %v3705
  %v3765 = vunpack.c.l.b16 %v3706
  %v3766 = vunpack.c.h.b16 %v3706
  %v3767 = vunpack.c.l.b16 %v3707
  %v3768 = vunpack.c.h.b16 %v3707
  %v3769 = vunpack.c.l.b16 %v3708
  %v3770 = vunpack.c.h.b16 %v3708
  %v3771 = vunpack.c.l.b16 %v3709
  %v3772 = vunpack.c.h.b16 %v3709
  %v3773 = vunpack.c.l.b16 %v3710
  %v3774 = vunpack.c.h.b16 %v3710
  %v3775 = vunpack.c.l.b16 %v3711
  %v3776 = vunpack.c.h.b16 %v3711
  %v3777 = vunpack.c.l.b16 %v3712
  %v3778 = vunpack.c.h.b16 %v3712
  %v3779 = vunpack.c.l.b16 %v3713
  %v3780 = vunpack.c.h.b16 %v3713
  %v3781 = vpack.c.b16 %v3753, %v3749
  %v3782 = vpack.c.b16 %v3754, %v3750
  %v3783 = vpack.c.b16 %v3755, %v3751
  %v3784 = vpack.c.b16 %v3756, %v3752
  %v3785 = vpack.c.b16 %v3761, %v3757
  %v3786 = vpack.c.b16 %v3762, %v3758
  %v3787 = vpack.c.b16 %v3763, %v3759
  %v3788 = vpack.c.b16 %v3764, %v3760
  %v3789 = vpack.c.b16 %v3769, %v3765
  %v3790 = vpack.c.b16 %v3770, %v3766
  %v3791 = vpack.c.b16 %v3771, %v3767
  %v3792 = vpack.c.b16 %v3772, %v3768
  %v3793 = vpack.c.b16 %v3777, %v3773
  %v3794 = vpack.c.b16 %v3778, %v3774
  %v3795 = vpack.c.b16 %v3779, %v3775
  %v3796 = vpack.c.b16 %v3780, %v3776
  %v3814 = vsel %vm141, %v3732, 0
  %3816 = vmatpush.bf16.msra.mxu0 0
  %3817 = vmatpush.bf16.msra.mxu0 0
  %3818 = vmatpush.bf16.msra.mxu0 0
  %3819 = vmatpush.bf16.msra.mxu0 0
  %3820 = vmatpush.bf16.msra.mxu0 %v3793
  %3821 = vmatpush.bf16.msra.mxu0 %v3789
  %3822 = vmatpush.bf16.msra.mxu0 %v3785
  %3823 = vmatpush.bf16.msra.mxu0 %v3781
  %3824 = vmatmul.bf16.gmra.mxu0 %v3814
  %v3825 = vpop.f32.mrf.mxu0
  %v3826 = vadd.f32 %v3717, %v3825
  %v3827 = vpop.f32.mrf.mxu0
  %3828 = vdwg.mxu0
  %3829 = vmatpush.bf16.msra.mxu0 0
  %3830 = vmatpush.bf16.msra.mxu0 0
  %3831 = vmatpush.bf16.msra.mxu0 0
  %3832 = vmatpush.bf16.msra.mxu0 0
  %3833 = vmatpush.bf16.msra.mxu0 %v3794
  %3834 = vmatpush.bf16.msra.mxu0 %v3790
  %3835 = vmatpush.bf16.msra.mxu0 %v3786
  %3836 = vmatpush.bf16.msra.mxu0 %v3782
  %3837 = vmatmul.bf16.gmra.mxu0 %v3814
  %v3838 = vpop.f32.mrf.mxu0
  %v3839 = vadd.f32 %v3718, %v3838
  %v3840 = vpop.f32.mrf.mxu0
  %3841 = vdwg.mxu0
  %3842 = vmatpush.bf16.msra.mxu0 0
  %3843 = vmatpush.bf16.msra.mxu0 0
  %3844 = vmatpush.bf16.msra.mxu0 0
  %3845 = vmatpush.bf16.msra.mxu0 0
  %3846 = vmatpush.bf16.msra.mxu0 %v3795
  %3847 = vmatpush.bf16.msra.mxu0 %v3791
  %3848 = vmatpush.bf16.msra.mxu0 %v3787
  %3849 = vmatpush.bf16.msra.mxu0 %v3783
  %3850 = vmatmul.bf16.gmra.mxu0 %v3814
  %v3851 = vpop.f32.mrf.mxu0
  %v3852 = vadd.f32 %v3719, %v3851
  %v3853 = vpop.f32.mrf.mxu0
  %3854 = vdwg.mxu0
  %3855 = vmatpush.bf16.msra.mxu0 0
  %3856 = vmatpush.bf16.msra.mxu0 0
  %3857 = vmatpush.bf16.msra.mxu0 0
  %3858 = vmatpush.bf16.msra.mxu0 0
  %3859 = vmatpush.bf16.msra.mxu0 %v3796
  %3860 = vmatpush.bf16.msra.mxu0 %v3792
  %3861 = vmatpush.bf16.msra.mxu0 %v3788
  %3862 = vmatpush.bf16.msra.mxu0 %v3784
  %3863 = vmatmul.bf16.gmra.mxu0 %v3814
  %v3864 = vpop.f32.mrf.mxu0
  %v3865 = vadd.f32 %v3720, %v3864
  %v3866 = vpop.f32.mrf.mxu0
  %3867 = vdwg.mxu0
  %v3868 = vmax.f32 %v3826, 0.0
  %v3869 = vmax.f32 %v3839, 0.0
  %v3870 = vmax.f32 %v3852, 0.0
  %v3871 = vmax.f32 %v3865, 0.0
  %v3872 = vpack.c.bf16 %v3868, %v3868
  %v3873 = vpack.c.bf16 %v3869, %v3869
  %v3874 = vpack.c.bf16 %v3870, %v3870
  %v3875 = vpack.c.bf16 %v3871, %v3871
  %s3876 = scalar_lea.vmem %s14, 1024
  %v3877 = vld [vmem:[%s3876] sm:$0xf]
  %v3878 = vld [vmem:[%s3876 + $0x4] sm:$0xf]
  %v3879 = vld [vmem:[%s3876 + $0x8] sm:$0xf]
  %v3880 = vld [vmem:[%s3876 + $0xc] sm:$0xf]
  %v3881 = vld [vmem:[%s3876 + $0x10] sm:$0xf]
  %v3882 = vld [vmem:[%s3876 + $0x14] sm:$0xf]
  %v3883 = vld [vmem:[%s3876 + $0x18] sm:$0xf]
  %v3884 = vld [vmem:[%s3876 + $0x1c] sm:$0xf]
  %v3885 = vld [vmem:[%s3876 + $0x20] sm:$0xf]
  %v3886 = vld [vmem:[%s3876 + $0x24] sm:$0xf]
  %v3887 = vld [vmem:[%s3876 + $0x28] sm:$0xf]
  %v3888 = vld [vmem:[%s3876 + $0x2c] sm:$0xf]
  %v3889 = vld [vmem:[%s3876 + $0x30] sm:$0xf]
  %v3890 = vld [vmem:[%s3876 + $0x34] sm:$0xf]
  %v3891 = vld [vmem:[%s3876 + $0x38] sm:$0xf]
  %v3892 = vld [vmem:[%s3876 + $0x3c] sm:$0xf]
  %v3893 = vld [vmem:[%s3876 + $0x40] sm:$0xf]
  %v3894 = vld [vmem:[%s3876 + $0x44] sm:$0xf]
  %v3895 = vld [vmem:[%s3876 + $0x48] sm:$0xf]
  %v3896 = vld [vmem:[%s3876 + $0x4c] sm:$0xf]
  %v3897 = vld [vmem:[%s3876 + $0x50] sm:$0xf]
  %v3898 = vld [vmem:[%s3876 + $0x54] sm:$0xf]
  %v3899 = vld [vmem:[%s3876 + $0x58] sm:$0xf]
  %v3900 = vld [vmem:[%s3876 + $0x5c] sm:$0xf]
  %v3901 = vld [vmem:[%s3876 + $0x60] sm:$0xf]
  %v3902 = vld [vmem:[%s3876 + $0x64] sm:$0xf]
  %v3903 = vld [vmem:[%s3876 + $0x68] sm:$0xf]
  %v3904 = vld [vmem:[%s3876 + $0x6c] sm:$0xf]
  %v3905 = vld [vmem:[%s3876 + $0x70] sm:$0xf]
  %v3906 = vld [vmem:[%s3876 + $0x74] sm:$0xf]
  %v3907 = vld [vmem:[%s3876 + $0x78] sm:$0xf]
  %v3908 = vld [vmem:[%s3876 + $0x7c] sm:$0xf]
  %v3909 = vld [vmem:[%s3876 + $0x80] sm:$0xf]
  %v3910 = vld [vmem:[%s3876 + $0x84] sm:$0xf]
  %v3911 = vld [vmem:[%s3876 + $0x88] sm:$0xf]
  %v3912 = vld [vmem:[%s3876 + $0x8c] sm:$0xf]
  %v3913 = vld [vmem:[%s3876 + $0x90] sm:$0xf]
  %v3914 = vld [vmem:[%s3876 + $0x94] sm:$0xf]
  %v3915 = vld [vmem:[%s3876 + $0x98] sm:$0xf]
  %v3916 = vld [vmem:[%s3876 + $0x9c] sm:$0xf]
  %v3917 = vld [vmem:[%s3876 + $0xa0] sm:$0xf]
  %v3918 = vld [vmem:[%s3876 + $0xa4] sm:$0xf]
  %v3919 = vld [vmem:[%s3876 + $0xa8] sm:$0xf]
  %v3920 = vld [vmem:[%s3876 + $0xac] sm:$0xf]
  %v3921 = vld [vmem:[%s3876 + $0xb0] sm:$0xf]
  %v3922 = vld [vmem:[%s3876 + $0xb4] sm:$0xf]
  %v3923 = vld [vmem:[%s3876 + $0xb8] sm:$0xf]
  %v3924 = vld [vmem:[%s3876 + $0xbc] sm:$0xf]
  %v3925 = vld [vmem:[%s3876 + $0xc0] sm:$0xf]
  %v3926 = vld [vmem:[%s3876 + $0xc4] sm:$0xf]
  %v3927 = vld [vmem:[%s3876 + $0xc8] sm:$0xf]
  %v3928 = vld [vmem:[%s3876 + $0xcc] sm:$0xf]
  %v3929 = vld [vmem:[%s3876 + $0xd0] sm:$0xf]
  %v3930 = vld [vmem:[%s3876 + $0xd4] sm:$0xf]
  %v3931 = vld [vmem:[%s3876 + $0xd8] sm:$0xf]
  %v3932 = vld [vmem:[%s3876 + $0xdc] sm:$0xf]
  %v3933 = vld [vmem:[%s3876 + $0xe0] sm:$0xf]
  %v3934 = vld [vmem:[%s3876 + $0xe4] sm:$0xf]
  %v3935 = vld [vmem:[%s3876 + $0xe8] sm:$0xf]
  %v3936 = vld [vmem:[%s3876 + $0xec] sm:$0xf]
  %v3937 = vld [vmem:[%s3876 + $0xf0] sm:$0xf]
  %v3938 = vld [vmem:[%s3876 + $0xf4] sm:$0xf]
  %v3939 = vld [vmem:[%s3876 + $0xf8] sm:$0xf]
  %v3940 = vld [vmem:[%s3876 + $0xfc] sm:$0xf]
  %s3941 = scalar_lea.vmem %s12, 640
  %v3942 = vld [vmem:[%s3941] sm:$0xff]
  %v3943 = vld [vmem:[%s3941 + $0x8] sm:$0xff]
  %v3944 = vld [vmem:[%s3941 + $0x10] sm:$0xff]
  %v3945 = vld [vmem:[%s3941 + $0x18] sm:$0xff]
  %v3946 = vld [vmem:[%s3941 + $0x20] sm:$0xff]
  %v3947 = vld [vmem:[%s3941 + $0x28] sm:$0xff]
  %v3948 = vld [vmem:[%s3941 + $0x30] sm:$0xff]
  %v3949 = vld [vmem:[%s3941 + $0x38] sm:$0xff]
  %v3950 = vld [vmem:[%s3941 + $0x40] sm:$0xff]
  %v3951 = vld [vmem:[%s3941 + $0x48] sm:$0xff]
  %v3952 = vld [vmem:[%s3941 + $0x50] sm:$0xff]
  %v3953 = vld [vmem:[%s3941 + $0x58] sm:$0xff]
  %v3954 = vld [vmem:[%s3941 + $0x60] sm:$0xff]
  %v3955 = vld [vmem:[%s3941 + $0x68] sm:$0xff]
  %v3956 = vld [vmem:[%s3941 + $0x70] sm:$0xff]
  %v3957 = vld [vmem:[%s3941 + $0x78] sm:$0xff]
  %s3958 = scalar_lea.vmem %s13, 20
  %v3959 = vld [vmem:[%s3958] sm:$0xf]
  %v3961 = vperm.slane %v3959, 0
  %v3962 = vperm.slane %v3959, 1
  %v3963 = vperm.slane %v3959, 2
  %v3964 = vperm.slane %v3959, 3
  %v3985 = vunpack.c.l.b16 %v3942
  %v3986 = vunpack.c.h.b16 %v3942
  %v3987 = vunpack.c.l.b16 %v3943
  %v3988 = vunpack.c.h.b16 %v3943
  %v3989 = vunpack.c.l.b16 %v3944
  %v3990 = vunpack.c.h.b16 %v3944
  %v3991 = vunpack.c.l.b16 %v3945
  %v3992 = vunpack.c.h.b16 %v3945
  %v3993 = vunpack.c.l.b16 %v3946
  %v3994 = vunpack.c.h.b16 %v3946
  %v3995 = vunpack.c.l.b16 %v3947
  %v3996 = vunpack.c.h.b16 %v3947
  %v3997 = vunpack.c.l.b16 %v3948
  %v3998 = vunpack.c.h.b16 %v3948
  %v3999 = vunpack.c.l.b16 %v3949
  %v4000 = vunpack.c.h.b16 %v3949
  %v4001 = vunpack.c.l.b16 %v3950
  %v4002 = vunpack.c.h.b16 %v3950
  %v4003 = vunpack.c.l.b16 %v3951
  %v4004 = vunpack.c.h.b16 %v3951
  %v4005 = vunpack.c.l.b16 %v3952
  %v4006 = vunpack.c.h.b16 %v3952
  %v4007 = vunpack.c.l.b16 %v3953
  %v4008 = vunpack.c.h.b16 %v3953
  %v4009 = vunpack.c.l.b16 %v3954
  %v4010 = vunpack.c.h.b16 %v3954
  %v4011 = vunpack.c.l.b16 %v3955
  %v4012 = vunpack.c.h.b16 %v3955
  %v4013 = vunpack.c.l.b16 %v3956
  %v4014 = vunpack.c.h.b16 %v3956
  %v4015 = vunpack.c.l.b16 %v3957
  %v4016 = vunpack.c.h.b16 %v3957
  %v4017 = vpack.c.b16 %v3989, %v3985
  %v4018 = vpack.c.b16 %v3990, %v3986
  %v4019 = vpack.c.b16 %v3991, %v3987
  %v4020 = vpack.c.b16 %v3992, %v3988
  %v4021 = vpack.c.b16 %v3997, %v3993
  %v4022 = vpack.c.b16 %v3998, %v3994
  %v4023 = vpack.c.b16 %v3999, %v3995
  %v4024 = vpack.c.b16 %v4000, %v3996
  %v4025 = vpack.c.b16 %v4005, %v4001
  %v4026 = vpack.c.b16 %v4006, %v4002
  %v4027 = vpack.c.b16 %v4007, %v4003
  %v4028 = vpack.c.b16 %v4008, %v4004
  %v4029 = vpack.c.b16 %v4013, %v4009
  %v4030 = vpack.c.b16 %v4014, %v4010
  %v4031 = vpack.c.b16 %v4015, %v4011
  %v4032 = vpack.c.b16 %v4016, %v4012
  %4049 = vmatpush.bf16.msra.mxu0 0
  %4050 = vmatpush.bf16.msra.mxu0 0
  %4051 = vmatpush.bf16.msra.mxu0 0
  %4052 = vmatpush.bf16.msra.mxu0 0
  %4053 = vmatpush.bf16.msra.mxu0 %v4029
  %4054 = vmatpush.bf16.msra.mxu0 %v4025
  %4055 = vmatpush.bf16.msra.mxu0 %v4021
  %4056 = vmatpush.bf16.msra.mxu0 %v4017
  %4057 = vmatmul.bf16.gmra.mxu0 %v3814
  %v4058 = vpop.f32.mrf.mxu0
  %v4059 = vadd.f32 %v3961, %v4058
  %v4060 = vpop.f32.mrf.mxu0
  %4061 = vdwg.mxu0
  %4062 = vmatpush.bf16.msra.mxu0 0
  %4063 = vmatpush.bf16.msra.mxu0 0
  %4064 = vmatpush.bf16.msra.mxu0 0
  %4065 = vmatpush.bf16.msra.mxu0 0
  %4066 = vmatpush.bf16.msra.mxu0 %v4030
  %4067 = vmatpush.bf16.msra.mxu0 %v4026
  %4068 = vmatpush.bf16.msra.mxu0 %v4022
  %4069 = vmatpush.bf16.msra.mxu0 %v4018
  %4070 = vmatmul.bf16.gmra.mxu0 %v3814
  %v4071 = vpop.f32.mrf.mxu0
  %v4072 = vadd.f32 %v3962, %v4071
  %v4073 = vpop.f32.mrf.mxu0
  %4074 = vdwg.mxu0
  %4075 = vmatpush.bf16.msra.mxu0 0
  %4076 = vmatpush.bf16.msra.mxu0 0
  %4077 = vmatpush.bf16.msra.mxu0 0
  %4078 = vmatpush.bf16.msra.mxu0 0
  %4079 = vmatpush.bf16.msra.mxu0 %v4031
  %4080 = vmatpush.bf16.msra.mxu0 %v4027
  %4081 = vmatpush.bf16.msra.mxu0 %v4023
  %4082 = vmatpush.bf16.msra.mxu0 %v4019
  %4083 = vmatmul.bf16.gmra.mxu0 %v3814
  %v4084 = vpop.f32.mrf.mxu0
  %v4085 = vadd.f32 %v3963, %v4084
  %v4086 = vpop.f32.mrf.mxu0
  %4087 = vdwg.mxu0
  %4088 = vmatpush.bf16.msra.mxu0 0
  %4089 = vmatpush.bf16.msra.mxu0 0
  %4090 = vmatpush.bf16.msra.mxu0 0
  %4091 = vmatpush.bf16.msra.mxu0 0
  %4092 = vmatpush.bf16.msra.mxu0 %v4032
  %4093 = vmatpush.bf16.msra.mxu0 %v4028
  %4094 = vmatpush.bf16.msra.mxu0 %v4024
  %4095 = vmatpush.bf16.msra.mxu0 %v4020
  %4096 = vmatmul.bf16.gmra.mxu0 %v3814
  %v4097 = vpop.f32.mrf.mxu0
  %v4098 = vadd.f32 %v3964, %v4097
  %v4099 = vpop.f32.mrf.mxu0
  %4100 = vdwg.mxu0
  %v4101 = vmax.f32 %v4059, 0.0
  %v4102 = vmax.f32 %v4072, 0.0
  %v4103 = vmax.f32 %v4085, 0.0
  %v4104 = vmax.f32 %v4098, 0.0
  %v4105 = vpack.c.bf16 %v4101, %v4101
  %v4106 = vpack.c.bf16 %v4102, %v4102
  %v4107 = vpack.c.bf16 %v4103, %v4103
  %v4108 = vpack.c.bf16 %v4104, %v4104
  %s4109 = scalar_lea.vmem %s14, 1280
  %v4110 = vld [vmem:[%s4109] sm:$0xf]
  %v4111 = vld [vmem:[%s4109 + $0x4] sm:$0xf]
  %v4112 = vld [vmem:[%s4109 + $0x8] sm:$0xf]
  %v4113 = vld [vmem:[%s4109 + $0xc] sm:$0xf]
  %v4114 = vld [vmem:[%s4109 + $0x10] sm:$0xf]
  %v4115 = vld [vmem:[%s4109 + $0x14] sm:$0xf]
  %v4116 = vld [vmem:[%s4109 + $0x18] sm:$0xf]
  %v4117 = vld [vmem:[%s4109 + $0x1c] sm:$0xf]
  %v4118 = vld [vmem:[%s4109 + $0x20] sm:$0xf]
  %v4119 = vld [vmem:[%s4109 + $0x24] sm:$0xf]
  %v4120 = vld [vmem:[%s4109 + $0x28] sm:$0xf]
  %v4121 = vld [vmem:[%s4109 + $0x2c] sm:$0xf]
  %v4122 = vld [vmem:[%s4109 + $0x30] sm:$0xf]
  %v4123 = vld [vmem:[%s4109 + $0x34] sm:$0xf]
  %v4124 = vld [vmem:[%s4109 + $0x38] sm:$0xf]
  %v4125 = vld [vmem:[%s4109 + $0x3c] sm:$0xf]
  %v4126 = vld [vmem:[%s4109 + $0x40] sm:$0xf]
  %v4127 = vld [vmem:[%s4109 + $0x44] sm:$0xf]
  %v4128 = vld [vmem:[%s4109 + $0x48] sm:$0xf]
  %v4129 = vld [vmem:[%s4109 + $0x4c] sm:$0xf]
  %v4130 = vld [vmem:[%s4109 + $0x50] sm:$0xf]
  %v4131 = vld [vmem:[%s4109 + $0x54] sm:$0xf]
  %v4132 = vld [vmem:[%s4109 + $0x58] sm:$0xf]
  %v4133 = vld [vmem:[%s4109 + $0x5c] sm:$0xf]
  %v4134 = vld [vmem:[%s4109 + $0x60] sm:$0xf]
  %v4135 = vld [vmem:[%s4109 + $0x64] sm:$0xf]
  %v4136 = vld [vmem:[%s4109 + $0x68] sm:$0xf]
  %v4137 = vld [vmem:[%s4109 + $0x6c] sm:$0xf]
  %v4138 = vld [vmem:[%s4109 + $0x70] sm:$0xf]
  %v4139 = vld [vmem:[%s4109 + $0x74] sm:$0xf]
  %v4140 = vld [vmem:[%s4109 + $0x78] sm:$0xf]
  %v4141 = vld [vmem:[%s4109 + $0x7c] sm:$0xf]
  %v4142 = vld [vmem:[%s4109 + $0x80] sm:$0xf]
  %v4143 = vld [vmem:[%s4109 + $0x84] sm:$0xf]
  %v4144 = vld [vmem:[%s4109 + $0x88] sm:$0xf]
  %v4145 = vld [vmem:[%s4109 + $0x8c] sm:$0xf]
  %v4146 = vld [vmem:[%s4109 + $0x90] sm:$0xf]
  %v4147 = vld [vmem:[%s4109 + $0x94] sm:$0xf]
  %v4148 = vld [vmem:[%s4109 + $0x98] sm:$0xf]
  %v4149 = vld [vmem:[%s4109 + $0x9c] sm:$0xf]
  %v4150 = vld [vmem:[%s4109 + $0xa0] sm:$0xf]
  %v4151 = vld [vmem:[%s4109 + $0xa4] sm:$0xf]
  %v4152 = vld [vmem:[%s4109 + $0xa8] sm:$0xf]
  %v4153 = vld [vmem:[%s4109 + $0xac] sm:$0xf]
  %v4154 = vld [vmem:[%s4109 + $0xb0] sm:$0xf]
  %v4155 = vld [vmem:[%s4109 + $0xb4] sm:$0xf]
  %v4156 = vld [vmem:[%s4109 + $0xb8] sm:$0xf]
  %v4157 = vld [vmem:[%s4109 + $0xbc] sm:$0xf]
  %v4158 = vld [vmem:[%s4109 + $0xc0] sm:$0xf]
  %v4159 = vld [vmem:[%s4109 + $0xc4] sm:$0xf]
  %v4160 = vld [vmem:[%s4109 + $0xc8] sm:$0xf]
  %v4161 = vld [vmem:[%s4109 + $0xcc] sm:$0xf]
  %v4162 = vld [vmem:[%s4109 + $0xd0] sm:$0xf]
  %v4163 = vld [vmem:[%s4109 + $0xd4] sm:$0xf]
  %v4164 = vld [vmem:[%s4109 + $0xd8] sm:$0xf]
  %v4165 = vld [vmem:[%s4109 + $0xdc] sm:$0xf]
  %v4166 = vld [vmem:[%s4109 + $0xe0] sm:$0xf]
  %v4167 = vld [vmem:[%s4109 + $0xe4] sm:$0xf]
  %v4168 = vld [vmem:[%s4109 + $0xe8] sm:$0xf]
  %v4169 = vld [vmem:[%s4109 + $0xec] sm:$0xf]
  %v4170 = vld [vmem:[%s4109 + $0xf0] sm:$0xf]
  %v4171 = vld [vmem:[%s4109 + $0xf4] sm:$0xf]
  %v4172 = vld [vmem:[%s4109 + $0xf8] sm:$0xf]
  %v4173 = vld [vmem:[%s4109 + $0xfc] sm:$0xf]
  %v4238 = vunpack.c.l.b16 %v4110
  %v4239 = vunpack.c.l.b16 %v4111
  %v4240 = vunpack.c.l.b16 %v4112
  %v4241 = vunpack.c.l.b16 %v4113
  %v4242 = vunpack.c.l.b16 %v4114
  %v4243 = vunpack.c.l.b16 %v4115
  %v4244 = vunpack.c.l.b16 %v4116
  %v4245 = vunpack.c.l.b16 %v4117
  %v4246 = vunpack.c.l.b16 %v4118
  %v4247 = vunpack.c.l.b16 %v4119
  %v4248 = vunpack.c.l.b16 %v4120
  %v4249 = vunpack.c.l.b16 %v4121
  %v4250 = vunpack.c.l.b16 %v4122
  %v4251 = vunpack.c.l.b16 %v4123
  %v4252 = vunpack.c.l.b16 %v4124
  %v4253 = vunpack.c.l.b16 %v4125
  %v4254 = vunpack.c.l.b16 %v4126
  %v4255 = vunpack.c.l.b16 %v4127
  %v4256 = vunpack.c.l.b16 %v4128
  %v4257 = vunpack.c.l.b16 %v4129
  %v4258 = vunpack.c.l.b16 %v4130
  %v4259 = vunpack.c.l.b16 %v4131
  %v4260 = vunpack.c.l.b16 %v4132
  %v4261 = vunpack.c.l.b16 %v4133
  %v4262 = vunpack.c.l.b16 %v4134
  %v4263 = vunpack.c.l.b16 %v4135
  %v4264 = vunpack.c.l.b16 %v4136
  %v4265 = vunpack.c.l.b16 %v4137
  %v4266 = vunpack.c.l.b16 %v4138
  %v4267 = vunpack.c.l.b16 %v4139
  %v4268 = vunpack.c.l.b16 %v4140
  %v4269 = vunpack.c.l.b16 %v4141
  %v4270 = vunpack.c.l.b16 %v4142
  %v4271 = vunpack.c.l.b16 %v4143
  %v4272 = vunpack.c.l.b16 %v4144
  %v4273 = vunpack.c.l.b16 %v4145
  %v4274 = vunpack.c.l.b16 %v4146
  %v4275 = vunpack.c.l.b16 %v4147
  %v4276 = vunpack.c.l.b16 %v4148
  %v4277 = vunpack.c.l.b16 %v4149
  %v4278 = vunpack.c.l.b16 %v4150
  %v4279 = vunpack.c.l.b16 %v4151
  %v4280 = vunpack.c.l.b16 %v4152
  %v4281 = vunpack.c.l.b16 %v4153
  %v4282 = vunpack.c.l.b16 %v4154
  %v4283 = vunpack.c.l.b16 %v4155
  %v4284 = vunpack.c.l.b16 %v4156
  %v4285 = vunpack.c.l.b16 %v4157
  %v4286 = vunpack.c.l.b16 %v4158
  %v4287 = vunpack.c.l.b16 %v4159
  %v4288 = vunpack.c.l.b16 %v4160
  %v4289 = vunpack.c.l.b16 %v4161
  %v4290 = vunpack.c.l.b16 %v4162
  %v4291 = vunpack.c.l.b16 %v4163
  %v4292 = vunpack.c.l.b16 %v4164
  %v4293 = vunpack.c.l.b16 %v4165
  %v4294 = vunpack.c.l.b16 %v4166
  %v4295 = vunpack.c.l.b16 %v4167
  %v4296 = vunpack.c.l.b16 %v4168
  %v4297 = vunpack.c.l.b16 %v4169
  %v4298 = vunpack.c.l.b16 %v4170
  %v4299 = vunpack.c.l.b16 %v4171
  %v4300 = vunpack.c.l.b16 %v4172
  %v4301 = vunpack.c.l.b16 %v4173
  %v4302 = vpack.c.b16 %v4239, %v4238
  %v4303 = vpack.c.b16 %v4241, %v4240
  %v4304 = vpack.c.b16 %v4243, %v4242
  %v4305 = vpack.c.b16 %v4245, %v4244
  %v4306 = vpack.c.b16 %v4247, %v4246
  %v4307 = vpack.c.b16 %v4249, %v4248
  %v4308 = vpack.c.b16 %v4251, %v4250
  %v4309 = vpack.c.b16 %v4253, %v4252
  %v4310 = vpack.c.b16 %v4255, %v4254
  %v4311 = vpack.c.b16 %v4257, %v4256
  %v4312 = vpack.c.b16 %v4259, %v4258
  %v4313 = vpack.c.b16 %v4261, %v4260
  %v4314 = vpack.c.b16 %v4263, %v4262
  %v4315 = vpack.c.b16 %v4265, %v4264
  %v4316 = vpack.c.b16 %v4267, %v4266
  %v4317 = vpack.c.b16 %v4269, %v4268
  %v4318 = vpack.c.b16 %v4271, %v4270
  %v4319 = vpack.c.b16 %v4273, %v4272
  %v4320 = vpack.c.b16 %v4275, %v4274
  %v4321 = vpack.c.b16 %v4277, %v4276
  %v4322 = vpack.c.b16 %v4279, %v4278
  %v4323 = vpack.c.b16 %v4281, %v4280
  %v4324 = vpack.c.b16 %v4283, %v4282
  %v4325 = vpack.c.b16 %v4285, %v4284
  %v4326 = vpack.c.b16 %v4287, %v4286
  %v4327 = vpack.c.b16 %v4289, %v4288
  %v4328 = vpack.c.b16 %v4291, %v4290
  %v4329 = vpack.c.b16 %v4293, %v4292
  %v4330 = vpack.c.b16 %v4295, %v4294
  %v4331 = vpack.c.b16 %v4297, %v4296
  %v4332 = vpack.c.b16 %v4299, %v4298
  %v4333 = vpack.c.b16 %v4301, %v4300
  %4366 = vmatpush.bf16.msra.mxu0 %v4309
  %4367 = vmatpush.bf16.msra.mxu0 %v4308
  %4368 = vmatpush.bf16.msra.mxu0 %v4307
  %4369 = vmatpush.bf16.msra.mxu0 %v4306
  %4370 = vmatpush.bf16.msra.mxu0 %v4305
  %4371 = vmatpush.bf16.msra.mxu0 %v4304
  %4372 = vmatpush.bf16.msra.mxu0 %v4303
  %4373 = vmatpush.bf16.msra.mxu0 %v4302
  %4374 = vmatmul.bf16.gmra.mxu0 %v4105
  %v4375 = vpop.f32.mrf.mxu0
  %v4376 = vadd.f32 0.0, %v4375
  %v4377 = vpop.f32.mrf.mxu0
  %4378 = vdwg.mxu0
  %4379 = vmatpush.bf16.msra.mxu0 %v4317
  %4380 = vmatpush.bf16.msra.mxu0 %v4316
  %4381 = vmatpush.bf16.msra.mxu0 %v4315
  %4382 = vmatpush.bf16.msra.mxu0 %v4314
  %4383 = vmatpush.bf16.msra.mxu0 %v4313
  %4384 = vmatpush.bf16.msra.mxu0 %v4312
  %4385 = vmatpush.bf16.msra.mxu0 %v4311
  %4386 = vmatpush.bf16.msra.mxu0 %v4310
  %4387 = vmatmul.bf16.gmra.mxu0 %v4106
  %v4388 = vpop.f32.mrf.mxu0
  %v4389 = vadd.f32 %v4376, %v4388
  %v4390 = vpop.f32.mrf.mxu0
  %4391 = vdwg.mxu0
  %4392 = vmatpush.bf16.msra.mxu0 %v4325
  %4393 = vmatpush.bf16.msra.mxu0 %v4324
  %4394 = vmatpush.bf16.msra.mxu0 %v4323
  %4395 = vmatpush.bf16.msra.mxu0 %v4322
  %4396 = vmatpush.bf16.msra.mxu0 %v4321
  %4397 = vmatpush.bf16.msra.mxu0 %v4320
  %4398 = vmatpush.bf16.msra.mxu0 %v4319
  %4399 = vmatpush.bf16.msra.mxu0 %v4318
  %4400 = vmatmul.bf16.gmra.mxu0 %v4107
  %v4401 = vpop.f32.mrf.mxu0
  %v4402 = vadd.f32 %v4389, %v4401
  %v4403 = vpop.f32.mrf.mxu0
  %4404 = vdwg.mxu0
  %4405 = vmatpush.bf16.msra.mxu0 %v4333
  %4406 = vmatpush.bf16.msra.mxu0 %v4332
  %4407 = vmatpush.bf16.msra.mxu0 %v4331
  %4408 = vmatpush.bf16.msra.mxu0 %v4330
  %4409 = vmatpush.bf16.msra.mxu0 %v4329
  %4410 = vmatpush.bf16.msra.mxu0 %v4328
  %4411 = vmatpush.bf16.msra.mxu0 %v4327
  %4412 = vmatpush.bf16.msra.mxu0 %v4326
  %4413 = vmatmul.bf16.gmra.mxu0 %v4108
  %v4414 = vpop.f32.mrf.mxu0
  %v4415 = vadd.f32 %v4402, %v4414
  %v4416 = vpop.f32.mrf.mxu0
  %4417 = vdwg.mxu0
  %v4482 = vunpack.c.l.b16 %v3877
  %v4483 = vunpack.c.l.b16 %v3878
  %v4484 = vunpack.c.l.b16 %v3879
  %v4485 = vunpack.c.l.b16 %v3880
  %v4486 = vunpack.c.l.b16 %v3881
  %v4487 = vunpack.c.l.b16 %v3882
  %v4488 = vunpack.c.l.b16 %v3883
  %v4489 = vunpack.c.l.b16 %v3884
  %v4490 = vunpack.c.l.b16 %v3885
  %v4491 = vunpack.c.l.b16 %v3886
  %v4492 = vunpack.c.l.b16 %v3887
  %v4493 = vunpack.c.l.b16 %v3888
  %v4494 = vunpack.c.l.b16 %v3889
  %v4495 = vunpack.c.l.b16 %v3890
  %v4496 = vunpack.c.l.b16 %v3891
  %v4497 = vunpack.c.l.b16 %v3892
  %v4498 = vunpack.c.l.b16 %v3893
  %v4499 = vunpack.c.l.b16 %v3894
  %v4500 = vunpack.c.l.b16 %v3895
  %v4501 = vunpack.c.l.b16 %v3896
  %v4502 = vunpack.c.l.b16 %v3897
  %v4503 = vunpack.c.l.b16 %v3898
  %v4504 = vunpack.c.l.b16 %v3899
  %v4505 = vunpack.c.l.b16 %v3900
  %v4506 = vunpack.c.l.b16 %v3901
  %v4507 = vunpack.c.l.b16 %v3902
  %v4508 = vunpack.c.l.b16 %v3903
  %v4509 = vunpack.c.l.b16 %v3904
  %v4510 = vunpack.c.l.b16 %v3905
  %v4511 = vunpack.c.l.b16 %v3906
  %v4512 = vunpack.c.l.b16 %v3907
  %v4513 = vunpack.c.l.b16 %v3908
  %v4514 = vunpack.c.l.b16 %v3909
  %v4515 = vunpack.c.l.b16 %v3910
  %v4516 = vunpack.c.l.b16 %v3911
  %v4517 = vunpack.c.l.b16 %v3912
  %v4518 = vunpack.c.l.b16 %v3913
  %v4519 = vunpack.c.l.b16 %v3914
  %v4520 = vunpack.c.l.b16 %v3915
  %v4521 = vunpack.c.l.b16 %v3916
  %v4522 = vunpack.c.l.b16 %v3917
  %v4523 = vunpack.c.l.b16 %v3918
  %v4524 = vunpack.c.l.b16 %v3919
  %v4525 = vunpack.c.l.b16 %v3920
  %v4526 = vunpack.c.l.b16 %v3921
  %v4527 = vunpack.c.l.b16 %v3922
  %v4528 = vunpack.c.l.b16 %v3923
  %v4529 = vunpack.c.l.b16 %v3924
  %v4530 = vunpack.c.l.b16 %v3925
  %v4531 = vunpack.c.l.b16 %v3926
  %v4532 = vunpack.c.l.b16 %v3927
  %v4533 = vunpack.c.l.b16 %v3928
  %v4534 = vunpack.c.l.b16 %v3929
  %v4535 = vunpack.c.l.b16 %v3930
  %v4536 = vunpack.c.l.b16 %v3931
  %v4537 = vunpack.c.l.b16 %v3932
  %v4538 = vunpack.c.l.b16 %v3933
  %v4539 = vunpack.c.l.b16 %v3934
  %v4540 = vunpack.c.l.b16 %v3935
  %v4541 = vunpack.c.l.b16 %v3936
  %v4542 = vunpack.c.l.b16 %v3937
  %v4543 = vunpack.c.l.b16 %v3938
  %v4544 = vunpack.c.l.b16 %v3939
  %v4545 = vunpack.c.l.b16 %v3940
  %v4546 = vpack.c.b16 %v4483, %v4482
  %v4547 = vpack.c.b16 %v4485, %v4484
  %v4548 = vpack.c.b16 %v4487, %v4486
  %v4549 = vpack.c.b16 %v4489, %v4488
  %v4550 = vpack.c.b16 %v4491, %v4490
  %v4551 = vpack.c.b16 %v4493, %v4492
  %v4552 = vpack.c.b16 %v4495, %v4494
  %v4553 = vpack.c.b16 %v4497, %v4496
  %v4554 = vpack.c.b16 %v4499, %v4498
  %v4555 = vpack.c.b16 %v4501, %v4500
  %v4556 = vpack.c.b16 %v4503, %v4502
  %v4557 = vpack.c.b16 %v4505, %v4504
  %v4558 = vpack.c.b16 %v4507, %v4506
  %v4559 = vpack.c.b16 %v4509, %v4508
  %v4560 = vpack.c.b16 %v4511, %v4510
  %v4561 = vpack.c.b16 %v4513, %v4512
  %v4562 = vpack.c.b16 %v4515, %v4514
  %v4563 = vpack.c.b16 %v4517, %v4516
  %v4564 = vpack.c.b16 %v4519, %v4518
  %v4565 = vpack.c.b16 %v4521, %v4520
  %v4566 = vpack.c.b16 %v4523, %v4522
  %v4567 = vpack.c.b16 %v4525, %v4524
  %v4568 = vpack.c.b16 %v4527, %v4526
  %v4569 = vpack.c.b16 %v4529, %v4528
  %v4570 = vpack.c.b16 %v4531, %v4530
  %v4571 = vpack.c.b16 %v4533, %v4532
  %v4572 = vpack.c.b16 %v4535, %v4534
  %v4573 = vpack.c.b16 %v4537, %v4536
  %v4574 = vpack.c.b16 %v4539, %v4538
  %v4575 = vpack.c.b16 %v4541, %v4540
  %v4576 = vpack.c.b16 %v4543, %v4542
  %v4577 = vpack.c.b16 %v4545, %v4544
  %4610 = vmatpush.bf16.msra.mxu0 %v4553
  %4611 = vmatpush.bf16.msra.mxu0 %v4552
  %4612 = vmatpush.bf16.msra.mxu0 %v4551
  %4613 = vmatpush.bf16.msra.mxu0 %v4550
  %4614 = vmatpush.bf16.msra.mxu0 %v4549
  %4615 = vmatpush.bf16.msra.mxu0 %v4548
  %4616 = vmatpush.bf16.msra.mxu0 %v4547
  %4617 = vmatpush.bf16.msra.mxu0 %v4546
  %4618 = vmatmul.bf16.gmra.mxu0 %v3872
  %v4619 = vpop.f32.mrf.mxu0
  %v4620 = vadd.f32 %v4415, %v4619
  %v4621 = vpop.f32.mrf.mxu0
  %4622 = vdwg.mxu0
  %4623 = vmatpush.bf16.msra.mxu0 %v4561
  %4624 = vmatpush.bf16.msra.mxu0 %v4560
  %4625 = vmatpush.bf16.msra.mxu0 %v4559
  %4626 = vmatpush.bf16.msra.mxu0 %v4558
  %4627 = vmatpush.bf16.msra.mxu0 %v4557
  %4628 = vmatpush.bf16.msra.mxu0 %v4556
  %4629 = vmatpush.bf16.msra.mxu0 %v4555
  %4630 = vmatpush.bf16.msra.mxu0 %v4554
  %4631 = vmatmul.bf16.gmra.mxu0 %v3873
  %v4632 = vpop.f32.mrf.mxu0
  %v4633 = vadd.f32 %v4620, %v4632
  %v4634 = vpop.f32.mrf.mxu0
  %4635 = vdwg.mxu0
  %4636 = vmatpush.bf16.msra.mxu0 %v4569
  %4637 = vmatpush.bf16.msra.mxu0 %v4568
  %4638 = vmatpush.bf16.msra.mxu0 %v4567
  %4639 = vmatpush.bf16.msra.mxu0 %v4566
  %4640 = vmatpush.bf16.msra.mxu0 %v4565
  %4641 = vmatpush.bf16.msra.mxu0 %v4564
  %4642 = vmatpush.bf16.msra.mxu0 %v4563
  %4643 = vmatpush.bf16.msra.mxu0 %v4562
  %4644 = vmatmul.bf16.gmra.mxu0 %v3874
  %v4645 = vpop.f32.mrf.mxu0
  %v4646 = vadd.f32 %v4633, %v4645
  %v4647 = vpop.f32.mrf.mxu0
  %4648 = vdwg.mxu0
  %4649 = vmatpush.bf16.msra.mxu0 %v4577
  %4650 = vmatpush.bf16.msra.mxu0 %v4576
  %4651 = vmatpush.bf16.msra.mxu0 %v4575
  %4652 = vmatpush.bf16.msra.mxu0 %v4574
  %4653 = vmatpush.bf16.msra.mxu0 %v4573
  %4654 = vmatpush.bf16.msra.mxu0 %v4572
  %4655 = vmatpush.bf16.msra.mxu0 %v4571
  %4656 = vmatpush.bf16.msra.mxu0 %v4570
  %4657 = vmatmul.bf16.gmra.mxu0 %v3875
  %v4658 = vpop.f32.mrf.mxu0
  %v4659 = vadd.f32 %v4646, %v4658
  %v4660 = vpop.f32.mrf.mxu0
  %4661 = vdwg.mxu0
  %s4662 = scalar_lea.vmem %s12, 768
  %v4663 = vld [vmem:[%s4662] sm:$0xff]
  %v4664 = vld [vmem:[%s4662 + $0x8] sm:$0xff]
  %v4665 = vld [vmem:[%s4662 + $0x10] sm:$0xff]
  %v4666 = vld [vmem:[%s4662 + $0x18] sm:$0xff]
  %v4667 = vld [vmem:[%s4662 + $0x20] sm:$0xff]
  %v4668 = vld [vmem:[%s4662 + $0x28] sm:$0xff]
  %v4669 = vld [vmem:[%s4662 + $0x30] sm:$0xff]
  %v4670 = vld [vmem:[%s4662 + $0x38] sm:$0xff]
  %v4671 = vld [vmem:[%s4662 + $0x40] sm:$0xff]
  %v4672 = vld [vmem:[%s4662 + $0x48] sm:$0xff]
  %v4673 = vld [vmem:[%s4662 + $0x50] sm:$0xff]
  %v4674 = vld [vmem:[%s4662 + $0x58] sm:$0xff]
  %v4675 = vld [vmem:[%s4662 + $0x60] sm:$0xff]
  %v4676 = vld [vmem:[%s4662 + $0x68] sm:$0xff]
  %v4677 = vld [vmem:[%s4662 + $0x70] sm:$0xff]
  %v4678 = vld [vmem:[%s4662 + $0x78] sm:$0xff]
  %s4679 = scalar_lea.vmem %s13, 24
  %v4680 = vld [vmem:[%s4679] sm:$0xf]
  %v4682 = vperm.slane %v4680, 0
  %v4683 = vperm.slane %v4680, 1
  %v4684 = vperm.slane %v4680, 2
  %v4685 = vperm.slane %v4680, 3
  %v4706 = vunpack.c.l.b16 %v4663
  %v4707 = vunpack.c.h.b16 %v4663
  %v4708 = vunpack.c.l.b16 %v4664
  %v4709 = vunpack.c.h.b16 %v4664
  %v4710 = vunpack.c.l.b16 %v4665
  %v4711 = vunpack.c.h.b16 %v4665
  %v4712 = vunpack.c.l.b16 %v4666
  %v4713 = vunpack.c.h.b16 %v4666
  %v4714 = vunpack.c.l.b16 %v4667
  %v4715 = vunpack.c.h.b16 %v4667
  %v4716 = vunpack.c.l.b16 %v4668
  %v4717 = vunpack.c.h.b16 %v4668
  %v4718 = vunpack.c.l.b16 %v4669
  %v4719 = vunpack.c.h.b16 %v4669
  %v4720 = vunpack.c.l.b16 %v4670
  %v4721 = vunpack.c.h.b16 %v4670
  %v4722 = vunpack.c.l.b16 %v4671
  %v4723 = vunpack.c.h.b16 %v4671
  %v4724 = vunpack.c.l.b16 %v4672
  %v4725 = vunpack.c.h.b16 %v4672
  %v4726 = vunpack.c.l.b16 %v4673
  %v4727 = vunpack.c.h.b16 %v4673
  %v4728 = vunpack.c.l.b16 %v4674
  %v4729 = vunpack.c.h.b16 %v4674
  %v4730 = vunpack.c.l.b16 %v4675
  %v4731 = vunpack.c.h.b16 %v4675
  %v4732 = vunpack.c.l.b16 %v4676
  %v4733 = vunpack.c.h.b16 %v4676
  %v4734 = vunpack.c.l.b16 %v4677
  %v4735 = vunpack.c.h.b16 %v4677
  %v4736 = vunpack.c.l.b16 %v4678
  %v4737 = vunpack.c.h.b16 %v4678
  %v4738 = vpack.c.b16 %v4710, %v4706
  %v4739 = vpack.c.b16 %v4711, %v4707
  %v4740 = vpack.c.b16 %v4712, %v4708
  %v4741 = vpack.c.b16 %v4713, %v4709
  %v4742 = vpack.c.b16 %v4718, %v4714
  %v4743 = vpack.c.b16 %v4719, %v4715
  %v4744 = vpack.c.b16 %v4720, %v4716
  %v4745 = vpack.c.b16 %v4721, %v4717
  %v4746 = vpack.c.b16 %v4726, %v4722
  %v4747 = vpack.c.b16 %v4727, %v4723
  %v4748 = vpack.c.b16 %v4728, %v4724
  %v4749 = vpack.c.b16 %v4729, %v4725
  %v4750 = vpack.c.b16 %v4734, %v4730
  %v4751 = vpack.c.b16 %v4735, %v4731
  %v4752 = vpack.c.b16 %v4736, %v4732
  %v4753 = vpack.c.b16 %v4737, %v4733
  %4770 = vmatpush.bf16.msra.mxu0 0
  %4771 = vmatpush.bf16.msra.mxu0 0
  %4772 = vmatpush.bf16.msra.mxu0 0
  %4773 = vmatpush.bf16.msra.mxu0 0
  %4774 = vmatpush.bf16.msra.mxu0 %v4750
  %4775 = vmatpush.bf16.msra.mxu0 %v4746
  %4776 = vmatpush.bf16.msra.mxu0 %v4742
  %4777 = vmatpush.bf16.msra.mxu0 %v4738
  %4778 = vmatmul.bf16.gmra.mxu0 %v3814
  %v4779 = vpop.f32.mrf.mxu0
  %v4780 = vadd.f32 %v4682, %v4779
  %v4781 = vpop.f32.mrf.mxu0
  %4782 = vdwg.mxu0
  %4783 = vmatpush.bf16.msra.mxu0 0
  %4784 = vmatpush.bf16.msra.mxu0 0
  %4785 = vmatpush.bf16.msra.mxu0 0
  %4786 = vmatpush.bf16.msra.mxu0 0
  %4787 = vmatpush.bf16.msra.mxu0 %v4751
  %4788 = vmatpush.bf16.msra.mxu0 %v4747
  %4789 = vmatpush.bf16.msra.mxu0 %v4743
  %4790 = vmatpush.bf16.msra.mxu0 %v4739
  %4791 = vmatmul.bf16.gmra.mxu0 %v3814
  %v4792 = vpop.f32.mrf.mxu0
  %v4793 = vadd.f32 %v4683, %v4792
  %v4794 = vpop.f32.mrf.mxu0
  %4795 = vdwg.mxu0
  %4796 = vmatpush.bf16.msra.mxu0 0
  %4797 = vmatpush.bf16.msra.mxu0 0
  %4798 = vmatpush.bf16.msra.mxu0 0
  %4799 = vmatpush.bf16.msra.mxu0 0
  %4800 = vmatpush.bf16.msra.mxu0 %v4752
  %4801 = vmatpush.bf16.msra.mxu0 %v4748
  %4802 = vmatpush.bf16.msra.mxu0 %v4744
  %4803 = vmatpush.bf16.msra.mxu0 %v4740
  %4804 = vmatmul.bf16.gmra.mxu0 %v3814
  %v4805 = vpop.f32.mrf.mxu0
  %v4806 = vadd.f32 %v4684, %v4805
  %v4807 = vpop.f32.mrf.mxu0
  %4808 = vdwg.mxu0
  %4809 = vmatpush.bf16.msra.mxu0 0
  %4810 = vmatpush.bf16.msra.mxu0 0
  %4811 = vmatpush.bf16.msra.mxu0 0
  %4812 = vmatpush.bf16.msra.mxu0 0
  %4813 = vmatpush.bf16.msra.mxu0 %v4753
  %4814 = vmatpush.bf16.msra.mxu0 %v4749
  %4815 = vmatpush.bf16.msra.mxu0 %v4745
  %4816 = vmatpush.bf16.msra.mxu0 %v4741
  %4817 = vmatmul.bf16.gmra.mxu0 %v3814
  %v4818 = vpop.f32.mrf.mxu0
  %v4819 = vadd.f32 %v4685, %v4818
  %v4820 = vpop.f32.mrf.mxu0
  %4821 = vdwg.mxu0
  %v4822 = vmax.f32 %v4780, 0.0
  %v4823 = vmax.f32 %v4793, 0.0
  %v4824 = vmax.f32 %v4806, 0.0
  %v4825 = vmax.f32 %v4819, 0.0
  %v4826 = vpack.c.bf16 %v4822, %v4822
  %v4827 = vpack.c.bf16 %v4823, %v4823
  %v4828 = vpack.c.bf16 %v4824, %v4824
  %v4829 = vpack.c.bf16 %v4825, %v4825
  %s4830 = scalar_lea.vmem %s14, 1536
  %v4831 = vld [vmem:[%s4830] sm:$0xf]
  %v4832 = vld [vmem:[%s4830 + $0x4] sm:$0xf]
  %v4833 = vld [vmem:[%s4830 + $0x8] sm:$0xf]
  %v4834 = vld [vmem:[%s4830 + $0xc] sm:$0xf]
  %v4835 = vld [vmem:[%s4830 + $0x10] sm:$0xf]
  %v4836 = vld [vmem:[%s4830 + $0x14] sm:$0xf]
  %v4837 = vld [vmem:[%s4830 + $0x18] sm:$0xf]
  %v4838 = vld [vmem:[%s4830 + $0x1c] sm:$0xf]
  %v4839 = vld [vmem:[%s4830 + $0x20] sm:$0xf]
  %v4840 = vld [vmem:[%s4830 + $0x24] sm:$0xf]
  %v4841 = vld [vmem:[%s4830 + $0x28] sm:$0xf]
  %v4842 = vld [vmem:[%s4830 + $0x2c] sm:$0xf]
  %v4843 = vld [vmem:[%s4830 + $0x30] sm:$0xf]
  %v4844 = vld [vmem:[%s4830 + $0x34] sm:$0xf]
  %v4845 = vld [vmem:[%s4830 + $0x38] sm:$0xf]
  %v4846 = vld [vmem:[%s4830 + $0x3c] sm:$0xf]
  %v4847 = vld [vmem:[%s4830 + $0x40] sm:$0xf]
  %v4848 = vld [vmem:[%s4830 + $0x44] sm:$0xf]
  %v4849 = vld [vmem:[%s4830 + $0x48] sm:$0xf]
  %v4850 = vld [vmem:[%s4830 + $0x4c] sm:$0xf]
  %v4851 = vld [vmem:[%s4830 + $0x50] sm:$0xf]
  %v4852 = vld [vmem:[%s4830 + $0x54] sm:$0xf]
  %v4853 = vld [vmem:[%s4830 + $0x58] sm:$0xf]
  %v4854 = vld [vmem:[%s4830 + $0x5c] sm:$0xf]
  %v4855 = vld [vmem:[%s4830 + $0x60] sm:$0xf]
  %v4856 = vld [vmem:[%s4830 + $0x64] sm:$0xf]
  %v4857 = vld [vmem:[%s4830 + $0x68] sm:$0xf]
  %v4858 = vld [vmem:[%s4830 + $0x6c] sm:$0xf]
  %v4859 = vld [vmem:[%s4830 + $0x70] sm:$0xf]
  %v4860 = vld [vmem:[%s4830 + $0x74] sm:$0xf]
  %v4861 = vld [vmem:[%s4830 + $0x78] sm:$0xf]
  %v4862 = vld [vmem:[%s4830 + $0x7c] sm:$0xf]
  %v4863 = vld [vmem:[%s4830 + $0x80] sm:$0xf]
  %v4864 = vld [vmem:[%s4830 + $0x84] sm:$0xf]
  %v4865 = vld [vmem:[%s4830 + $0x88] sm:$0xf]
  %v4866 = vld [vmem:[%s4830 + $0x8c] sm:$0xf]
  %v4867 = vld [vmem:[%s4830 + $0x90] sm:$0xf]
  %v4868 = vld [vmem:[%s4830 + $0x94] sm:$0xf]
  %v4869 = vld [vmem:[%s4830 + $0x98] sm:$0xf]
  %v4870 = vld [vmem:[%s4830 + $0x9c] sm:$0xf]
  %v4871 = vld [vmem:[%s4830 + $0xa0] sm:$0xf]
  %v4872 = vld [vmem:[%s4830 + $0xa4] sm:$0xf]
  %v4873 = vld [vmem:[%s4830 + $0xa8] sm:$0xf]
  %v4874 = vld [vmem:[%s4830 + $0xac] sm:$0xf]
  %v4875 = vld [vmem:[%s4830 + $0xb0] sm:$0xf]
  %v4876 = vld [vmem:[%s4830 + $0xb4] sm:$0xf]
  %v4877 = vld [vmem:[%s4830 + $0xb8] sm:$0xf]
  %v4878 = vld [vmem:[%s4830 + $0xbc] sm:$0xf]
  %v4879 = vld [vmem:[%s4830 + $0xc0] sm:$0xf]
  %v4880 = vld [vmem:[%s4830 + $0xc4] sm:$0xf]
  %v4881 = vld [vmem:[%s4830 + $0xc8] sm:$0xf]
  %v4882 = vld [vmem:[%s4830 + $0xcc] sm:$0xf]
  %v4883 = vld [vmem:[%s4830 + $0xd0] sm:$0xf]
  %v4884 = vld [vmem:[%s4830 + $0xd4] sm:$0xf]
  %v4885 = vld [vmem:[%s4830 + $0xd8] sm:$0xf]
  %v4886 = vld [vmem:[%s4830 + $0xdc] sm:$0xf]
  %v4887 = vld [vmem:[%s4830 + $0xe0] sm:$0xf]
  %v4888 = vld [vmem:[%s4830 + $0xe4] sm:$0xf]
  %v4889 = vld [vmem:[%s4830 + $0xe8] sm:$0xf]
  %v4890 = vld [vmem:[%s4830 + $0xec] sm:$0xf]
  %v4891 = vld [vmem:[%s4830 + $0xf0] sm:$0xf]
  %v4892 = vld [vmem:[%s4830 + $0xf4] sm:$0xf]
  %v4893 = vld [vmem:[%s4830 + $0xf8] sm:$0xf]
  %v4894 = vld [vmem:[%s4830 + $0xfc] sm:$0xf]
  %v4959 = vunpack.c.l.b16 %v4831
  %v4960 = vunpack.c.l.b16 %v4832
  %v4961 = vunpack.c.l.b16 %v4833
  %v4962 = vunpack.c.l.b16 %v4834
  %v4963 = vunpack.c.l.b16 %v4835
  %v4964 = vunpack.c.l.b16 %v4836
  %v4965 = vunpack.c.l.b16 %v4837
  %v4966 = vunpack.c.l.b16 %v4838
  %v4967 = vunpack.c.l.b16 %v4839
  %v4968 = vunpack.c.l.b16 %v4840
  %v4969 = vunpack.c.l.b16 %v4841
  %v4970 = vunpack.c.l.b16 %v4842
  %v4971 = vunpack.c.l.b16 %v4843
  %v4972 = vunpack.c.l.b16 %v4844
  %v4973 = vunpack.c.l.b16 %v4845
  %v4974 = vunpack.c.l.b16 %v4846
  %v4975 = vunpack.c.l.b16 %v4847
  %v4976 = vunpack.c.l.b16 %v4848
  %v4977 = vunpack.c.l.b16 %v4849
  %v4978 = vunpack.c.l.b16 %v4850
  %v4979 = vunpack.c.l.b16 %v4851
  %v4980 = vunpack.c.l.b16 %v4852
  %v4981 = vunpack.c.l.b16 %v4853
  %v4982 = vunpack.c.l.b16 %v4854
  %v4983 = vunpack.c.l.b16 %v4855
  %v4984 = vunpack.c.l.b16 %v4856
  %v4985 = vunpack.c.l.b16 %v4857
  %v4986 = vunpack.c.l.b16 %v4858
  %v4987 = vunpack.c.l.b16 %v4859
  %v4988 = vunpack.c.l.b16 %v4860
  %v4989 = vunpack.c.l.b16 %v4861
  %v4990 = vunpack.c.l.b16 %v4862
  %v4991 = vunpack.c.l.b16 %v4863
  %v4992 = vunpack.c.l.b16 %v4864
  %v4993 = vunpack.c.l.b16 %v4865
  %v4994 = vunpack.c.l.b16 %v4866
  %v4995 = vunpack.c.l.b16 %v4867
  %v4996 = vunpack.c.l.b16 %v4868
  %v4997 = vunpack.c.l.b16 %v4869
  %v4998 = vunpack.c.l.b16 %v4870
  %v4999 = vunpack.c.l.b16 %v4871
  %v5000 = vunpack.c.l.b16 %v4872
  %v5001 = vunpack.c.l.b16 %v4873
  %v5002 = vunpack.c.l.b16 %v4874
  %v5003 = vunpack.c.l.b16 %v4875
  %v5004 = vunpack.c.l.b16 %v4876
  %v5005 = vunpack.c.l.b16 %v4877
  %v5006 = vunpack.c.l.b16 %v4878
  %v5007 = vunpack.c.l.b16 %v4879
  %v5008 = vunpack.c.l.b16 %v4880
  %v5009 = vunpack.c.l.b16 %v4881
  %v5010 = vunpack.c.l.b16 %v4882
  %v5011 = vunpack.c.l.b16 %v4883
  %v5012 = vunpack.c.l.b16 %v4884
  %v5013 = vunpack.c.l.b16 %v4885
  %v5014 = vunpack.c.l.b16 %v4886
  %v5015 = vunpack.c.l.b16 %v4887
  %v5016 = vunpack.c.l.b16 %v4888
  %v5017 = vunpack.c.l.b16 %v4889
  %v5018 = vunpack.c.l.b16 %v4890
  %v5019 = vunpack.c.l.b16 %v4891
  %v5020 = vunpack.c.l.b16 %v4892
  %v5021 = vunpack.c.l.b16 %v4893
  %v5022 = vunpack.c.l.b16 %v4894
  %v5023 = vpack.c.b16 %v4960, %v4959
  %v5024 = vpack.c.b16 %v4962, %v4961
  %v5025 = vpack.c.b16 %v4964, %v4963
  %v5026 = vpack.c.b16 %v4966, %v4965
  %v5027 = vpack.c.b16 %v4968, %v4967
  %v5028 = vpack.c.b16 %v4970, %v4969
  %v5029 = vpack.c.b16 %v4972, %v4971
  %v5030 = vpack.c.b16 %v4974, %v4973
  %v5031 = vpack.c.b16 %v4976, %v4975
  %v5032 = vpack.c.b16 %v4978, %v4977
  %v5033 = vpack.c.b16 %v4980, %v4979
  %v5034 = vpack.c.b16 %v4982, %v4981
  %v5035 = vpack.c.b16 %v4984, %v4983
  %v5036 = vpack.c.b16 %v4986, %v4985
  %v5037 = vpack.c.b16 %v4988, %v4987
  %v5038 = vpack.c.b16 %v4990, %v4989
  %v5039 = vpack.c.b16 %v4992, %v4991
  %v5040 = vpack.c.b16 %v4994, %v4993
  %v5041 = vpack.c.b16 %v4996, %v4995
  %v5042 = vpack.c.b16 %v4998, %v4997
  %v5043 = vpack.c.b16 %v5000, %v4999
  %v5044 = vpack.c.b16 %v5002, %v5001
  %v5045 = vpack.c.b16 %v5004, %v5003
  %v5046 = vpack.c.b16 %v5006, %v5005
  %v5047 = vpack.c.b16 %v5008, %v5007
  %v5048 = vpack.c.b16 %v5010, %v5009
  %v5049 = vpack.c.b16 %v5012, %v5011
  %v5050 = vpack.c.b16 %v5014, %v5013
  %v5051 = vpack.c.b16 %v5016, %v5015
  %v5052 = vpack.c.b16 %v5018, %v5017
  %v5053 = vpack.c.b16 %v5020, %v5019
  %v5054 = vpack.c.b16 %v5022, %v5021
  %5087 = vmatpush.bf16.msra.mxu0 %v5030
  %5088 = vmatpush.bf16.msra.mxu0 %v5029
  %5089 = vmatpush.bf16.msra.mxu0 %v5028
  %5090 = vmatpush.bf16.msra.mxu0 %v5027
  %5091 = vmatpush.bf16.msra.mxu0 %v5026
  %5092 = vmatpush.bf16.msra.mxu0 %v5025
  %5093 = vmatpush.bf16.msra.mxu0 %v5024
  %5094 = vmatpush.bf16.msra.mxu0 %v5023
  %5095 = vmatmul.bf16.gmra.mxu0 %v4826
  %v5096 = vpop.f32.mrf.mxu0
  %v5097 = vadd.f32 0.0, %v5096
  %v5098 = vpop.f32.mrf.mxu0
  %5099 = vdwg.mxu0
  %5100 = vmatpush.bf16.msra.mxu0 %v5038
  %5101 = vmatpush.bf16.msra.mxu0 %v5037
  %5102 = vmatpush.bf16.msra.mxu0 %v5036
  %5103 = vmatpush.bf16.msra.mxu0 %v5035
  %5104 = vmatpush.bf16.msra.mxu0 %v5034
  %5105 = vmatpush.bf16.msra.mxu0 %v5033
  %5106 = vmatpush.bf16.msra.mxu0 %v5032
  %5107 = vmatpush.bf16.msra.mxu0 %v5031
  %5108 = vmatmul.bf16.gmra.mxu0 %v4827
  %v5109 = vpop.f32.mrf.mxu0
  %v5110 = vadd.f32 %v5097, %v5109
  %v5111 = vpop.f32.mrf.mxu0
  %5112 = vdwg.mxu0
  %5113 = vmatpush.bf16.msra.mxu0 %v5046
  %5114 = vmatpush.bf16.msra.mxu0 %v5045
  %5115 = vmatpush.bf16.msra.mxu0 %v5044
  %5116 = vmatpush.bf16.msra.mxu0 %v5043
  %5117 = vmatpush.bf16.msra.mxu0 %v5042
  %5118 = vmatpush.bf16.msra.mxu0 %v5041
  %5119 = vmatpush.bf16.msra.mxu0 %v5040
  %5120 = vmatpush.bf16.msra.mxu0 %v5039
  %5121 = vmatmul.bf16.gmra.mxu0 %v4828
  %v5122 = vpop.f32.mrf.mxu0
  %v5123 = vadd.f32 %v5110, %v5122
  %v5124 = vpop.f32.mrf.mxu0
  %5125 = vdwg.mxu0
  %5126 = vmatpush.bf16.msra.mxu0 %v5054
  %5127 = vmatpush.bf16.msra.mxu0 %v5053
  %5128 = vmatpush.bf16.msra.mxu0 %v5052
  %5129 = vmatpush.bf16.msra.mxu0 %v5051
  %5130 = vmatpush.bf16.msra.mxu0 %v5050
  %5131 = vmatpush.bf16.msra.mxu0 %v5049
  %5132 = vmatpush.bf16.msra.mxu0 %v5048
  %5133 = vmatpush.bf16.msra.mxu0 %v5047
  %5134 = vmatmul.bf16.gmra.mxu0 %v4829
  %v5135 = vpop.f32.mrf.mxu0
  %v5136 = vadd.f32 %v5123, %v5135
  %v5137 = vpop.f32.mrf.mxu0
  %5138 = vdwg.mxu0
  %v5139 = vadd.f32 %v4659, %v5136
  %s5140 = scalar_lea.vmem %s12, 896
  %v5141 = vld [vmem:[%s5140] sm:$0xff]
  %v5142 = vld [vmem:[%s5140 + $0x8] sm:$0xff]
  %v5143 = vld [vmem:[%s5140 + $0x10] sm:$0xff]
  %v5144 = vld [vmem:[%s5140 + $0x18] sm:$0xff]
  %v5145 = vld [vmem:[%s5140 + $0x20] sm:$0xff]
  %v5146 = vld [vmem:[%s5140 + $0x28] sm:$0xff]
  %v5147 = vld [vmem:[%s5140 + $0x30] sm:$0xff]
  %v5148 = vld [vmem:[%s5140 + $0x38] sm:$0xff]
  %v5149 = vld [vmem:[%s5140 + $0x40] sm:$0xff]
  %v5150 = vld [vmem:[%s5140 + $0x48] sm:$0xff]
  %v5151 = vld [vmem:[%s5140 + $0x50] sm:$0xff]
  %v5152 = vld [vmem:[%s5140 + $0x58] sm:$0xff]
  %v5153 = vld [vmem:[%s5140 + $0x60] sm:$0xff]
  %v5154 = vld [vmem:[%s5140 + $0x68] sm:$0xff]
  %v5155 = vld [vmem:[%s5140 + $0x70] sm:$0xff]
  %v5156 = vld [vmem:[%s5140 + $0x78] sm:$0xff]
  %s5157 = scalar_lea.vmem %s13, 28
  %v5158 = vld [vmem:[%s5157] sm:$0xf]
  %v5160 = vperm.slane %v5158, 0
  %v5161 = vperm.slane %v5158, 1
  %v5162 = vperm.slane %v5158, 2
  %v5163 = vperm.slane %v5158, 3
  %v5184 = vunpack.c.l.b16 %v5141
  %v5185 = vunpack.c.h.b16 %v5141
  %v5186 = vunpack.c.l.b16 %v5142
  %v5187 = vunpack.c.h.b16 %v5142
  %v5188 = vunpack.c.l.b16 %v5143
  %v5189 = vunpack.c.h.b16 %v5143
  %v5190 = vunpack.c.l.b16 %v5144
  %v5191 = vunpack.c.h.b16 %v5144
  %v5192 = vunpack.c.l.b16 %v5145
  %v5193 = vunpack.c.h.b16 %v5145
  %v5194 = vunpack.c.l.b16 %v5146
  %v5195 = vunpack.c.h.b16 %v5146
  %v5196 = vunpack.c.l.b16 %v5147
  %v5197 = vunpack.c.h.b16 %v5147
  %v5198 = vunpack.c.l.b16 %v5148
  %v5199 = vunpack.c.h.b16 %v5148
  %v5200 = vunpack.c.l.b16 %v5149
  %v5201 = vunpack.c.h.b16 %v5149
  %v5202 = vunpack.c.l.b16 %v5150
  %v5203 = vunpack.c.h.b16 %v5150
  %v5204 = vunpack.c.l.b16 %v5151
  %v5205 = vunpack.c.h.b16 %v5151
  %v5206 = vunpack.c.l.b16 %v5152
  %v5207 = vunpack.c.h.b16 %v5152
  %v5208 = vunpack.c.l.b16 %v5153
  %v5209 = vunpack.c.h.b16 %v5153
  %v5210 = vunpack.c.l.b16 %v5154
  %v5211 = vunpack.c.h.b16 %v5154
  %v5212 = vunpack.c.l.b16 %v5155
  %v5213 = vunpack.c.h.b16 %v5155
  %v5214 = vunpack.c.l.b16 %v5156
  %v5215 = vunpack.c.h.b16 %v5156
  %v5216 = vpack.c.b16 %v5188, %v5184
  %v5217 = vpack.c.b16 %v5189, %v5185
  %v5218 = vpack.c.b16 %v5190, %v5186
  %v5219 = vpack.c.b16 %v5191, %v5187
  %v5220 = vpack.c.b16 %v5196, %v5192
  %v5221 = vpack.c.b16 %v5197, %v5193
  %v5222 = vpack.c.b16 %v5198, %v5194
  %v5223 = vpack.c.b16 %v5199, %v5195
  %v5224 = vpack.c.b16 %v5204, %v5200
  %v5225 = vpack.c.b16 %v5205, %v5201
  %v5226 = vpack.c.b16 %v5206, %v5202
  %v5227 = vpack.c.b16 %v5207, %v5203
  %v5228 = vpack.c.b16 %v5212, %v5208
  %v5229 = vpack.c.b16 %v5213, %v5209
  %v5230 = vpack.c.b16 %v5214, %v5210
  %v5231 = vpack.c.b16 %v5215, %v5211
  %5248 = vmatpush.bf16.msra.mxu0 0
  %5249 = vmatpush.bf16.msra.mxu0 0
  %5250 = vmatpush.bf16.msra.mxu0 0
  %5251 = vmatpush.bf16.msra.mxu0 0
  %5252 = vmatpush.bf16.msra.mxu0 %v5228
  %5253 = vmatpush.bf16.msra.mxu0 %v5224
  %5254 = vmatpush.bf16.msra.mxu0 %v5220
  %5255 = vmatpush.bf16.msra.mxu0 %v5216
  %5256 = vmatmul.bf16.gmra.mxu0 %v3814
  %v5257 = vpop.f32.mrf.mxu0
  %v5258 = vadd.f32 %v5160, %v5257
  %v5259 = vpop.f32.mrf.mxu0
  %5260 = vdwg.mxu0
  %5261 = vmatpush.bf16.msra.mxu0 0
  %5262 = vmatpush.bf16.msra.mxu0 0
  %5263 = vmatpush.bf16.msra.mxu0 0
  %5264 = vmatpush.bf16.msra.mxu0 0
  %5265 = vmatpush.bf16.msra.mxu0 %v5229
  %5266 = vmatpush.bf16.msra.mxu0 %v5225
  %5267 = vmatpush.bf16.msra.mxu0 %v5221
  %5268 = vmatpush.bf16.msra.mxu0 %v5217
  %5269 = vmatmul.bf16.gmra.mxu0 %v3814
  %v5270 = vpop.f32.mrf.mxu0
  %v5271 = vadd.f32 %v5161, %v5270
  %v5272 = vpop.f32.mrf.mxu0
  %5273 = vdwg.mxu0
  %5274 = vmatpush.bf16.msra.mxu0 0
  %5275 = vmatpush.bf16.msra.mxu0 0
  %5276 = vmatpush.bf16.msra.mxu0 0
  %5277 = vmatpush.bf16.msra.mxu0 0
  %5278 = vmatpush.bf16.msra.mxu0 %v5230
  %5279 = vmatpush.bf16.msra.mxu0 %v5226
  %5280 = vmatpush.bf16.msra.mxu0 %v5222
  %5281 = vmatpush.bf16.msra.mxu0 %v5218
  %5282 = vmatmul.bf16.gmra.mxu0 %v3814
  %v5283 = vpop.f32.mrf.mxu0
  %v5284 = vadd.f32 %v5162, %v5283
  %v5285 = vpop.f32.mrf.mxu0
  %5286 = vdwg.mxu0
  %5287 = vmatpush.bf16.msra.mxu0 0
  %5288 = vmatpush.bf16.msra.mxu0 0
  %5289 = vmatpush.bf16.msra.mxu0 0
  %5290 = vmatpush.bf16.msra.mxu0 0
  %5291 = vmatpush.bf16.msra.mxu0 %v5231
  %5292 = vmatpush.bf16.msra.mxu0 %v5227
  %5293 = vmatpush.bf16.msra.mxu0 %v5223
  %5294 = vmatpush.bf16.msra.mxu0 %v5219
  %5295 = vmatmul.bf16.gmra.mxu0 %v3814
  %v5296 = vpop.f32.mrf.mxu0
  %v5297 = vadd.f32 %v5163, %v5296
  %v5298 = vpop.f32.mrf.mxu0
  %5299 = vdwg.mxu0
  %v5300 = vmax.f32 %v5258, 0.0
  %v5301 = vmax.f32 %v5271, 0.0
  %v5302 = vmax.f32 %v5284, 0.0
  %v5303 = vmax.f32 %v5297, 0.0
  %v5304 = vpack.c.bf16 %v5300, %v5300
  %v5305 = vpack.c.bf16 %v5301, %v5301
  %v5306 = vpack.c.bf16 %v5302, %v5302
  %v5307 = vpack.c.bf16 %v5303, %v5303
  %s5308 = scalar_lea.vmem %s14, 1792
  %v5309 = vld [vmem:[%s5308] sm:$0xf]
  %v5310 = vld [vmem:[%s5308 + $0x4] sm:$0xf]
  %v5311 = vld [vmem:[%s5308 + $0x8] sm:$0xf]
  %v5312 = vld [vmem:[%s5308 + $0xc] sm:$0xf]
  %v5313 = vld [vmem:[%s5308 + $0x10] sm:$0xf]
  %v5314 = vld [vmem:[%s5308 + $0x14] sm:$0xf]
  %v5315 = vld [vmem:[%s5308 + $0x18] sm:$0xf]
  %v5316 = vld [vmem:[%s5308 + $0x1c] sm:$0xf]
  %v5317 = vld [vmem:[%s5308 + $0x20] sm:$0xf]
  %v5318 = vld [vmem:[%s5308 + $0x24] sm:$0xf]
  %v5319 = vld [vmem:[%s5308 + $0x28] sm:$0xf]
  %v5320 = vld [vmem:[%s5308 + $0x2c] sm:$0xf]
  %v5321 = vld [vmem:[%s5308 + $0x30] sm:$0xf]
  %v5322 = vld [vmem:[%s5308 + $0x34] sm:$0xf]
  %v5323 = vld [vmem:[%s5308 + $0x38] sm:$0xf]
  %v5324 = vld [vmem:[%s5308 + $0x3c] sm:$0xf]
  %v5325 = vld [vmem:[%s5308 + $0x40] sm:$0xf]
  %v5326 = vld [vmem:[%s5308 + $0x44] sm:$0xf]
  %v5327 = vld [vmem:[%s5308 + $0x48] sm:$0xf]
  %v5328 = vld [vmem:[%s5308 + $0x4c] sm:$0xf]
  %v5329 = vld [vmem:[%s5308 + $0x50] sm:$0xf]
  %v5330 = vld [vmem:[%s5308 + $0x54] sm:$0xf]
  %v5331 = vld [vmem:[%s5308 + $0x58] sm:$0xf]
  %v5332 = vld [vmem:[%s5308 + $0x5c] sm:$0xf]
  %v5333 = vld [vmem:[%s5308 + $0x60] sm:$0xf]
  %v5334 = vld [vmem:[%s5308 + $0x64] sm:$0xf]
  %v5335 = vld [vmem:[%s5308 + $0x68] sm:$0xf]
  %v5336 = vld [vmem:[%s5308 + $0x6c] sm:$0xf]
  %v5337 = vld [vmem:[%s5308 + $0x70] sm:$0xf]
  %v5338 = vld [vmem:[%s5308 + $0x74] sm:$0xf]
  %v5339 = vld [vmem:[%s5308 + $0x78] sm:$0xf]
  %v5340 = vld [vmem:[%s5308 + $0x7c] sm:$0xf]
  %v5341 = vld [vmem:[%s5308 + $0x80] sm:$0xf]
  %v5342 = vld [vmem:[%s5308 + $0x84] sm:$0xf]
  %v5343 = vld [vmem:[%s5308 + $0x88] sm:$0xf]
  %v5344 = vld [vmem:[%s5308 + $0x8c] sm:$0xf]
  %v5345 = vld [vmem:[%s5308 + $0x90] sm:$0xf]
  %v5346 = vld [vmem:[%s5308 + $0x94] sm:$0xf]
  %v5347 = vld [vmem:[%s5308 + $0x98] sm:$0xf]
  %v5348 = vld [vmem:[%s5308 + $0x9c] sm:$0xf]
  %v5349 = vld [vmem:[%s5308 + $0xa0] sm:$0xf]
  %v5350 = vld [vmem:[%s5308 + $0xa4] sm:$0xf]
  %v5351 = vld [vmem:[%s5308 + $0xa8] sm:$0xf]
  %v5352 = vld [vmem:[%s5308 + $0xac] sm:$0xf]
  %v5353 = vld [vmem:[%s5308 + $0xb0] sm:$0xf]
  %v5354 = vld [vmem:[%s5308 + $0xb4] sm:$0xf]
  %v5355 = vld [vmem:[%s5308 + $0xb8] sm:$0xf]
  %v5356 = vld [vmem:[%s5308 + $0xbc] sm:$0xf]
  %v5357 = vld [vmem:[%s5308 + $0xc0] sm:$0xf]
  %v5358 = vld [vmem:[%s5308 + $0xc4] sm:$0xf]
  %v5359 = vld [vmem:[%s5308 + $0xc8] sm:$0xf]
  %v5360 = vld [vmem:[%s5308 + $0xcc] sm:$0xf]
  %v5361 = vld [vmem:[%s5308 + $0xd0] sm:$0xf]
  %v5362 = vld [vmem:[%s5308 + $0xd4] sm:$0xf]
  %v5363 = vld [vmem:[%s5308 + $0xd8] sm:$0xf]
  %v5364 = vld [vmem:[%s5308 + $0xdc] sm:$0xf]
  %v5365 = vld [vmem:[%s5308 + $0xe0] sm:$0xf]
  %v5366 = vld [vmem:[%s5308 + $0xe4] sm:$0xf]
  %v5367 = vld [vmem:[%s5308 + $0xe8] sm:$0xf]
  %v5368 = vld [vmem:[%s5308 + $0xec] sm:$0xf]
  %v5369 = vld [vmem:[%s5308 + $0xf0] sm:$0xf]
  %v5370 = vld [vmem:[%s5308 + $0xf4] sm:$0xf]
  %v5371 = vld [vmem:[%s5308 + $0xf8] sm:$0xf]
  %v5372 = vld [vmem:[%s5308 + $0xfc] sm:$0xf]
  %v5437 = vunpack.c.l.b16 %v5309
  %v5438 = vunpack.c.l.b16 %v5310
  %v5439 = vunpack.c.l.b16 %v5311
  %v5440 = vunpack.c.l.b16 %v5312
  %v5441 = vunpack.c.l.b16 %v5313
  %v5442 = vunpack.c.l.b16 %v5314
  %v5443 = vunpack.c.l.b16 %v5315
  %v5444 = vunpack.c.l.b16 %v5316
  %v5445 = vunpack.c.l.b16 %v5317
  %v5446 = vunpack.c.l.b16 %v5318
  %v5447 = vunpack.c.l.b16 %v5319
  %v5448 = vunpack.c.l.b16 %v5320
  %v5449 = vunpack.c.l.b16 %v5321
  %v5450 = vunpack.c.l.b16 %v5322
  %v5451 = vunpack.c.l.b16 %v5323
  %v5452 = vunpack.c.l.b16 %v5324
  %v5453 = vunpack.c.l.b16 %v5325
  %v5454 = vunpack.c.l.b16 %v5326
  %v5455 = vunpack.c.l.b16 %v5327
  %v5456 = vunpack.c.l.b16 %v5328
  %v5457 = vunpack.c.l.b16 %v5329
  %v5458 = vunpack.c.l.b16 %v5330
  %v5459 = vunpack.c.l.b16 %v5331
  %v5460 = vunpack.c.l.b16 %v5332
  %v5461 = vunpack.c.l.b16 %v5333
  %v5462 = vunpack.c.l.b16 %v5334
  %v5463 = vunpack.c.l.b16 %v5335
  %v5464 = vunpack.c.l.b16 %v5336
  %v5465 = vunpack.c.l.b16 %v5337
  %v5466 = vunpack.c.l.b16 %v5338
  %v5467 = vunpack.c.l.b16 %v5339
  %v5468 = vunpack.c.l.b16 %v5340
  %v5469 = vunpack.c.l.b16 %v5341
  %v5470 = vunpack.c.l.b16 %v5342
  %v5471 = vunpack.c.l.b16 %v5343
  %v5472 = vunpack.c.l.b16 %v5344
  %v5473 = vunpack.c.l.b16 %v5345
  %v5474 = vunpack.c.l.b16 %v5346
  %v5475 = vunpack.c.l.b16 %v5347
  %v5476 = vunpack.c.l.b16 %v5348
  %v5477 = vunpack.c.l.b16 %v5349
  %v5478 = vunpack.c.l.b16 %v5350
  %v5479 = vunpack.c.l.b16 %v5351
  %v5480 = vunpack.c.l.b16 %v5352
  %v5481 = vunpack.c.l.b16 %v5353
  %v5482 = vunpack.c.l.b16 %v5354
  %v5483 = vunpack.c.l.b16 %v5355
  %v5484 = vunpack.c.l.b16 %v5356
  %v5485 = vunpack.c.l.b16 %v5357
  %v5486 = vunpack.c.l.b16 %v5358
  %v5487 = vunpack.c.l.b16 %v5359
  %v5488 = vunpack.c.l.b16 %v5360
  %v5489 = vunpack.c.l.b16 %v5361
  %v5490 = vunpack.c.l.b16 %v5362
  %v5491 = vunpack.c.l.b16 %v5363
  %v5492 = vunpack.c.l.b16 %v5364
  %v5493 = vunpack.c.l.b16 %v5365
  %v5494 = vunpack.c.l.b16 %v5366
  %v5495 = vunpack.c.l.b16 %v5367
  %v5496 = vunpack.c.l.b16 %v5368
  %v5497 = vunpack.c.l.b16 %v5369
  %v5498 = vunpack.c.l.b16 %v5370
  %v5499 = vunpack.c.l.b16 %v5371
  %v5500 = vunpack.c.l.b16 %v5372
  %v5501 = vpack.c.b16 %v5438, %v5437
  %v5502 = vpack.c.b16 %v5440, %v5439
  %v5503 = vpack.c.b16 %v5442, %v5441
  %v5504 = vpack.c.b16 %v5444, %v5443
  %v5505 = vpack.c.b16 %v5446, %v5445
  %v5506 = vpack.c.b16 %v5448, %v5447
  %v5507 = vpack.c.b16 %v5450, %v5449
  %v5508 = vpack.c.b16 %v5452, %v5451
  %v5509 = vpack.c.b16 %v5454, %v5453
  %v5510 = vpack.c.b16 %v5456, %v5455
  %v5511 = vpack.c.b16 %v5458, %v5457
  %v5512 = vpack.c.b16 %v5460, %v5459
  %v5513 = vpack.c.b16 %v5462, %v5461
  %v5514 = vpack.c.b16 %v5464, %v5463
  %v5515 = vpack.c.b16 %v5466, %v5465
  %v5516 = vpack.c.b16 %v5468, %v5467
  %v5517 = vpack.c.b16 %v5470, %v5469
  %v5518 = vpack.c.b16 %v5472, %v5471
  %v5519 = vpack.c.b16 %v5474, %v5473
  %v5520 = vpack.c.b16 %v5476, %v5475
  %v5521 = vpack.c.b16 %v5478, %v5477
  %v5522 = vpack.c.b16 %v5480, %v5479
  %v5523 = vpack.c.b16 %v5482, %v5481
  %v5524 = vpack.c.b16 %v5484, %v5483
  %v5525 = vpack.c.b16 %v5486, %v5485
  %v5526 = vpack.c.b16 %v5488, %v5487
  %v5527 = vpack.c.b16 %v5490, %v5489
  %v5528 = vpack.c.b16 %v5492, %v5491
  %v5529 = vpack.c.b16 %v5494, %v5493
  %v5530 = vpack.c.b16 %v5496, %v5495
  %v5531 = vpack.c.b16 %v5498, %v5497
  %v5532 = vpack.c.b16 %v5500, %v5499
  %5565 = vmatpush.bf16.msra.mxu0 %v5508
  %5566 = vmatpush.bf16.msra.mxu0 %v5507
  %5567 = vmatpush.bf16.msra.mxu0 %v5506
  %5568 = vmatpush.bf16.msra.mxu0 %v5505
  %5569 = vmatpush.bf16.msra.mxu0 %v5504
  %5570 = vmatpush.bf16.msra.mxu0 %v5503
  %5571 = vmatpush.bf16.msra.mxu0 %v5502
  %5572 = vmatpush.bf16.msra.mxu0 %v5501
  %5573 = vmatmul.bf16.gmra.mxu0 %v5304
  %v5574 = vpop.f32.mrf.mxu0
  %v5575 = vadd.f32 0.0, %v5574
  %v5576 = vpop.f32.mrf.mxu0
  %5577 = vdwg.mxu0
  %5578 = vmatpush.bf16.msra.mxu0 %v5516
  %5579 = vmatpush.bf16.msra.mxu0 %v5515
  %5580 = vmatpush.bf16.msra.mxu0 %v5514
  %5581 = vmatpush.bf16.msra.mxu0 %v5513
  %5582 = vmatpush.bf16.msra.mxu0 %v5512
  %5583 = vmatpush.bf16.msra.mxu0 %v5511
  %5584 = vmatpush.bf16.msra.mxu0 %v5510
  %5585 = vmatpush.bf16.msra.mxu0 %v5509
  %5586 = vmatmul.bf16.gmra.mxu0 %v5305
  %v5587 = vpop.f32.mrf.mxu0
  %v5588 = vadd.f32 %v5575, %v5587
  %v5589 = vpop.f32.mrf.mxu0
  %5590 = vdwg.mxu0
  %5591 = vmatpush.bf16.msra.mxu0 %v5524
  %5592 = vmatpush.bf16.msra.mxu0 %v5523
  %5593 = vmatpush.bf16.msra.mxu0 %v5522
  %5594 = vmatpush.bf16.msra.mxu0 %v5521
  %5595 = vmatpush.bf16.msra.mxu0 %v5520
  %5596 = vmatpush.bf16.msra.mxu0 %v5519
  %5597 = vmatpush.bf16.msra.mxu0 %v5518
  %5598 = vmatpush.bf16.msra.mxu0 %v5517
  %5599 = vmatmul.bf16.gmra.mxu0 %v5306
  %v5600 = vpop.f32.mrf.mxu0
  %v5601 = vadd.f32 %v5588, %v5600
  %v5602 = vpop.f32.mrf.mxu0
  %5603 = vdwg.mxu0
  %5604 = vmatpush.bf16.msra.mxu0 %v5532
  %5605 = vmatpush.bf16.msra.mxu0 %v5531
  %5606 = vmatpush.bf16.msra.mxu0 %v5530
  %5607 = vmatpush.bf16.msra.mxu0 %v5529
  %5608 = vmatpush.bf16.msra.mxu0 %v5528
  %5609 = vmatpush.bf16.msra.mxu0 %v5527
  %5610 = vmatpush.bf16.msra.mxu0 %v5526
  %5611 = vmatpush.bf16.msra.mxu0 %v5525
  %5612 = vmatmul.bf16.gmra.mxu0 %v5307
  %v5613 = vpop.f32.mrf.mxu0
  %v5614 = vadd.f32 %v5601, %v5613
  %v5615 = vpop.f32.mrf.mxu0
  %5616 = vdwg.mxu0
  %v5617 = vadd.f32 %v5139, %v5614
  %s5618 = scalar_lea.vmem %s15, 1
  %v5619 = vld [vmem:[%s5618] sm:$0x1]
  %v5621 = vperm.slane %v5619, 0
  %v5623 = vadd.f32 %v5617, %v5621
  %v5625 = vrot.slane %v5623, 1
  %v5626 = vperm.slane %v5623, 0
  %v5627 = vperm.slane %v5625, 0
  %v5630 = vadd.f32 %v3693, %v5626
  %v5631 = vadd.f32 %v3694, %v5627
  %s5632 = scalar_lea.vmem %s18, 1
  %v5633 = vld [vmem:[%s5632] sm:$0x1]
  %s5634 = scalar_lea.vmem %s19, 1
  %v5635 = vld [vmem:[%s5634] sm:$0x1]
  %v5636 = vsel %vm3640, %v5630, 0.0
  %5637 = vadd.xlane.f32.xlu0 %v5636
  %v5638 = vpop.xlane.xlu0 %5637
  %v5639 = vsel %vm3640, %v5631, 0.0
  %5640 = vadd.xlane.f32.xlu0 %v5639
  %v5641 = vpop.xlane.xlu0 %5640
  %v5642 = vmul.f32 %v5638, %v824
  %v5643 = vmul.f32 %v5641, %v824
  %v5644 = vsub.f32 %v5630, %v5642
  %v5645 = vsub.f32 %v5631, %v5643
  %v5646 = vmul.f32 %v5644, %v5644
  %v5647 = vmul.f32 %v5645, %v5645
  %v5648 = vsel %vm3640, %v5646, 0.0
  %5649 = vadd.xlane.f32.xlu0 %v5648
  %v5650 = vpop.xlane.xlu0 %5649
  %v5651 = vsel %vm3640, %v5647, 0.0
  %5652 = vadd.xlane.f32.xlu0 %v5651
  %v5653 = vpop.xlane.xlu0 %5652
  %v5654 = vmul.f32 %v5650, %v824
  %v5655 = vmul.f32 %v5653, %v824
  %v5656 = vadd.f32 %v5654, 1e-05
  %v5657 = vadd.f32 %v5655, 1e-05
  %v5658 = vrsqrt.pop %v5656
  %v5659 = vmul.f32 %v5658, %v5656
  %v5660 = vmul.f32 %v5659, %v5658
  %v5661 = vmul.f32 0.5, %v5660
  %v5662 = vsub.f32 1.5, %v5661
  %v5663 = vmul.f32 %v5658, %v5662
  %vm5664 = vweird.f32 %v5656
  %vm5665 = vweird.f32 %v5658
  %vm5666 = vmor %vm5664, %vm5665
  %v5667 = vsel %vm5666, %v5658, %v5663
  %v5668 = vrsqrt.pop %v5657
  %v5669 = vmul.f32 %v5668, %v5657
  %v5670 = vmul.f32 %v5669, %v5668
  %v5671 = vmul.f32 0.5, %v5670
  %v5672 = vsub.f32 1.5, %v5671
  %v5673 = vmul.f32 %v5668, %v5672
  %vm5674 = vweird.f32 %v5657
  %vm5675 = vweird.f32 %v5668
  %vm5676 = vmor %vm5674, %vm5675
  %v5677 = vsel %vm5676, %v5668, %v5673
  %v5678 = vmul.f32 %v5644, %v5667
  %v5679 = vmul.f32 %v5645, %v5677
  %v5681 = vperm.slane %v5633, 0
  %v5683 = vmul.f32 %v5678, %v5681
  %v5684 = vmul.f32 %v5679, %v5681
  %v5686 = vperm.slane %v5635, 0
  %v5688 = vadd.f32 %v5683, %v5686
  %v5689 = vadd.f32 %v5684, %v5686
  %v5690 = vld [vmem:[%s20] sm:$0x1]
  %v5692 = vperm.slane %v5690, 0
  %v5694 = vmul.f32 %v5688, %v5692
  %v5695 = vmul.f32 %v5689, %v5692
  %v5698 = vrot.slane %v5695, 7
  %v5701 = vsel %vm3640, %v5694, 0.0
  %5702 = vadd.xlane.f32.xlu0 %v5701
  %v5703 = vpop.xlane.xlu0 %5702
  %vm5704 = vcmask 516096
  %v5705 = vsel %vm5704, %v5698, 0.0
  %5706 = vadd.xlane.f32.xlu0 %v5705
  %v5707 = vpop.xlane.xlu0 %5706
  %v5708 = vld [vmem:[#allocation2] sm:$0x1]
  %v5710 = vperm.slane %v5708, 0
  %v5712 = vadd.f32 %v5703, %v5710
  %v5713 = vadd.f32 %v5707, %v5710
  %vm5714 = vcmask 7175
  %5715 = vst.msk [vmem:[%s22 - $0x7] sm:$0x80] %vm5714, %v5712
  %vm5716 = vcmask 0
  %5717 = vst.msk [vmem:[%s22 + $0x1] sm:$0x1] %vm5716, %v5713
  // Predicated region
  $region90: #{model_transformer_forward.1} parent=0 // pred_check
    _
  $region91: #{model_transformer_forward.1} parent=0 // pred_check_branch
    %5719 = sbr.rel (0) target = $region93
  $region92: #{model_transformer_forward.1} parent=0 // pred_region
    _
  $region93: #{model_transformer_forward.1} parent=0 // pred_fallthru
    _
  // Predicated region
  $region94: #{model_transformer_forward.1} parent=0 // pred_check
    _
  $region95: #{model_transformer_forward.1} parent=0 // pred_check_branch
    %5721 = sbr.rel (0) target = $region97
  $region96: #{model_transformer_forward.1} parent=0 // pred_region
    _
  $region97: #{model_transformer_forward.1} parent=0 // pred_fallthru
    _

</llo_original>
